<compile_context>
chip_gen: v6e
topology: v6e:2x2x1
jax: 0.10.0
libtpu: 0.0.40
codegen_flags: <defaults>
</compile_context>

<pallas_src>
import jax
import jax.numpy as jnp
from jax import lax
from jax.experimental import pallas as pl
from jax.experimental.pallas import tpu as pltpu


def fused_lstm_attn_kernel(x_ref, wih_ref, whh_ref, b_ref,
                           aw_ref, ab_ref, pw_ref, pb_ref,
                           logp_ref, attn_ref,
                           xp_ref, hseq_ref):
    """One batch tile: LSTM + masked attention + pooling + projection + log_softmax.

    x_ref:    (T, BT, D)    bf16  time-major embedded inputs
    wih_ref:  (D, 4*HP)     bf16  gate-packed W_ih^T        (gate order i,f,o,g)
    whh_ref:  (HP, 4*HP)    bf16  gate-packed W_hh^T
    b_ref:    (1, 4*HP)     f32   gate-packed (b_ih + b_hh)
    aw_ref:   (1, HP)       f32   attention_weights.weight  (zero-padded lanes)
    ab_ref:   (1, 1)        f32   attention_weights.bias
    pw_ref:   (HP, CP)      f32   output_projection.weight^T (zero-padded)
    pb_ref:   (1, CP)       f32   output_projection.bias (-1e30 on padded lanes)
    logp_ref: (BT, CP)      f32   log_softmax(projection(encoding)), lane-dense
    attn_ref: (BT, TP)      f32   masked softmax attention weights, lane-dense
    xp_ref:   (T*BT, 4*HP)  bf16  scratch: hoisted x @ W_ih (time-major rows)
    hseq_ref: (T, BT, HP)   f32   scratch: per-step hidden states
    """
    T, BT, D = x_ref.shape
    HP = whh_ref.shape[0]
    TP = attn_ref.shape[1]

    # ---- hoisted input projection: ONE MXU matmul, off the serial chain -------
    xp_ref[...] = jnp.dot(
        x_ref[...].reshape(T * BT, D), wih_ref[...],
        preferred_element_type=jnp.float32).astype(jnp.bfloat16)

    bias = b_ref[...]            # (1, 4*HP) f32, added per step (keeps xp bf16)
    whh = whh_ref[...]           # bf16, resident across the whole recurrence
    # TODO(synk): pin W_hh in MXU weight registers across all T steps with
    # pltpu.matmul_push_rhs / matmul_acc_lhs / matmul_pop to drop the per-step
    # weight push from the serial recurrence latency.

    # ---- LSTM recurrence: (h, c) carried in vregs, h stored time-major --------
    def step(t, carry):
        h, c = carry
        row = pl.multiple_of(t * BT, BT)
        gates = (xp_ref[pl.ds(row, BT), :].astype(jnp.float32) + bias
                 + jnp.dot(h.astype(jnp.bfloat16), whh,
                           preferred_element_type=jnp.float32))     # (BT, 4*HP)
        # gate order i,f,o,g: the three sigmoid gates are one contiguous slab.
        sig = jax.nn.sigmoid(gates[:, :3 * HP])
        i_g = sig[:, 0 * HP:1 * HP]
        f_g = sig[:, 1 * HP:2 * HP]
        o_g = sig[:, 2 * HP:3 * HP]
        g_g = jnp.tanh(gates[:, 3 * HP:])
        c = f_g * c + i_g * g_g
        h = o_g * jnp.tanh(c)
        hseq_ref[t] = h
        return (h, c)

    zeros = jnp.zeros((BT, HP), jnp.float32)
    lax.fori_loop(0, T, step, (zeros, zeros), unroll=True)

    # ---- attention: one leading-axes transpose (off the serial chain) brings
    #      the hidden states back to batch-major (B, T, H) like the reference ---
    hin = jnp.transpose(hseq_ref[...], (1, 0, 2))                    # (BT, T, HP)

    # attention logits (nn.Linear(H, 1)); padded lanes of aw are zero.
    logits = jnp.sum(hin * aw_ref[...], axis=-1) + ab_ref[...]       # (BT, T)

    # AllenNLP-style last_dim_softmax with mask = (logits != 0), as the module.
    # TODO(synk): derive the mask from `lengths` once variable-length packing is
    # supported; (logits != 0) replicates the reference but is fragile.
    mask = (logits != 0.0).astype(jnp.float32)
    masked = logits * mask
    m = jnp.max(masked, axis=-1, keepdims=True)
    e = jnp.exp(masked - m)
    p = e / jnp.sum(e, axis=-1, keepdims=True)
    p = p * mask
    p = p / (jnp.sum(p, axis=-1, keepdims=True) + 1e-13)             # (BT, T)

    # attention pooling (torch.bmm with q=1) as VPU broadcast-multiply + reduce.
    enc = jnp.sum(p[:, :, None] * hin, axis=1)                       # (BT, HP)

    # lane-dense attention output: one tiny canonical matmul scatters the T real
    # columns into the 128-lane output slab (no sub-lane-width masked stores).
    eye_pad = (lax.broadcasted_iota(jnp.int32, (T, TP), 0) ==
               lax.broadcasted_iota(jnp.int32, (T, TP), 1)).astype(jnp.float32)
    attn_ref[...] = jnp.dot(p, eye_pad, preferred_element_type=jnp.float32)

    # ---- output projection + log_softmax (eval-mode dropout = identity) -------
    # pb's padded lanes are -1e30, so they contribute ~0 to the softmax sum and
    # the real C lanes equal an exact C-wide log_softmax.
    z = jnp.dot(enc, pw_ref[...], preferred_element_type=jnp.float32) + pb_ref[...]
    zm = jnp.max(z, axis=-1, keepdims=True)
    logp_ref[...] = z - (zm + jnp.log(jnp.sum(jnp.exp(z - zm),
                                              axis=-1, keepdims=True)))


def _pack_params(params, HP, CP):
    """Pad hidden dim to HP (multiple of 128) and classes to CP; repack LSTM
    gates from PyTorch order (i,f,g,o) to (i,f,o,g) so the three sigmoid gates
    form one contiguous slab.  Zero weight/bias columns keep the padded hidden
    lanes exactly 0 through the recurrence (gates=0 -> g=0 -> c=h=0); the only
    non-zero padding is the projection bias (-1e30) so padded logit lanes never
    enter the final softmax."""
    w_ih, w_hh = params["w_ih"], params["w_hh"]          # (4H, D), (4H, H)
    b = params["b_ih"] + params["b_hh"]                  # (4H,)
    H = w_hh.shape[1]
    D = w_ih.shape[1]
    C = params["proj_w"].shape[0]

    gate_src = (0, 1, 3, 2)                              # i, f, o, g  <-  i, f, g, o
    wih_p = jnp.zeros((D, 4 * HP), jnp.float32)
    whh_p = jnp.zeros((HP, 4 * HP), jnp.float32)
    b_p = jnp.zeros((1, 4 * HP), jnp.float32)
    for dst, src in enumerate(gate_src):
        wih_p = wih_p.at[:, dst * HP:dst * HP + H].set(w_ih[src * H:(src + 1) * H, :].T)
        whh_p = whh_p.at[:H, dst * HP:dst * HP + H].set(w_hh[src * H:(src + 1) * H, :].T)
        b_p = b_p.at[0, dst * HP:dst * HP + H].set(b[src * H:(src + 1) * H])

    aw_p = jnp.zeros((1, HP), jnp.float32).at[0, :H].set(params["attn_w"][0])
    ab = params["attn_b"].reshape(1, 1).astype(jnp.float32)
    pw_p = jnp.zeros((HP, CP), jnp.float32).at[:H, :C].set(params["proj_w"].T)
    pb_p = jnp.full((1, CP), -1e30, jnp.float32).at[0, :C].set(params["proj_b"])
    return (wih_p.astype(jnp.bfloat16), whh_p.astype(jnp.bfloat16), b_p,
            aw_p, ab, pw_p, pb_p)


def rnn_sequence_classifier_forward(params, token_ids, context_ids, lengths,
                                    *, batch_tile=16):
    """Forward pass of RNNSequenceClassifier ('att' branch, eval mode).
    Returns (log_probs (B, C), attention_weights (B, T))."""
    # TODO(synk): `lengths` is assumed all == seq_length (sort_batch_by_length /
    # pack_padded_sequence are identities); `context_ids` is embedded and run
    # through the LSTM by the reference but its output is discarded by the 'att'
    # branch, so that dead work is skipped here entirely.
    del context_ids, lengths

    B, T = token_ids.shape
    D = params["embedding"].shape[1]
    H = params["w_hh"].shape[1]
    C = params["proj_w"].shape[0]
    HP = ((H + 127) // 128) * 128
    CP = ((C + 127) // 128) * 128
    TP = ((T + 127) // 128) * 128
    BT = batch_tile                      # multiple of 16 (bf16 matmul-LHS rows)
    B_pad = ((B + BT - 1) // BT) * BT

    wih_p, whh_p, b_p, aw_p, ab, pw_p, pb_p = _pack_params(params, HP, CP)

    # Embedding lookup (host-side gather glue); dropout_on_input_to_LSTM is the
    # identity in eval mode.  Pad the batch to a sublane-aligned tile (zero rows
    # are sliced off below) and go time-major so the kernel's per-step access is
    # a clean leading-row slice.
    x = jnp.take(params["embedding"], token_ids, axis=0)            # (B, T, D)
    x = jnp.pad(x, ((0, B_pad - B), (0, 0), (0, 0)))
    x_tm = jnp.transpose(x, (1, 0, 2)).astype(jnp.bfloat16)         # (T, B_pad, D)

    logp_p, attn_p = pl.pallas_call(
        fused_lstm_attn_kernel,
        out_shape=(jax.ShapeDtypeStruct((B_pad, CP), jnp.float32),
                   jax.ShapeDtypeStruct((B_pad, TP), jnp.float32)),
        grid=(B_pad // BT,),
        in_specs=[
            pl.BlockSpec((T, BT, D), lambda i: (0, i, 0)),          # x (time-major)
            pl.BlockSpec((D, 4 * HP), lambda i: (0, 0)),            # W_ih^T
            pl.BlockSpec((HP, 4 * HP), lambda i: (0, 0)),           # W_hh^T
            pl.BlockSpec((1, 4 * HP), lambda i: (0, 0)),            # b_ih + b_hh
            pl.BlockSpec((1, HP), lambda i: (0, 0)),                # attn weight
            pl.BlockSpec((1, 1), lambda i: (0, 0)),                 # attn bias
            pl.BlockSpec((HP, CP), lambda i: (0, 0)),               # proj weight^T
            pl.BlockSpec((1, CP), lambda i: (0, 0)),                # proj bias
        ],
        out_specs=(pl.BlockSpec((BT, CP), lambda i: (i, 0)),
                   pl.BlockSpec((BT, TP), lambda i: (i, 0))),
        scratch_shapes=[pltpu.VMEM((T * BT, 4 * HP), jnp.bfloat16),  # hoisted x@W_ih
                        pltpu.VMEM((T, BT, HP), jnp.float32)],       # hidden states
        compiler_params=pltpu.CompilerParams(
            dimension_semantics=("parallel",)),
        # TODO(synk): at production shapes, size BT per generation (>=256 LHS
        # rows for the v6e/v7x 256x256 MXU) and keep the per-step VMEM footprint
        # (x + xp + hseq tiles, double-buffered inputs counted twice) under the
        # v7x 64 MiB budget via pltpu.CompilerParams(vmem_limit_bytes=...).
    )(x_tm, wih_p, whh_p, b_p, aw_p, ab, pw_p, pb_p)

    return logp_p[:B, :C], attn_p[:B, :T]


if __name__ == "__main__":
    # Small shapes consistent with the module.
    B, T, CTX = 2, 8, 8          # batch_size, seq_length, context_length
    V = 64                       # vocab size for the embedding table
    D = 32                       # input_dim
    H = 32                       # hidden_size
    C = 4                        # num_classes

    key = jax.random.PRNGKey(0)
    ks = jax.random.split(key, 10)

    params = {
        "embedding": 0.1 * jax.random.normal(ks[0], (V, D), jnp.float32),
        # nn.LSTM parameters (PyTorch shapes, gate order i,f,g,o)
        "w_ih": 0.1 * jax.random.normal(ks[1], (4 * H, D), jnp.float32),
        "w_hh": 0.1 * jax.random.normal(ks[2], (4 * H, H), jnp.float32),
        "b_ih": 0.1 * jax.random.normal(ks[3], (4 * H,), jnp.float32),
        "b_hh": 0.1 * jax.random.normal(ks[4], (4 * H,), jnp.float32),
        # attention_weights = nn.Linear(H, 1)
        "attn_w": 0.1 * jax.random.normal(ks[5], (1, H), jnp.float32),
        "attn_b": 0.1 * jax.random.normal(ks[6], (1,), jnp.float32),
        # output_projection = nn.Linear(H, C)
        "proj_w": 0.1 * jax.random.normal(ks[7], (C, H), jnp.float32),
        "proj_b": 0.1 * jax.random.normal(ks[8], (C,), jnp.float32),
    }

    token_ids = jax.random.randint(ks[9], (B, T), 0, V, dtype=jnp.int32)
    context_ids = jax.random.randint(jax.random.fold_in(ks[9], 1),
                                     (B, CTX), 0, V, dtype=jnp.int32)
    lengths = jnp.full((B,), T, dtype=jnp.int32)

    fwd = jax.jit(rnn_sequence_classifier_forward)
    logp, attn = fwd(params, token_ids, context_ids, lengths)
    jax.block_until_ready((logp, attn))

    assert logp.shape == (B, C) and attn.shape == (B, T)
    assert bool(jnp.all(jnp.isfinite(logp))) and bool(jnp.all(jnp.isfinite(attn)))
    # log_softmax rows and attention rows must (approximately) normalize.
    assert bool(jnp.all(jnp.abs(jnp.sum(jnp.exp(logp), axis=-1) - 1.0) < 1e-3))
    assert bool(jnp.all(jnp.abs(jnp.sum(attn, axis=-1) - 1.0) < 1e-3))
    print("KERNEL_OK")
</pallas_src>

<mosaic_0001>
module attributes {stable_mosaic.version = 11 : i64} {
  func.func @fused_lstm_attn_kernel(%arg0: i32, %arg1: memref<8x16x32xbf16, #tpu.memory_space<vmem>>, %arg2: memref<32x512xbf16, #tpu.memory_space<vmem>>, %arg3: memref<128x512xbf16, #tpu.memory_space<vmem>>, %arg4: memref<1x512xf32, #tpu.memory_space<vmem>>, %arg5: memref<1x128xf32, #tpu.memory_space<vmem>>, %arg6: memref<1x1xf32, #tpu.memory_space<vmem>>, %arg7: memref<128x128xf32, #tpu.memory_space<vmem>>, %arg8: memref<1x128xf32, #tpu.memory_space<vmem>>, %arg9: memref<16x128xf32, #tpu.memory_space<vmem>>, %arg10: memref<16x128xf32, #tpu.memory_space<vmem>>, %arg11: memref<128x512xbf16, #tpu.memory_space<vmem>>, %arg12: memref<8x16x128xf32, #tpu.memory_space<vmem>>) attributes {dimension_semantics = [#tpu.dimension_semantics<parallel>], iteration_bounds = array<i64: 1>, scalar_prefetch = 0 : i64, scratch_operands = 2 : i64, tpu.core_type = #tpu.core_type<tc>, window_params = [{transform_indices = @transform_0, window_bounds = array<i64: 8, 16, 32>}, {pipeline_mode = #tpu.pipeline_mode<synchronous>, transform_indices = @transform_1, window_bounds = array<i64: 32, 512>}, {pipeline_mode = #tpu.pipeline_mode<synchronous>, transform_indices = @transform_2, window_bounds = array<i64: 128, 512>}, {pipeline_mode = #tpu.pipeline_mode<synchronous>, transform_indices = @transform_3, window_bounds = array<i64: 1, 512>}, {pipeline_mode = #tpu.pipeline_mode<synchronous>, transform_indices = @transform_4, window_bounds = array<i64: 1, 128>}, {pipeline_mode = #tpu.pipeline_mode<synchronous>, transform_indices = @transform_5, window_bounds = array<i64: 1, 1>}, {pipeline_mode = #tpu.pipeline_mode<synchronous>, transform_indices = @transform_6, window_bounds = array<i64: 128, 128>}, {pipeline_mode = #tpu.pipeline_mode<synchronous>, transform_indices = @transform_7, window_bounds = array<i64: 1, 128>}, {transform_indices = @transform_8, window_bounds = array<i64: 16, 128>}, {transform_indices = @transform_9, window_bounds = array<i64: 16, 128>}]} {
    %c0 = arith.constant 0 : index
    %c0_0 = arith.constant 0 : index
    %c0_1 = arith.constant 0 : index
    %0 = vector.load %arg1[%c0, %c0_0, %c0_1] : memref<8x16x32xbf16, #tpu.memory_space<vmem>>, vector<8x16x32xbf16>
    %1 = vector.shape_cast %0 : vector<8x16x32xbf16> to vector<128x32xbf16>
    %c0_2 = arith.constant 0 : index
    %c0_3 = arith.constant 0 : index
    %2 = vector.load %arg2[%c0_2, %c0_3] : memref<32x512xbf16, #tpu.memory_space<vmem>>, vector<32x512xbf16>
    %cst = arith.constant dense<0.000000e+00> : vector<128x512xf32>
    %3 = tpu.matmul %1, %2, %cst {dimension_numbers = #tpu.dot_dimension_numbers<[1], [0], [0], [1], [0, 0, 1, 1], [], []>} : vector<128x32xbf16>, vector<32x512xbf16>, vector<128x512xf32> -> vector<128x512xf32>
    %4 = arith.truncf %3 : vector<128x512xf32> to vector<128x512xbf16>
    %c0_4 = arith.constant 0 : index
    %c0_5 = arith.constant 0 : index
    %5 = vector.load %arg11[%c0_4, %c0_5] : memref<128x512xbf16, #tpu.memory_space<vmem>>, vector<128x512xbf16>
    tpu.vector_store %arg11[%c0_4, %c0_5], %4 {strides = array<i32>} : memref<128x512xbf16, #tpu.memory_space<vmem>>, vector<128x512xbf16>,
    %c0_6 = arith.constant 0 : index
    %c0_7 = arith.constant 0 : index
    %6 = vector.load %arg4[%c0_6, %c0_7] : memref<1x512xf32, #tpu.memory_space<vmem>>, vector<1x512xf32>
    %c0_8 = arith.constant 0 : index
    %c0_9 = arith.constant 0 : index
    %7 = vector.load %arg3[%c0_8, %c0_9] : memref<128x512xbf16, #tpu.memory_space<vmem>>, vector<128x512xbf16>
    %cst_10 = arith.constant 0.000000e+00 : f32
    %8 = vector.broadcast %cst_10 : f32 to vector<16x128xf32>
    %c0_i32 = arith.constant 0 : i32
    %c16_i32 = arith.constant 16 : i32
    %9 = arith.muli %c0_i32, %c16_i32 : i32
    %10 = tpu.assume_multiple %9, 16 : i32
    %11 = arith.index_cast %10 : i32 to index
    %c0_11 = arith.constant 0 : index
    %12 = vector.load %arg11[%11, %c0_11] : memref<128x512xbf16, #tpu.memory_space<vmem>>, vector<16x512xbf16>
    %13 = arith.extf %12 : vector<16x512xbf16> to vector<16x512xf32>
    %14 = vector.broadcast %6 : vector<1x512xf32> to vector<16x512xf32>
    %15 = arith.addf %13, %14 : vector<16x512xf32>
    %16 = arith.truncf %8 : vector<16x128xf32> to vector<16x128xbf16>
    %cst_12 = arith.constant dense<0.000000e+00> : vector<16x512xf32>
    %17 = tpu.matmul %16, %7, %cst_12 {dimension_numbers = #tpu.dot_dimension_numbers<[1], [0], [0], [1], [0, 0, 1, 1], [], []>} : vector<16x128xbf16>, vector<128x512xbf16>, vector<16x512xf32> -> vector<16x512xf32>
    %18 = arith.addf %15, %17 : vector<16x512xf32>
    %19 = vector.extract_strided_slice %18 {offsets = [0, 0], sizes = [16, 384], strides = [1, 1]} : vector<16x512xf32> to vector<16x384xf32>
    %20 = arith.negf %19 : vector<16x384xf32>
    %21 = math.exp %20 : vector<16x384xf32>
    %cst_13 = arith.constant 1.000000e+00 : f32
    %22 = vector.broadcast %cst_13 : f32 to vector<16x384xf32>
    %23 = arith.addf %22, %21 : vector<16x384xf32>
    %24 = arith.divf %22, %23 : vector<16x384xf32>
    %25 = vector.extract_strided_slice %24 {offsets = [0, 0], sizes = [16, 128], strides = [1, 1]} : vector<16x384xf32> to vector<16x128xf32>
    %26 = vector.extract_strided_slice %24 {offsets = [0, 128], sizes = [16, 128], strides = [1, 1]} : vector<16x384xf32> to vector<16x128xf32>
    %27 = vector.extract_strided_slice %24 {offsets = [0, 256], sizes = [16, 128], strides = [1, 1]} : vector<16x384xf32> to vector<16x128xf32>
    %28 = vector.extract_strided_slice %18 {offsets = [0, 384], sizes = [16, 128], strides = [1, 1]} : vector<16x512xf32> to vector<16x128xf32>
    %29 = math.tanh %28 : vector<16x128xf32>
    %30 = arith.mulf %26, %8 : vector<16x128xf32>
    %31 = arith.mulf %25, %29 : vector<16x128xf32>
    %32 = arith.addf %30, %31 : vector<16x128xf32>
    %33 = math.tanh %32 : vector<16x128xf32>
    %34 = arith.mulf %27, %33 : vector<16x128xf32>
    %35 = arith.index_cast %c0_i32 : i32 to index
    %c0_14 = arith.constant 0 : index
    %c0_15 = arith.constant 0 : index
    %36 = vector.load %arg12[%35, %c0_14, %c0_15] : memref<8x16x128xf32, #tpu.memory_space<vmem>>, vector<1x16x128xf32>
    %37 = vector.shape_cast %36 : vector<1x16x128xf32> to vector<16x128xf32>
    %38 = vector.shape_cast %34 : vector<16x128xf32> to vector<1x16x128xf32>
    tpu.vector_store %arg12[%35, %c0_14, %c0_15], %38 {strides = array<i32>} : memref<8x16x128xf32, #tpu.memory_space<vmem>>, vector<1x16x128xf32>,
    %c1_i32 = arith.constant 1 : i32
    %c16_i32_16 = arith.constant 16 : i32
    %39 = arith.muli %c1_i32, %c16_i32_16 : i32
    %40 = tpu.assume_multiple %39, 16 : i32
    %41 = arith.index_cast %40 : i32 to index
    %c0_17 = arith.constant 0 : index
    %42 = vector.load %arg11[%41, %c0_17] : memref<128x512xbf16, #tpu.memory_space<vmem>>, vector<16x512xbf16>
    %43 = arith.extf %42 : vector<16x512xbf16> to vector<16x512xf32>
    %44 = vector.broadcast %6 : vector<1x512xf32> to vector<16x512xf32>
    %45 = arith.addf %43, %44 : vector<16x512xf32>
    %46 = arith.truncf %34 : vector<16x128xf32> to vector<16x128xbf16>
    %cst_18 = arith.constant dense<0.000000e+00> : vector<16x512xf32>
    %47 = tpu.matmul %46, %7, %cst_18 {dimension_numbers = #tpu.dot_dimension_numbers<[1], [0], [0], [1], [0, 0, 1, 1], [], []>} : vector<16x128xbf16>, vector<128x512xbf16>, vector<16x512xf32> -> vector<16x512xf32>
    %48 = arith.addf %45, %47 : vector<16x512xf32>
    %49 = vector.extract_strided_slice %48 {offsets = [0, 0], sizes = [16, 384], strides = [1, 1]} : vector<16x512xf32> to vector<16x384xf32>
    %50 = arith.negf %49 : vector<16x384xf32>
    %51 = math.exp %50 : vector<16x384xf32>
    %cst_19 = arith.constant 1.000000e+00 : f32
    %52 = vector.broadcast %cst_19 : f32 to vector<16x384xf32>
    %53 = arith.addf %52, %51 : vector<16x384xf32>
    %54 = arith.divf %52, %53 : vector<16x384xf32>
    %55 = vector.extract_strided_slice %54 {offsets = [0, 0], sizes = [16, 128], strides = [1, 1]} : vector<16x384xf32> to vector<16x128xf32>
    %56 = vector.extract_strided_slice %54 {offsets = [0, 128], sizes = [16, 128], strides = [1, 1]} : vector<16x384xf32> to vector<16x128xf32>
    %57 = vector.extract_strided_slice %54 {offsets = [0, 256], sizes = [16, 128], strides = [1, 1]} : vector<16x384xf32> to vector<16x128xf32>
    %58 = vector.extract_strided_slice %48 {offsets = [0, 384], sizes = [16, 128], strides = [1, 1]} : vector<16x512xf32> to vector<16x128xf32>
    %59 = math.tanh %58 : vector<16x128xf32>
    %60 = arith.mulf %56, %32 : vector<16x128xf32>
    %61 = arith.mulf %55, %59 : vector<16x128xf32>
    %62 = arith.addf %60, %61 : vector<16x128xf32>
    %63 = math.tanh %62 : vector<16x128xf32>
    %64 = arith.mulf %57, %63 : vector<16x128xf32>
    %65 = arith.index_cast %c1_i32 : i32 to index
    %c0_20 = arith.constant 0 : index
    %c0_21 = arith.constant 0 : index
    %66 = vector.load %arg12[%65, %c0_20, %c0_21] : memref<8x16x128xf32, #tpu.memory_space<vmem>>, vector<1x16x128xf32>
    %67 = vector.shape_cast %66 : vector<1x16x128xf32> to vector<16x128xf32>
    %68 = vector.shape_cast %64 : vector<16x128xf32> to vector<1x16x128xf32>
    tpu.vector_store %arg12[%65, %c0_20, %c0_21], %68 {strides = array<i32>} : memref<8x16x128xf32, #tpu.memory_space<vmem>>, vector<1x16x128xf32>,
    %c2_i32 = arith.constant 2 : i32
    %c16_i32_22 = arith.constant 16 : i32
    %69 = arith.muli %c2_i32, %c16_i32_22 : i32
    %70 = tpu.assume_multiple %69, 16 : i32
    %71 = arith.index_cast %70 : i32 to index
    %c0_23 = arith.constant 0 : index
    %72 = vector.load %arg11[%71, %c0_23] : memref<128x512xbf16, #tpu.memory_space<vmem>>, vector<16x512xbf16>
    %73 = arith.extf %72 : vector<16x512xbf16> to vector<16x512xf32>
    %74 = vector.broadcast %6 : vector<1x512xf32> to vector<16x512xf32>
    %75 = arith.addf %73, %74 : vector<16x512xf32>
    %76 = arith.truncf %64 : vector<16x128xf32> to vector<16x128xbf16>
    %cst_24 = arith.constant dense<0.000000e+00> : vector<16x512xf32>
    %77 = tpu.matmul %76, %7, %cst_24 {dimension_numbers = #tpu.dot_dimension_numbers<[1], [0], [0], [1], [0, 0, 1, 1], [], []>} : vector<16x128xbf16>, vector<128x512xbf16>, vector<16x512xf32> -> vector<16x512xf32>
    %78 = arith.addf %75, %77 : vector<16x512xf32>
    %79 = vector.extract_strided_slice %78 {offsets = [0, 0], sizes = [16, 384], strides = [1, 1]} : vector<16x512xf32> to vector<16x384xf32>
    %80 = arith.negf %79 : vector<16x384xf32>
    %81 = math.exp %80 : vector<16x384xf32>
    %cst_25 = arith.constant 1.000000e+00 : f32
    %82 = vector.broadcast %cst_25 : f32 to vector<16x384xf32>
    %83 = arith.addf %82, %81 : vector<16x384xf32>
    %84 = arith.divf %82, %83 : vector<16x384xf32>
    %85 = vector.extract_strided_slice %84 {offsets = [0, 0], sizes = [16, 128], strides = [1, 1]} : vector<16x384xf32> to vector<16x128xf32>
    %86 = vector.extract_strided_slice %84 {offsets = [0, 128], sizes = [16, 128], strides = [1, 1]} : vector<16x384xf32> to vector<16x128xf32>
    %87 = vector.extract_strided_slice %84 {offsets = [0, 256], sizes = [16, 128], strides = [1, 1]} : vector<16x384xf32> to vector<16x128xf32>
    %88 = vector.extract_strided_slice %78 {offsets = [0, 384], sizes = [16, 128], strides = [1, 1]} : vector<16x512xf32> to vector<16x128xf32>
    %89 = math.tanh %88 : vector<16x128xf32>
    %90 = arith.mulf %86, %62 : vector<16x128xf32>
    %91 = arith.mulf %85, %89 : vector<16x128xf32>
    %92 = arith.addf %90, %91 : vector<16x128xf32>
    %93 = math.tanh %92 : vector<16x128xf32>
    %94 = arith.mulf %87, %93 : vector<16x128xf32>
    %95 = arith.index_cast %c2_i32 : i32 to index
    %c0_26 = arith.constant 0 : index
    %c0_27 = arith.constant 0 : index
    %96 = vector.load %arg12[%95, %c0_26, %c0_27] : memref<8x16x128xf32, #tpu.memory_space<vmem>>, vector<1x16x128xf32>
    %97 = vector.shape_cast %96 : vector<1x16x128xf32> to vector<16x128xf32>
    %98 = vector.shape_cast %94 : vector<16x128xf32> to vector<1x16x128xf32>
    tpu.vector_store %arg12[%95, %c0_26, %c0_27], %98 {strides = array<i32>} : memref<8x16x128xf32, #tpu.memory_space<vmem>>, vector<1x16x128xf32>,
    %c3_i32 = arith.constant 3 : i32
    %c16_i32_28 = arith.constant 16 : i32
    %99 = arith.muli %c3_i32, %c16_i32_28 : i32
    %100 = tpu.assume_multiple %99, 16 : i32
    %101 = arith.index_cast %100 : i32 to index
    %c0_29 = arith.constant 0 : index
    %102 = vector.load %arg11[%101, %c0_29] : memref<128x512xbf16, #tpu.memory_space<vmem>>, vector<16x512xbf16>
    %103 = arith.extf %102 : vector<16x512xbf16> to vector<16x512xf32>
    %104 = vector.broadcast %6 : vector<1x512xf32> to vector<16x512xf32>
    %105 = arith.addf %103, %104 : vector<16x512xf32>
    %106 = arith.truncf %94 : vector<16x128xf32> to vector<16x128xbf16>
    %cst_30 = arith.constant dense<0.000000e+00> : vector<16x512xf32>
    %107 = tpu.matmul %106, %7, %cst_30 {dimension_numbers = #tpu.dot_dimension_numbers<[1], [0], [0], [1], [0, 0, 1, 1], [], []>} : vector<16x128xbf16>, vector<128x512xbf16>, vector<16x512xf32> -> vector<16x512xf32>
    %108 = arith.addf %105, %107 : vector<16x512xf32>
    %109 = vector.extract_strided_slice %108 {offsets = [0, 0], sizes = [16, 384], strides = [1, 1]} : vector<16x512xf32> to vector<16x384xf32>
    %110 = arith.negf %109 : vector<16x384xf32>
    %111 = math.exp %110 : vector<16x384xf32>
    %cst_31 = arith.constant 1.000000e+00 : f32
    %112 = vector.broadcast %cst_31 : f32 to vector<16x384xf32>
    %113 = arith.addf %112, %111 : vector<16x384xf32>
    %114 = arith.divf %112, %113 : vector<16x384xf32>
    %115 = vector.extract_strided_slice %114 {offsets = [0, 0], sizes = [16, 128], strides = [1, 1]} : vector<16x384xf32> to vector<16x128xf32>
    %116 = vector.extract_strided_slice %114 {offsets = [0, 128], sizes = [16, 128], strides = [1, 1]} : vector<16x384xf32> to vector<16x128xf32>
    %117 = vector.extract_strided_slice %114 {offsets = [0, 256], sizes = [16, 128], strides = [1, 1]} : vector<16x384xf32> to vector<16x128xf32>
    %118 = vector.extract_strided_slice %108 {offsets = [0, 384], sizes = [16, 128], strides = [1, 1]} : vector<16x512xf32> to vector<16x128xf32>
    %119 = math.tanh %118 : vector<16x128xf32>
    %120 = arith.mulf %116, %92 : vector<16x128xf32>
    %121 = arith.mulf %115, %119 : vector<16x128xf32>
    %122 = arith.addf %120, %121 : vector<16x128xf32>
    %123 = math.tanh %122 : vector<16x128xf32>
    %124 = arith.mulf %117, %123 : vector<16x128xf32>
    %125 = arith.index_cast %c3_i32 : i32 to index
    %c0_32 = arith.constant 0 : index
    %c0_33 = arith.constant 0 : index
    %126 = vector.load %arg12[%125, %c0_32, %c0_33] : memref<8x16x128xf32, #tpu.memory_space<vmem>>, vector<1x16x128xf32>
    %127 = vector.shape_cast %126 : vector<1x16x128xf32> to vector<16x128xf32>
    %128 = vector.shape_cast %124 : vector<16x128xf32> to vector<1x16x128xf32>
    tpu.vector_store %arg12[%125, %c0_32, %c0_33], %128 {strides = array<i32>} : memref<8x16x128xf32, #tpu.memory_space<vmem>>, vector<1x16x128xf32>,
    %c4_i32 = arith.constant 4 : i32
    %c16_i32_34 = arith.constant 16 : i32
    %129 = arith.muli %c4_i32, %c16_i32_34 : i32
    %130 = tpu.assume_multiple %129, 16 : i32
    %131 = arith.index_cast %130 : i32 to index
    %c0_35 = arith.constant 0 : index
    %132 = vector.load %arg11[%131, %c0_35] : memref<128x512xbf16, #tpu.memory_space<vmem>>, vector<16x512xbf16>
    %133 = arith.extf %132 : vector<16x512xbf16> to vector<16x512xf32>
    %134 = vector.broadcast %6 : vector<1x512xf32> to vector<16x512xf32>
    %135 = arith.addf %133, %134 : vector<16x512xf32>
    %136 = arith.truncf %124 : vector<16x128xf32> to vector<16x128xbf16>
    %cst_36 = arith.constant dense<0.000000e+00> : vector<16x512xf32>
    %137 = tpu.matmul %136, %7, %cst_36 {dimension_numbers = #tpu.dot_dimension_numbers<[1], [0], [0], [1], [0, 0, 1, 1], [], []>} : vector<16x128xbf16>, vector<128x512xbf16>, vector<16x512xf32> -> vector<16x512xf32>
    %138 = arith.addf %135, %137 : vector<16x512xf32>
    %139 = vector.extract_strided_slice %138 {offsets = [0, 0], sizes = [16, 384], strides = [1, 1]} : vector<16x512xf32> to vector<16x384xf32>
    %140 = arith.negf %139 : vector<16x384xf32>
    %141 = math.exp %140 : vector<16x384xf32>
    %cst_37 = arith.constant 1.000000e+00 : f32
    %142 = vector.broadcast %cst_37 : f32 to vector<16x384xf32>
    %143 = arith.addf %142, %141 : vector<16x384xf32>
    %144 = arith.divf %142, %143 : vector<16x384xf32>
    %145 = vector.extract_strided_slice %144 {offsets = [0, 0], sizes = [16, 128], strides = [1, 1]} : vector<16x384xf32> to vector<16x128xf32>
    %146 = vector.extract_strided_slice %144 {offsets = [0, 128], sizes = [16, 128], strides = [1, 1]} : vector<16x384xf32> to vector<16x128xf32>
    %147 = vector.extract_strided_slice %144 {offsets = [0, 256], sizes = [16, 128], strides = [1, 1]} : vector<16x384xf32> to vector<16x128xf32>
    %148 = vector.extract_strided_slice %138 {offsets = [0, 384], sizes = [16, 128], strides = [1, 1]} : vector<16x512xf32> to vector<16x128xf32>
    %149 = math.tanh %148 : vector<16x128xf32>
    %150 = arith.mulf %146, %122 : vector<16x128xf32>
    %151 = arith.mulf %145, %149 : vector<16x128xf32>
    %152 = arith.addf %150, %151 : vector<16x128xf32>
    %153 = math.tanh %152 : vector<16x128xf32>
    %154 = arith.mulf %147, %153 : vector<16x128xf32>
    %155 = arith.index_cast %c4_i32 : i32 to index
    %c0_38 = arith.constant 0 : index
    %c0_39 = arith.constant 0 : index
    %156 = vector.load %arg12[%155, %c0_38, %c0_39] : memref<8x16x128xf32, #tpu.memory_space<vmem>>, vector<1x16x128xf32>
    %157 = vector.shape_cast %156 : vector<1x16x128xf32> to vector<16x128xf32>
    %158 = vector.shape_cast %154 : vector<16x128xf32> to vector<1x16x128xf32>
    tpu.vector_store %arg12[%155, %c0_38, %c0_39], %158 {strides = array<i32>} : memref<8x16x128xf32, #tpu.memory_space<vmem>>, vector<1x16x128xf32>,
    %c5_i32 = arith.constant 5 : i32
    %c16_i32_40 = arith.constant 16 : i32
    %159 = arith.muli %c5_i32, %c16_i32_40 : i32
    %160 = tpu.assume_multiple %159, 16 : i32
    %161 = arith.index_cast %160 : i32 to index
    %c0_41 = arith.constant 0 : index
    %162 = vector.load %arg11[%161, %c0_41] : memref<128x512xbf16, #tpu.memory_space<vmem>>, vector<16x512xbf16>
    %163 = arith.extf %162 : vector<16x512xbf16> to vector<16x512xf32>
    %164 = vector.broadcast %6 : vector<1x512xf32> to vector<16x512xf32>
    %165 = arith.addf %163, %164 : vector<16x512xf32>
    %166 = arith.truncf %154 : vector<16x128xf32> to vector<16x128xbf16>
    %cst_42 = arith.constant dense<0.000000e+00> : vector<16x512xf32>
    %167 = tpu.matmul %166, %7, %cst_42 {dimension_numbers = #tpu.dot_dimension_numbers<[1], [0], [0], [1], [0, 0, 1, 1], [], []>} : vector<16x128xbf16>, vector<128x512xbf16>, vector<16x512xf32> -> vector<16x512xf32>
    %168 = arith.addf %165, %167 : vector<16x512xf32>
    %169 = vector.extract_strided_slice %168 {offsets = [0, 0], sizes = [16, 384], strides = [1, 1]} : vector<16x512xf32> to vector<16x384xf32>
    %170 = arith.negf %169 : vector<16x384xf32>
    %171 = math.exp %170 : vector<16x384xf32>
    %cst_43 = arith.constant 1.000000e+00 : f32
    %172 = vector.broadcast %cst_43 : f32 to vector<16x384xf32>
    %173 = arith.addf %172, %171 : vector<16x384xf32>
    %174 = arith.divf %172, %173 : vector<16x384xf32>
    %175 = vector.extract_strided_slice %174 {offsets = [0, 0], sizes = [16, 128], strides = [1, 1]} : vector<16x384xf32> to vector<16x128xf32>
    %176 = vector.extract_strided_slice %174 {offsets = [0, 128], sizes = [16, 128], strides = [1, 1]} : vector<16x384xf32> to vector<16x128xf32>
    %177 = vector.extract_strided_slice %174 {offsets = [0, 256], sizes = [16, 128], strides = [1, 1]} : vector<16x384xf32> to vector<16x128xf32>
    %178 = vector.extract_strided_slice %168 {offsets = [0, 384], sizes = [16, 128], strides = [1, 1]} : vector<16x512xf32> to vector<16x128xf32>
    %179 = math.tanh %178 : vector<16x128xf32>
    %180 = arith.mulf %176, %152 : vector<16x128xf32>
    %181 = arith.mulf %175, %179 : vector<16x128xf32>
    %182 = arith.addf %180, %181 : vector<16x128xf32>
    %183 = math.tanh %182 : vector<16x128xf32>
    %184 = arith.mulf %177, %183 : vector<16x128xf32>
    %185 = arith.index_cast %c5_i32 : i32 to index
    %c0_44 = arith.constant 0 : index
    %c0_45 = arith.constant 0 : index
    %186 = vector.load %arg12[%185, %c0_44, %c0_45] : memref<8x16x128xf32, #tpu.memory_space<vmem>>, vector<1x16x128xf32>
    %187 = vector.shape_cast %186 : vector<1x16x128xf32> to vector<16x128xf32>
    %188 = vector.shape_cast %184 : vector<16x128xf32> to vector<1x16x128xf32>
    tpu.vector_store %arg12[%185, %c0_44, %c0_45], %188 {strides = array<i32>} : memref<8x16x128xf32, #tpu.memory_space<vmem>>, vector<1x16x128xf32>,
    %c6_i32 = arith.constant 6 : i32
    %c16_i32_46 = arith.constant 16 : i32
    %189 = arith.muli %c6_i32, %c16_i32_46 : i32
    %190 = tpu.assume_multiple %189, 16 : i32
    %191 = arith.index_cast %190 : i32 to index
    %c0_47 = arith.constant 0 : index
    %192 = vector.load %arg11[%191, %c0_47] : memref<128x512xbf16, #tpu.memory_space<vmem>>, vector<16x512xbf16>
    %193 = arith.extf %192 : vector<16x512xbf16> to vector<16x512xf32>
    %194 = vector.broadcast %6 : vector<1x512xf32> to vector<16x512xf32>
    %195 = arith.addf %193, %194 : vector<16x512xf32>
    %196 = arith.truncf %184 : vector<16x128xf32> to vector<16x128xbf16>
    %cst_48 = arith.constant dense<0.000000e+00> : vector<16x512xf32>
    %197 = tpu.matmul %196, %7, %cst_48 {dimension_numbers = #tpu.dot_dimension_numbers<[1], [0], [0], [1], [0, 0, 1, 1], [], []>} : vector<16x128xbf16>, vector<128x512xbf16>, vector<16x512xf32> -> vector<16x512xf32>
    %198 = arith.addf %195, %197 : vector<16x512xf32>
    %199 = vector.extract_strided_slice %198 {offsets = [0, 0], sizes = [16, 384], strides = [1, 1]} : vector<16x512xf32> to vector<16x384xf32>
    %200 = arith.negf %199 : vector<16x384xf32>
    %201 = math.exp %200 : vector<16x384xf32>
    %cst_49 = arith.constant 1.000000e+00 : f32
    %202 = vector.broadcast %cst_49 : f32 to vector<16x384xf32>
    %203 = arith.addf %202, %201 : vector<16x384xf32>
    %204 = arith.divf %202, %203 : vector<16x384xf32>
    %205 = vector.extract_strided_slice %204 {offsets = [0, 0], sizes = [16, 128], strides = [1, 1]} : vector<16x384xf32> to vector<16x128xf32>
    %206 = vector.extract_strided_slice %204 {offsets = [0, 128], sizes = [16, 128], strides = [1, 1]} : vector<16x384xf32> to vector<16x128xf32>
    %207 = vector.extract_strided_slice %204 {offsets = [0, 256], sizes = [16, 128], strides = [1, 1]} : vector<16x384xf32> to vector<16x128xf32>
    %208 = vector.extract_strided_slice %198 {offsets = [0, 384], sizes = [16, 128], strides = [1, 1]} : vector<16x512xf32> to vector<16x128xf32>
    %209 = math.tanh %208 : vector<16x128xf32>
    %210 = arith.mulf %206, %182 : vector<16x128xf32>
    %211 = arith.mulf %205, %209 : vector<16x128xf32>
    %212 = arith.addf %210, %211 : vector<16x128xf32>
    %213 = math.tanh %212 : vector<16x128xf32>
    %214 = arith.mulf %207, %213 : vector<16x128xf32>
    %215 = arith.index_cast %c6_i32 : i32 to index
    %c0_50 = arith.constant 0 : index
    %c0_51 = arith.constant 0 : index
    %216 = vector.load %arg12[%215, %c0_50, %c0_51] : memref<8x16x128xf32, #tpu.memory_space<vmem>>, vector<1x16x128xf32>
    %217 = vector.shape_cast %216 : vector<1x16x128xf32> to vector<16x128xf32>
    %218 = vector.shape_cast %214 : vector<16x128xf32> to vector<1x16x128xf32>
    tpu.vector_store %arg12[%215, %c0_50, %c0_51], %218 {strides = array<i32>} : memref<8x16x128xf32, #tpu.memory_space<vmem>>, vector<1x16x128xf32>,
    %c7_i32 = arith.constant 7 : i32
    %c16_i32_52 = arith.constant 16 : i32
    %219 = arith.muli %c7_i32, %c16_i32_52 : i32
    %220 = tpu.assume_multiple %219, 16 : i32
    %221 = arith.index_cast %220 : i32 to index
    %c0_53 = arith.constant 0 : index
    %222 = vector.load %arg11[%221, %c0_53] : memref<128x512xbf16, #tpu.memory_space<vmem>>, vector<16x512xbf16>
    %223 = arith.extf %222 : vector<16x512xbf16> to vector<16x512xf32>
    %224 = vector.broadcast %6 : vector<1x512xf32> to vector<16x512xf32>
    %225 = arith.addf %223, %224 : vector<16x512xf32>
    %226 = arith.truncf %214 : vector<16x128xf32> to vector<16x128xbf16>
    %cst_54 = arith.constant dense<0.000000e+00> : vector<16x512xf32>
    %227 = tpu.matmul %226, %7, %cst_54 {dimension_numbers = #tpu.dot_dimension_numbers<[1], [0], [0], [1], [0, 0, 1, 1], [], []>} : vector<16x128xbf16>, vector<128x512xbf16>, vector<16x512xf32> -> vector<16x512xf32>
    %228 = arith.addf %225, %227 : vector<16x512xf32>
    %229 = vector.extract_strided_slice %228 {offsets = [0, 0], sizes = [16, 384], strides = [1, 1]} : vector<16x512xf32> to vector<16x384xf32>
    %230 = arith.negf %229 : vector<16x384xf32>
    %231 = math.exp %230 : vector<16x384xf32>
    %cst_55 = arith.constant 1.000000e+00 : f32
    %232 = vector.broadcast %cst_55 : f32 to vector<16x384xf32>
    %233 = arith.addf %232, %231 : vector<16x384xf32>
    %234 = arith.divf %232, %233 : vector<16x384xf32>
    %235 = vector.extract_strided_slice %234 {offsets = [0, 0], sizes = [16, 128], strides = [1, 1]} : vector<16x384xf32> to vector<16x128xf32>
    %236 = vector.extract_strided_slice %234 {offsets = [0, 128], sizes = [16, 128], strides = [1, 1]} : vector<16x384xf32> to vector<16x128xf32>
    %237 = vector.extract_strided_slice %234 {offsets = [0, 256], sizes = [16, 128], strides = [1, 1]} : vector<16x384xf32> to vector<16x128xf32>
    %238 = vector.extract_strided_slice %228 {offsets = [0, 384], sizes = [16, 128], strides = [1, 1]} : vector<16x512xf32> to vector<16x128xf32>
    %239 = math.tanh %238 : vector<16x128xf32>
    %240 = arith.mulf %236, %212 : vector<16x128xf32>
    %241 = arith.mulf %235, %239 : vector<16x128xf32>
    %242 = arith.addf %240, %241 : vector<16x128xf32>
    %243 = math.tanh %242 : vector<16x128xf32>
    %244 = arith.mulf %237, %243 : vector<16x128xf32>
    %245 = arith.index_cast %c7_i32 : i32 to index
    %c0_56 = arith.constant 0 : index
    %c0_57 = arith.constant 0 : index
    %246 = vector.load %arg12[%245, %c0_56, %c0_57] : memref<8x16x128xf32, #tpu.memory_space<vmem>>, vector<1x16x128xf32>
    %247 = vector.shape_cast %246 : vector<1x16x128xf32> to vector<16x128xf32>
    %248 = vector.shape_cast %244 : vector<16x128xf32> to vector<1x16x128xf32>
    tpu.vector_store %arg12[%245, %c0_56, %c0_57], %248 {strides = array<i32>} : memref<8x16x128xf32, #tpu.memory_space<vmem>>, vector<1x16x128xf32>,
    %c8_i32 = arith.constant 8 : i32
    %c0_58 = arith.constant 0 : index
    %c0_59 = arith.constant 0 : index
    %c0_60 = arith.constant 0 : index
    %249 = vector.load %arg12[%c0_58, %c0_59, %c0_60] : memref<8x16x128xf32, #tpu.memory_space<vmem>>, vector<8x16x128xf32>
    %250 = tpu.transpose %249, [1, 0, 2] : vector<8x16x128xf32> -> vector<16x8x128xf32>
    %c0_61 = arith.constant 0 : index
    %c0_62 = arith.constant 0 : index
    %251 = vector.load %arg5[%c0_61, %c0_62] : memref<1x128xf32, #tpu.memory_space<vmem>>, vector<1x128xf32>
    %252 = vector.shape_cast %251 : vector<1x128xf32> to vector<1x1x128xf32>
    %253 = vector.broadcast %252 : vector<1x1x128xf32> to vector<16x8x128xf32>
    %254 = arith.mulf %250, %253 : vector<16x8x128xf32>
    %cst_63 = arith.constant dense<0.000000e+00> : vector<16x8xf32>
    %255 = vector.multi_reduction <add>, %254, %cst_63 [2] : vector<16x8x128xf32> to vector<16x8xf32>
    %c0_64 = arith.constant 0 : index
    %c0_65 = arith.constant 0 : index
    %256 = vector.load %arg6[%c0_64, %c0_65] : memref<1x1xf32, #tpu.memory_space<vmem>>, vector<1x1xf32>
    %257 = vector.broadcast %256 : vector<1x1xf32> to vector<16x8xf32>
    %258 = arith.addf %255, %257 : vector<16x8xf32>
    %cst_66 = arith.constant 0.000000e+00 : f32
    %259 = vector.broadcast %cst_66 : f32 to vector<16x8xf32>
    %260 = arith.cmpf one, %258, %259 : vector<16x8xf32>
    %261 = arith.extui %260 : vector<16x8xi1> to vector<16x8xi32>
    %262 = arith.sitofp %261 : vector<16x8xi32> to vector<16x8xf32>
    %263 = arith.mulf %258, %262 : vector<16x8xf32>
    %cst_67 = arith.constant dense<0xFF800000> : vector<16xf32>
    %264 = vector.multi_reduction <maximumf>, %263, %cst_67 [1] : vector<16x8xf32> to vector<16xf32>
    %265 = vector.shape_cast %264 : vector<16xf32> to vector<16x1xf32>
    %266 = vector.broadcast %265 : vector<16x1xf32> to vector<16x8xf32>
    %267 = arith.subf %263, %266 : vector<16x8xf32>
    %268 = math.exp %267 : vector<16x8xf32>
    %cst_68 = arith.constant dense<0.000000e+00> : vector<16xf32>
    %269 = vector.multi_reduction <add>, %268, %cst_68 [1] : vector<16x8xf32> to vector<16xf32>
    %270 = vector.shape_cast %269 : vector<16xf32> to vector<16x1xf32>
    %271 = vector.broadcast %270 : vector<16x1xf32> to vector<16x8xf32>
    %272 = arith.divf %268, %271 : vector<16x8xf32>
    %273 = arith.mulf %272, %262 : vector<16x8xf32>
    %cst_69 = arith.constant dense<0.000000e+00> : vector<16xf32>
    %274 = vector.multi_reduction <add>, %273, %cst_69 [1] : vector<16x8xf32> to vector<16xf32>
    %275 = vector.shape_cast %274 : vector<16xf32> to vector<16x1xf32>
    %cst_70 = arith.constant 9.99999982E-14 : f32
    %276 = vector.broadcast %cst_70 : f32 to vector<16x1xf32>
    %277 = arith.addf %275, %276 : vector<16x1xf32>
    %278 = vector.broadcast %277 : vector<16x1xf32> to vector<16x8xf32>
    %279 = arith.divf %273, %278 : vector<16x8xf32>
    %280 = vector.shape_cast %279 : vector<16x8xf32> to vector<16x8x1xf32>
    %281 = vector.broadcast %280 : vector<16x8x1xf32> to vector<16x8x128xf32>
    %282 = arith.mulf %281, %250 : vector<16x8x128xf32>
    %cst_71 = arith.constant dense<0.000000e+00> : vector<16x128xf32>
    %283 = vector.multi_reduction <add>, %282, %cst_71 [1] : vector<16x8x128xf32> to vector<16x128xf32>
    %284 = tpu.iota {dimensions = array<i32: 0>} : vector<8x128xi32>
    %285 = tpu.iota {dimensions = array<i32: 1>} : vector<8x128xi32>
    %286 = arith.cmpi eq, %284, %285 : vector<8x128xi32>
    %287 = arith.extui %286 : vector<8x128xi1> to vector<8x128xi32>
    %288 = arith.sitofp %287 : vector<8x128xi32> to vector<8x128xf32>
    %cst_72 = arith.constant dense<0.000000e+00> : vector<16x128xf32>
    %289 = tpu.matmul %279, %288, %cst_72 {dimension_numbers = #tpu.dot_dimension_numbers<[1], [0], [0], [1], [0, 0, 1, 1], [], []>} : vector<16x8xf32>, vector<8x128xf32>, vector<16x128xf32> -> vector<16x128xf32>
    %c0_73 = arith.constant 0 : index
    %c0_74 = arith.constant 0 : index
    %290 = vector.load %arg10[%c0_73, %c0_74] : memref<16x128xf32, #tpu.memory_space<vmem>>, vector<16x128xf32>
    tpu.vector_store %arg10[%c0_73, %c0_74], %289 {strides = array<i32>} : memref<16x128xf32, #tpu.memory_space<vmem>>, vector<16x128xf32>,
    %c0_75 = arith.constant 0 : index
    %c0_76 = arith.constant 0 : index
    %291 = vector.load %arg7[%c0_75, %c0_76] : memref<128x128xf32, #tpu.memory_space<vmem>>, vector<128x128xf32>
    %cst_77 = arith.constant dense<0.000000e+00> : vector<16x128xf32>
    %292 = tpu.matmul %283, %291, %cst_77 {dimension_numbers = #tpu.dot_dimension_numbers<[1], [0], [0], [1], [0, 0, 1, 1], [], []>} : vector<16x128xf32>, vector<128x128xf32>, vector<16x128xf32> -> vector<16x128xf32>
    %c0_78 = arith.constant 0 : index
    %c0_79 = arith.constant 0 : index
    %293 = vector.load %arg8[%c0_78, %c0_79] : memref<1x128xf32, #tpu.memory_space<vmem>>, vector<1x128xf32>
    %294 = vector.broadcast %293 : vector<1x128xf32> to vector<16x128xf32>
    %295 = arith.addf %292, %294 : vector<16x128xf32>
    %cst_80 = arith.constant dense<0xFF800000> : vector<16xf32>
    %296 = vector.multi_reduction <maximumf>, %295, %cst_80 [1] : vector<16x128xf32> to vector<16xf32>
    %297 = vector.shape_cast %296 : vector<16xf32> to vector<16x1xf32>
    %298 = vector.broadcast %297 : vector<16x1xf32> to vector<16x128xf32>
    %299 = arith.subf %295, %298 : vector<16x128xf32>
    %300 = math.exp %299 : vector<16x128xf32>
    %cst_81 = arith.constant dense<0.000000e+00> : vector<16xf32>
    %301 = vector.multi_reduction <add>, %300, %cst_81 [1] : vector<16x128xf32> to vector<16xf32>
    %302 = vector.shape_cast %301 : vector<16xf32> to vector<16x1xf32>
    %303 = math.log %302 : vector<16x1xf32>
    %304 = arith.addf %297, %303 : vector<16x1xf32>
    %305 = vector.broadcast %304 : vector<16x1xf32> to vector<16x128xf32>
    %306 = arith.subf %295, %305 : vector<16x128xf32>
    %c0_82 = arith.constant 0 : index
    %c0_83 = arith.constant 0 : index
    %307 = vector.load %arg9[%c0_82, %c0_83] : memref<16x128xf32, #tpu.memory_space<vmem>>, vector<16x128xf32>
    tpu.vector_store %arg9[%c0_82, %c0_83], %306 {strides = array<i32>} : memref<16x128xf32, #tpu.memory_space<vmem>>, vector<16x128xf32>,
    return
  }
  func.func @transform_0(%arg0: i32) -> (i32, i32, i32) {
    %c0_i32 = arith.constant 0 : i32
    %c0_i32_0 = arith.constant 0 : i32
    %c0_i32_1 = arith.constant 0 : i32
    return %c0_i32, %arg0, %c0_i32_0 : i32, i32, i32
  }
  func.func @transform_1(%arg0: i32) -> (i32, i32) {
    %c0_i32 = arith.constant 0 : i32
    %c0_i32_0 = arith.constant 0 : i32
    %c0_i32_1 = arith.constant 0 : i32
    return %c0_i32, %c0_i32_0 : i32, i32
  }
  func.func @transform_2(%arg0: i32) -> (i32, i32) {
    %c0_i32 = arith.constant 0 : i32
    %c0_i32_0 = arith.constant 0 : i32
    %c0_i32_1 = arith.constant 0 : i32
    return %c0_i32, %c0_i32_0 : i32, i32
  }
  func.func @transform_3(%arg0: i32) -> (i32, i32) {
    %c0_i32 = arith.constant 0 : i32
    %c0_i32_0 = arith.constant 0 : i32
    %c0_i32_1 = arith.constant 0 : i32
    return %c0_i32, %c0_i32_0 : i32, i32
  }
  func.func @transform_4(%arg0: i32) -> (i32, i32) {
    %c0_i32 = arith.constant 0 : i32
    %c0_i32_0 = arith.constant 0 : i32
    %c0_i32_1 = arith.constant 0 : i32
    return %c0_i32, %c0_i32_0 : i32, i32
  }
  func.func @transform_5(%arg0: i32) -> (i32, i32) {
    %c0_i32 = arith.constant 0 : i32
    %c0_i32_0 = arith.constant 0 : i32
    %c0_i32_1 = arith.constant 0 : i32
    return %c0_i32, %c0_i32_0 : i32, i32
  }
  func.func @transform_6(%arg0: i32) -> (i32, i32) {
    %c0_i32 = arith.constant 0 : i32
    %c0_i32_0 = arith.constant 0 : i32
    %c0_i32_1 = arith.constant 0 : i32
    return %c0_i32, %c0_i32_0 : i32, i32
  }
  func.func @transform_7(%arg0: i32) -> (i32, i32) {
    %c0_i32 = arith.constant 0 : i32
    %c0_i32_0 = arith.constant 0 : i32
    %c0_i32_1 = arith.constant 0 : i32
    return %c0_i32, %c0_i32_0 : i32, i32
  }
  func.func @transform_8(%arg0: i32) -> (i32, i32) {
    %c0_i32 = arith.constant 0 : i32
    %c0_i32_0 = arith.constant 0 : i32
    return %arg0, %c0_i32 : i32, i32
  }
  func.func @transform_9(%arg0: i32) -> (i32, i32) {
    %c0_i32 = arith.constant 0 : i32
    %c0_i32_0 = arith.constant 0 : i32
    return %arg0, %c0_i32 : i32, i32
  }
}

</mosaic_0001>

<llo_original>
// kernel: rnn_sequence_classifier_forward.1
$region0: #{rnn_sequence_classifier_forward.1}
  #allocation0 [shape = 'u32[]', space=smem, size = 0x4, offset = 0x4, fixed_abs, tag = 'smem constant byte address 0x4 - core index']
  #allocation1 [shape = 'u32[144,128]{1,0:T(1,128)}', space=vmem, size = 0x12000, scoped, tag = 'internal scratch']
  #allocation2 [shape = 'bf16[128,512]{1,0:T(8,128)(2,1)}', space=vmem, size = 0x20000, scoped, tag = 'scratch operand']
  #allocation3 [shape = 'f32[8,16,128]{2,1,0:T(8,128)}', space=vmem, size = 0x10000, scoped, tag = 'scratch operand']
  #allocation4 [shape = 'f32[1,1]{1,0:T(1,128)S(1)}', space=vmem, size = 0x200, scoped, tag = 'scoped memory for rnn_sequence_classifier_forward.1']
  %s0 = inlined_call_operand.vmem [shape: bf16[8,16,32], index: 0, kind: input, shape index: {}]
  %s1 = inlined_call_operand.vmem [shape: bf16[32,512], index: 1, kind: input, shape index: {}]
  %s2 = inlined_call_operand.vmem [shape: bf16[128,512], index: 2, kind: input, shape index: {}]
  %s3 = inlined_call_operand.vmem [shape: f32[1,512], index: 3, kind: input, shape index: {}]
  %s4 = inlined_call_operand.vmem [shape: f32[1,128], index: 4, kind: input, shape index: {}]
  %s5 = inlined_call_operand.<no memory space> [shape: f32[1,1], index: 5, kind: input, shape index: {}]
  %s6 = inlined_call_operand.vmem [shape: f32[128,128], index: 6, kind: input, shape index: {}]
  %s7 = inlined_call_operand.vmem [shape: f32[1,128], index: 7, kind: input, shape index: {}]
  %s8 = inlined_call_operand.vmem [shape: f32[16,128], index: 8, kind: output, shape index: {0}]
  %s9 = inlined_call_operand.vmem [shape: f32[16,128], index: 9, kind: output, shape index: {1}]
  %10 = xla_tuple %s8, %s9
  %s11 = sld [smem:[#allocation0]]
  $region50: #{rnn_sequence_classifier_forward.1} parent=0
    _
  %s13 = ssub.s32 1, %s11
  %s14 = scalar_select 0, %s13, %s11
  %v15 = vstv %s5
  %16 = vst [vmem:[#allocation4] sm:$0x1] %v15
  // Predicated region
  $region2: #{rnn_sequence_classifier_forward.1} parent=0 // pred_check
    _
  $region3: #{rnn_sequence_classifier_forward.1} parent=0 // pred_check_branch
    %18 = sbr.rel (0) target = $region5
  $region4: #{rnn_sequence_classifier_forward.1} parent=0 // pred_region
    _
  $region5: #{rnn_sequence_classifier_forward.1} parent=0 // pred_fallthru
    _
  // Predicated region
  $region6: #{rnn_sequence_classifier_forward.1} parent=0 // pred_check
    _
  $region7: #{rnn_sequence_classifier_forward.1} parent=0 // pred_check_branch
    %20 = sbr.rel (0) target = $region9
  $region8: #{rnn_sequence_classifier_forward.1} parent=0 // pred_region
    _
  $region9: #{rnn_sequence_classifier_forward.1} parent=0 // pred_fallthru
    _
  // Predicated region
  $region10: #{rnn_sequence_classifier_forward.1} parent=0 // pred_check
    _
  $region11: #{rnn_sequence_classifier_forward.1} parent=0 // pred_check_branch
    %22 = sbr.rel (0) target = $region13
  $region12: #{rnn_sequence_classifier_forward.1} parent=0 // pred_region
    _
  $region13: #{rnn_sequence_classifier_forward.1} parent=0 // pred_fallthru
    _
  // Predicated region
  $region14: #{rnn_sequence_classifier_forward.1} parent=0 // pred_check
    _
  $region15: #{rnn_sequence_classifier_forward.1} parent=0 // pred_check_branch
    %24 = sbr.rel (0) target = $region17
  $region16: #{rnn_sequence_classifier_forward.1} parent=0 // pred_region
    _
  $region17: #{rnn_sequence_classifier_forward.1} parent=0 // pred_fallthru
    _
  // Predicated region
  $region18: #{rnn_sequence_classifier_forward.1} parent=0 // pred_check
    _
  $region19: #{rnn_sequence_classifier_forward.1} parent=0 // pred_check_branch
    %26 = sbr.rel (0) target = $region21
  $region20: #{rnn_sequence_classifier_forward.1} parent=0 // pred_region
    _
  $region21: #{rnn_sequence_classifier_forward.1} parent=0 // pred_fallthru
    _
  // Predicated region
  $region22: #{rnn_sequence_classifier_forward.1} parent=0 // pred_check
    _
  $region23: #{rnn_sequence_classifier_forward.1} parent=0 // pred_check_branch
    %28 = sbr.rel (0) target = $region25
  $region24: #{rnn_sequence_classifier_forward.1} parent=0 // pred_region
    _
  $region25: #{rnn_sequence_classifier_forward.1} parent=0 // pred_fallthru
    _
  // Predicated region
  $region26: #{rnn_sequence_classifier_forward.1} parent=0 // pred_check
    _
  $region27: #{rnn_sequence_classifier_forward.1} parent=0 // pred_check_branch
    %30 = sbr.rel (0) target = $region29
  $region28: #{rnn_sequence_classifier_forward.1} parent=0 // pred_region
    _
  $region29: #{rnn_sequence_classifier_forward.1} parent=0 // pred_fallthru
    _
  // Predicated region
  $region30: #{rnn_sequence_classifier_forward.1} parent=0 // pred_check
    _
  $region31: #{rnn_sequence_classifier_forward.1} parent=0 // pred_check_branch
    %32 = sbr.rel (0) target = $region33
  $region32: #{rnn_sequence_classifier_forward.1} parent=0 // pred_region
    _
  $region33: #{rnn_sequence_classifier_forward.1} parent=0 // pred_fallthru
    _
  %v34 = vld [vmem:[%s0] sm:$0xf]
  %v35 = vld [vmem:[%s0 + $0x4] sm:$0xf]
  %v36 = vld [vmem:[%s0 + $0x8] sm:$0xf]
  %v37 = vld [vmem:[%s0 + $0xc] sm:$0xf]
  %v38 = vld [vmem:[%s0 + $0x10] sm:$0xf]
  %v39 = vld [vmem:[%s0 + $0x14] sm:$0xf]
  %v40 = vld [vmem:[%s0 + $0x18] sm:$0xf]
  %v41 = vld [vmem:[%s0 + $0x1c] sm:$0xf]
  %v42 = vld [vmem:[%s0 + $0x20] sm:$0xf]
  %v43 = vld [vmem:[%s0 + $0x24] sm:$0xf]
  %v44 = vld [vmem:[%s0 + $0x28] sm:$0xf]
  %v45 = vld [vmem:[%s0 + $0x2c] sm:$0xf]
  %v46 = vld [vmem:[%s0 + $0x30] sm:$0xf]
  %v47 = vld [vmem:[%s0 + $0x34] sm:$0xf]
  %v48 = vld [vmem:[%s0 + $0x38] sm:$0xf]
  %v49 = vld [vmem:[%s0 + $0x3c] sm:$0xf]
  %v50 = vld [vmem:[%s1] sm:$0xff]
  %v51 = vld [vmem:[%s1 + $0x8] sm:$0xff]
  %v52 = vld [vmem:[%s1 + $0x10] sm:$0xff]
  %v53 = vld [vmem:[%s1 + $0x18] sm:$0xff]
  %v54 = vld [vmem:[%s1 + $0x20] sm:$0xff]
  %v55 = vld [vmem:[%s1 + $0x28] sm:$0xff]
  %v56 = vld [vmem:[%s1 + $0x30] sm:$0xff]
  %v57 = vld [vmem:[%s1 + $0x38] sm:$0xff]
  %v74 = vunpack.c.l.b16 %v34
  %v75 = vunpack.c.l.b16 %v35
  %v76 = vunpack.c.l.b16 %v36
  %v77 = vunpack.c.l.b16 %v37
  %v78 = vunpack.c.l.b16 %v38
  %v79 = vunpack.c.l.b16 %v39
  %v80 = vunpack.c.l.b16 %v40
  %v81 = vunpack.c.l.b16 %v41
  %v82 = vunpack.c.l.b16 %v42
  %v83 = vunpack.c.l.b16 %v43
  %v84 = vunpack.c.l.b16 %v44
  %v85 = vunpack.c.l.b16 %v45
  %v86 = vunpack.c.l.b16 %v46
  %v87 = vunpack.c.l.b16 %v47
  %v88 = vunpack.c.l.b16 %v48
  %v89 = vunpack.c.l.b16 %v49
  %v90 = vpack.c.b16 %v75, %v74
  %v91 = vpack.c.b16 %v77, %v76
  %v92 = vpack.c.b16 %v79, %v78
  %v93 = vpack.c.b16 %v81, %v80
  %v94 = vpack.c.b16 %v83, %v82
  %v95 = vpack.c.b16 %v85, %v84
  %v96 = vpack.c.b16 %v87, %v86
  %v97 = vpack.c.b16 %v89, %v88
  %v106 = vunpack.c.l.b16 %v50
  %v107 = vunpack.c.h.b16 %v50
  %v108 = vunpack.c.l.b16 %v51
  %v109 = vunpack.c.h.b16 %v51
  %v110 = vunpack.c.l.b16 %v52
  %v111 = vunpack.c.h.b16 %v52
  %v112 = vunpack.c.l.b16 %v53
  %v113 = vunpack.c.h.b16 %v53
  %v114 = vunpack.c.l.b16 %v54
  %v115 = vunpack.c.h.b16 %v54
  %v116 = vunpack.c.l.b16 %v55
  %v117 = vunpack.c.h.b16 %v55
  %v118 = vunpack.c.l.b16 %v56
  %v119 = vunpack.c.h.b16 %v56
  %v120 = vunpack.c.l.b16 %v57
  %v121 = vunpack.c.h.b16 %v57
  %v122 = vpack.c.b16 %v110, %v106
  %v123 = vpack.c.b16 %v111, %v107
  %v124 = vpack.c.b16 %v112, %v108
  %v125 = vpack.c.b16 %v113, %v109
  %v126 = vpack.c.b16 %v118, %v114
  %v127 = vpack.c.b16 %v119, %v115
  %v128 = vpack.c.b16 %v120, %v116
  %v129 = vpack.c.b16 %v121, %v117
  %vm138 = vcmask 261120
  %v140 = vsel %vm138, %v90, 0
  %v143 = vsel %vm138, %v91, 0
  %v146 = vsel %vm138, %v92, 0
  %v149 = vsel %vm138, %v93, 0
  %v152 = vsel %vm138, %v94, 0
  %v155 = vsel %vm138, %v95, 0
  %v158 = vsel %vm138, %v96, 0
  %v161 = vsel %vm138, %v97, 0
  %163 = vmatprep.subr.bf16.mxu0 0
  %164 = vmatpush1.bf16.msra.mxu0 0
  %165 = vmatprep.subr.bf16.mxu0 0
  %166 = vmatpush1.bf16.msra.mxu0 0
  %167 = vmatprep.subr.bf16.mxu0 0
  %168 = vmatpush1.bf16.msra.mxu0 0
  %169 = vmatprep.subr.bf16.mxu0 0
  %170 = vmatpush1.bf16.msra.mxu0 0
  %171 = vmatprep.subr.bf16.mxu0 0
  %172 = vmatpush1.bf16.msra.mxu0 0
  %173 = vmatprep.subr.bf16.mxu0 0
  %174 = vmatpush1.bf16.msra.mxu0 0
  %175 = vmatprep.subr.bf16.mxu0 %v127
  %176 = vmatpush1.bf16.msra.mxu0 %v126
  %177 = vmatprep.subr.bf16.mxu0 %v123
  %178 = vmatpush1.bf16.msra.mxu0 %v122
  %179 = vmatprep.subr.bf16.mxu0 0
  %180 = vmatpush2.bf16.msra.mxu0 0
  %181 = vmatprep.subr.bf16.mxu0 0
  %182 = vmatpush2.bf16.msra.mxu0 0
  %183 = vmatprep.subr.bf16.mxu0 0
  %184 = vmatpush2.bf16.msra.mxu0 0
  %185 = vmatprep.subr.bf16.mxu0 0
  %186 = vmatpush2.bf16.msra.mxu0 0
  %187 = vmatprep.subr.bf16.mxu0 0
  %188 = vmatpush2.bf16.msra.mxu0 0
  %189 = vmatprep.subr.bf16.mxu0 0
  %190 = vmatpush2.bf16.msra.mxu0 0
  %191 = vmatprep.subr.bf16.mxu0 0
  %192 = vmatpush2.bf16.msra.mxu0 0
  %193 = vmatprep.subr.bf16.mxu0 0
  %194 = vmatpush2.bf16.msra.mxu0 0
  %195 = vmatprep.mubr.bf16.mxu0 0
  %196 = vmatmul.mubr.bf16.gmra.mxu0 %v140
  %v197 = vpop.f32.mrf.mxu0
  %v198 = vadd.f32 0.0, %v197
  %v199 = vpop.f32.mrf.mxu0
  %v200 = vadd.f32 0.0, %v199
  %v201 = vpop.f32.mrf.mxu0
  %v202 = vadd.f32 0.0, %v201
  %v203 = vpop.f32.mrf.mxu0
  %v204 = vadd.f32 0.0, %v203
  %205 = vmatprep.mubr.bf16.mxu0 0
  %206 = vmatmul.mubr.bf16.gmra.mxu0 %v143
  %v207 = vpop.f32.mrf.mxu0
  %v208 = vadd.f32 0.0, %v207
  %v209 = vpop.f32.mrf.mxu0
  %v210 = vadd.f32 0.0, %v209
  %v211 = vpop.f32.mrf.mxu0
  %v212 = vadd.f32 0.0, %v211
  %v213 = vpop.f32.mrf.mxu0
  %v214 = vadd.f32 0.0, %v213
  %215 = vmatprep.mubr.bf16.mxu0 0
  %216 = vmatmul.mubr.bf16.gmra.mxu0 %v146
  %v217 = vpop.f32.mrf.mxu0
  %v218 = vadd.f32 0.0, %v217
  %v219 = vpop.f32.mrf.mxu0
  %v220 = vadd.f32 0.0, %v219
  %v221 = vpop.f32.mrf.mxu0
  %v222 = vadd.f32 0.0, %v221
  %v223 = vpop.f32.mrf.mxu0
  %v224 = vadd.f32 0.0, %v223
  %225 = vmatprep.mubr.bf16.mxu0 0
  %226 = vmatmul.mubr.bf16.gmra.mxu0 %v149
  %v227 = vpop.f32.mrf.mxu0
  %v228 = vadd.f32 0.0, %v227
  %v229 = vpop.f32.mrf.mxu0
  %v230 = vadd.f32 0.0, %v229
  %v231 = vpop.f32.mrf.mxu0
  %v232 = vadd.f32 0.0, %v231
  %v233 = vpop.f32.mrf.mxu0
  %v234 = vadd.f32 0.0, %v233
  %235 = vmatprep.mubr.bf16.mxu0 0
  %236 = vmatmul.mubr.bf16.gmra.mxu0 %v152
  %v237 = vpop.f32.mrf.mxu0
  %v238 = vadd.f32 0.0, %v237
  %v239 = vpop.f32.mrf.mxu0
  %v240 = vadd.f32 0.0, %v239
  %v241 = vpop.f32.mrf.mxu0
  %v242 = vadd.f32 0.0, %v241
  %v243 = vpop.f32.mrf.mxu0
  %v244 = vadd.f32 0.0, %v243
  %245 = vmatprep.mubr.bf16.mxu0 0
  %246 = vmatmul.mubr.bf16.gmra.mxu0 %v155
  %v247 = vpop.f32.mrf.mxu0
  %v248 = vadd.f32 0.0, %v247
  %v249 = vpop.f32.mrf.mxu0
  %v250 = vadd.f32 0.0, %v249
  %v251 = vpop.f32.mrf.mxu0
  %v252 = vadd.f32 0.0, %v251
  %v253 = vpop.f32.mrf.mxu0
  %v254 = vadd.f32 0.0, %v253
  %255 = vmatprep.mubr.bf16.mxu0 0
  %256 = vmatmul.mubr.bf16.gmra.mxu0 %v158
  %v257 = vpop.f32.mrf.mxu0
  %v258 = vadd.f32 0.0, %v257
  %v259 = vpop.f32.mrf.mxu0
  %v260 = vadd.f32 0.0, %v259
  %v261 = vpop.f32.mrf.mxu0
  %v262 = vadd.f32 0.0, %v261
  %v263 = vpop.f32.mrf.mxu0
  %v264 = vadd.f32 0.0, %v263
  %265 = vmatprep.mubr.bf16.mxu0 0
  %266 = vmatmul.mubr.bf16.gmra.mxu0 %v161
  %v267 = vpop.f32.mrf.mxu0
  %v268 = vadd.f32 0.0, %v267
  %v269 = vpop.f32.mrf.mxu0
  %v270 = vadd.f32 0.0, %v269
  %v271 = vpop.f32.mrf.mxu0
  %v272 = vadd.f32 0.0, %v271
  %v273 = vpop.f32.mrf.mxu0
  %v274 = vadd.f32 0.0, %v273
  %275 = vdwg.mxu0
  %276 = vmatprep.subr.bf16.mxu0 0
  %277 = vmatpush1.bf16.msra.mxu0 0
  %278 = vmatprep.subr.bf16.mxu0 0
  %279 = vmatpush1.bf16.msra.mxu0 0
  %280 = vmatprep.subr.bf16.mxu0 0
  %281 = vmatpush1.bf16.msra.mxu0 0
  %282 = vmatprep.subr.bf16.mxu0 0
  %283 = vmatpush1.bf16.msra.mxu0 0
  %284 = vmatprep.subr.bf16.mxu0 0
  %285 = vmatpush1.bf16.msra.mxu0 0
  %286 = vmatprep.subr.bf16.mxu0 0
  %287 = vmatpush1.bf16.msra.mxu0 0
  %288 = vmatprep.subr.bf16.mxu0 %v129
  %289 = vmatpush1.bf16.msra.mxu0 %v128
  %290 = vmatprep.subr.bf16.mxu0 %v125
  %291 = vmatpush1.bf16.msra.mxu0 %v124
  %292 = vmatprep.subr.bf16.mxu0 0
  %293 = vmatpush2.bf16.msra.mxu0 0
  %294 = vmatprep.subr.bf16.mxu0 0
  %295 = vmatpush2.bf16.msra.mxu0 0
  %296 = vmatprep.subr.bf16.mxu0 0
  %297 = vmatpush2.bf16.msra.mxu0 0
  %298 = vmatprep.subr.bf16.mxu0 0
  %299 = vmatpush2.bf16.msra.mxu0 0
  %300 = vmatprep.subr.bf16.mxu0 0
  %301 = vmatpush2.bf16.msra.mxu0 0
  %302 = vmatprep.subr.bf16.mxu0 0
  %303 = vmatpush2.bf16.msra.mxu0 0
  %304 = vmatprep.subr.bf16.mxu0 0
  %305 = vmatpush2.bf16.msra.mxu0 0
  %306 = vmatprep.subr.bf16.mxu0 0
  %307 = vmatpush2.bf16.msra.mxu0 0
  %308 = vmatprep.mubr.bf16.mxu0 0
  %309 = vmatmul.mubr.bf16.gmra.mxu0 %v140
  %v310 = vpop.f32.mrf.mxu0
  %v311 = vadd.f32 0.0, %v310
  %v312 = vpop.f32.mrf.mxu0
  %v313 = vadd.f32 0.0, %v312
  %v314 = vpop.f32.mrf.mxu0
  %v315 = vadd.f32 0.0, %v314
  %v316 = vpop.f32.mrf.mxu0
  %v317 = vadd.f32 0.0, %v316
  %318 = vmatprep.mubr.bf16.mxu0 0
  %319 = vmatmul.mubr.bf16.gmra.mxu0 %v143
  %v320 = vpop.f32.mrf.mxu0
  %v321 = vadd.f32 0.0, %v320
  %v322 = vpop.f32.mrf.mxu0
  %v323 = vadd.f32 0.0, %v322
  %v324 = vpop.f32.mrf.mxu0
  %v325 = vadd.f32 0.0, %v324
  %v326 = vpop.f32.mrf.mxu0
  %v327 = vadd.f32 0.0, %v326
  %328 = vmatprep.mubr.bf16.mxu0 0
  %329 = vmatmul.mubr.bf16.gmra.mxu0 %v146
  %v330 = vpop.f32.mrf.mxu0
  %v331 = vadd.f32 0.0, %v330
  %v332 = vpop.f32.mrf.mxu0
  %v333 = vadd.f32 0.0, %v332
  %v334 = vpop.f32.mrf.mxu0
  %v335 = vadd.f32 0.0, %v334
  %v336 = vpop.f32.mrf.mxu0
  %v337 = vadd.f32 0.0, %v336
  %338 = vmatprep.mubr.bf16.mxu0 0
  %339 = vmatmul.mubr.bf16.gmra.mxu0 %v149
  %v340 = vpop.f32.mrf.mxu0
  %v341 = vadd.f32 0.0, %v340
  %v342 = vpop.f32.mrf.mxu0
  %v343 = vadd.f32 0.0, %v342
  %v344 = vpop.f32.mrf.mxu0
  %v345 = vadd.f32 0.0, %v344
  %v346 = vpop.f32.mrf.mxu0
  %v347 = vadd.f32 0.0, %v346
  %348 = vmatprep.mubr.bf16.mxu0 0
  %349 = vmatmul.mubr.bf16.gmra.mxu0 %v152
  %v350 = vpop.f32.mrf.mxu0
  %v351 = vadd.f32 0.0, %v350
  %v352 = vpop.f32.mrf.mxu0
  %v353 = vadd.f32 0.0, %v352
  %v354 = vpop.f32.mrf.mxu0
  %v355 = vadd.f32 0.0, %v354
  %v356 = vpop.f32.mrf.mxu0
  %v357 = vadd.f32 0.0, %v356
  %358 = vmatprep.mubr.bf16.mxu0 0
  %359 = vmatmul.mubr.bf16.gmra.mxu0 %v155
  %v360 = vpop.f32.mrf.mxu0
  %v361 = vadd.f32 0.0, %v360
  %v362 = vpop.f32.mrf.mxu0
  %v363 = vadd.f32 0.0, %v362
  %v364 = vpop.f32.mrf.mxu0
  %v365 = vadd.f32 0.0, %v364
  %v366 = vpop.f32.mrf.mxu0
  %v367 = vadd.f32 0.0, %v366
  %368 = vmatprep.mubr.bf16.mxu0 0
  %369 = vmatmul.mubr.bf16.gmra.mxu0 %v158
  %v370 = vpop.f32.mrf.mxu0
  %v371 = vadd.f32 0.0, %v370
  %v372 = vpop.f32.mrf.mxu0
  %v373 = vadd.f32 0.0, %v372
  %v374 = vpop.f32.mrf.mxu0
  %v375 = vadd.f32 0.0, %v374
  %v376 = vpop.f32.mrf.mxu0
  %v377 = vadd.f32 0.0, %v376
  %378 = vmatprep.mubr.bf16.mxu0 0
  %379 = vmatmul.mubr.bf16.gmra.mxu0 %v161
  %v380 = vpop.f32.mrf.mxu0
  %v381 = vadd.f32 0.0, %v380
  %v382 = vpop.f32.mrf.mxu0
  %v383 = vadd.f32 0.0, %v382
  %v384 = vpop.f32.mrf.mxu0
  %v385 = vadd.f32 0.0, %v384
  %v386 = vpop.f32.mrf.mxu0
  %v387 = vadd.f32 0.0, %v386
  %388 = vdwg.mxu0
  %v389 = vpack.c.bf16 %v202, %v198
  %v390 = vpack.c.bf16 %v204, %v200
  %v391 = vpack.c.bf16 %v315, %v311
  %v392 = vpack.c.bf16 %v317, %v313
  %v393 = vpack.c.bf16 %v212, %v208
  %v394 = vpack.c.bf16 %v214, %v210
  %v395 = vpack.c.bf16 %v325, %v321
  %v396 = vpack.c.bf16 %v327, %v323
  %v397 = vpack.c.bf16 %v222, %v218
  %v398 = vpack.c.bf16 %v224, %v220
  %v399 = vpack.c.bf16 %v335, %v331
  %v400 = vpack.c.bf16 %v337, %v333
  %v401 = vpack.c.bf16 %v232, %v228
  %v402 = vpack.c.bf16 %v234, %v230
  %v403 = vpack.c.bf16 %v345, %v341
  %v404 = vpack.c.bf16 %v347, %v343
  %v405 = vpack.c.bf16 %v242, %v238
  %v406 = vpack.c.bf16 %v244, %v240
  %v407 = vpack.c.bf16 %v355, %v351
  %v408 = vpack.c.bf16 %v357, %v353
  %v409 = vpack.c.bf16 %v252, %v248
  %v410 = vpack.c.bf16 %v254, %v250
  %v411 = vpack.c.bf16 %v365, %v361
  %v412 = vpack.c.bf16 %v367, %v363
  %v413 = vpack.c.bf16 %v262, %v258
  %v414 = vpack.c.bf16 %v264, %v260
  %v415 = vpack.c.bf16 %v375, %v371
  %v416 = vpack.c.bf16 %v377, %v373
  %v417 = vpack.c.bf16 %v272, %v268
  %v418 = vpack.c.bf16 %v274, %v270
  %v419 = vpack.c.bf16 %v385, %v381
  %v420 = vpack.c.bf16 %v387, %v383
  %v453 = vunpack.c.l.b16 %v389
  %v454 = vunpack.c.l.b16 %v390
  %v455 = vunpack.c.l.b16 %v391
  %v456 = vunpack.c.l.b16 %v392
  %v457 = vunpack.c.h.b16 %v389
  %v458 = vunpack.c.h.b16 %v390
  %v459 = vunpack.c.h.b16 %v391
  %v460 = vunpack.c.h.b16 %v392
  %v461 = vunpack.c.l.b16 %v393
  %v462 = vunpack.c.l.b16 %v394
  %v463 = vunpack.c.l.b16 %v395
  %v464 = vunpack.c.l.b16 %v396
  %v465 = vunpack.c.h.b16 %v393
  %v466 = vunpack.c.h.b16 %v394
  %v467 = vunpack.c.h.b16 %v395
  %v468 = vunpack.c.h.b16 %v396
  %v469 = vunpack.c.l.b16 %v397
  %v470 = vunpack.c.l.b16 %v398
  %v471 = vunpack.c.l.b16 %v399
  %v472 = vunpack.c.l.b16 %v400
  %v473 = vunpack.c.h.b16 %v397
  %v474 = vunpack.c.h.b16 %v398
  %v475 = vunpack.c.h.b16 %v399
  %v476 = vunpack.c.h.b16 %v400
  %v477 = vunpack.c.l.b16 %v401
  %v478 = vunpack.c.l.b16 %v402
  %v479 = vunpack.c.l.b16 %v403
  %v480 = vunpack.c.l.b16 %v404
  %v481 = vunpack.c.h.b16 %v401
  %v482 = vunpack.c.h.b16 %v402
  %v483 = vunpack.c.h.b16 %v403
  %v484 = vunpack.c.h.b16 %v404
  %v485 = vunpack.c.l.b16 %v405
  %v486 = vunpack.c.l.b16 %v406
  %v487 = vunpack.c.l.b16 %v407
  %v488 = vunpack.c.l.b16 %v408
  %v489 = vunpack.c.h.b16 %v405
  %v490 = vunpack.c.h.b16 %v406
  %v491 = vunpack.c.h.b16 %v407
  %v492 = vunpack.c.h.b16 %v408
  %v493 = vunpack.c.l.b16 %v409
  %v494 = vunpack.c.l.b16 %v410
  %v495 = vunpack.c.l.b16 %v411
  %v496 = vunpack.c.l.b16 %v412
  %v497 = vunpack.c.h.b16 %v409
  %v498 = vunpack.c.h.b16 %v410
  %v499 = vunpack.c.h.b16 %v411
  %v500 = vunpack.c.h.b16 %v412
  %v501 = vunpack.c.l.b16 %v413
  %v502 = vunpack.c.l.b16 %v414
  %v503 = vunpack.c.l.b16 %v415
  %v504 = vunpack.c.l.b16 %v416
  %v505 = vunpack.c.h.b16 %v413
  %v506 = vunpack.c.h.b16 %v414
  %v507 = vunpack.c.h.b16 %v415
  %v508 = vunpack.c.h.b16 %v416
  %v509 = vunpack.c.l.b16 %v417
  %v510 = vunpack.c.l.b16 %v418
  %v511 = vunpack.c.l.b16 %v419
  %v512 = vunpack.c.l.b16 %v420
  %v513 = vunpack.c.h.b16 %v417
  %v514 = vunpack.c.h.b16 %v418
  %v515 = vunpack.c.h.b16 %v419
  %v516 = vunpack.c.h.b16 %v420
  %v517 = vpack.c.b16 %v454, %v453
  %v518 = vpack.c.b16 %v456, %v455
  %v519 = vpack.c.b16 %v458, %v457
  %v520 = vpack.c.b16 %v460, %v459
  %v521 = vpack.c.b16 %v462, %v461
  %v522 = vpack.c.b16 %v464, %v463
  %v523 = vpack.c.b16 %v466, %v465
  %v524 = vpack.c.b16 %v468, %v467
  %v525 = vpack.c.b16 %v470, %v469
  %v526 = vpack.c.b16 %v472, %v471
  %v527 = vpack.c.b16 %v474, %v473
  %v528 = vpack.c.b16 %v476, %v475
  %v529 = vpack.c.b16 %v478, %v477
  %v530 = vpack.c.b16 %v480, %v479
  %v531 = vpack.c.b16 %v482, %v481
  %v532 = vpack.c.b16 %v484, %v483
  %v533 = vpack.c.b16 %v486, %v485
  %v534 = vpack.c.b16 %v488, %v487
  %v535 = vpack.c.b16 %v490, %v489
  %v536 = vpack.c.b16 %v492, %v491
  %v537 = vpack.c.b16 %v494, %v493
  %v538 = vpack.c.b16 %v496, %v495
  %v539 = vpack.c.b16 %v498, %v497
  %v540 = vpack.c.b16 %v500, %v499
  %v541 = vpack.c.b16 %v502, %v501
  %v542 = vpack.c.b16 %v504, %v503
  %v543 = vpack.c.b16 %v506, %v505
  %v544 = vpack.c.b16 %v508, %v507
  %v545 = vpack.c.b16 %v510, %v509
  %v546 = vpack.c.b16 %v512, %v511
  %v547 = vpack.c.b16 %v514, %v513
  %v548 = vpack.c.b16 %v516, %v515
  %581 = vst [vmem:[#allocation2] sm:$0xff] %v517
  %582 = vst [vmem:[#allocation2 + $0x8] sm:$0xff] %v518
  %583 = vst [vmem:[#allocation2 + $0x10] sm:$0xff] %v519
  %584 = vst [vmem:[#allocation2 + $0x18] sm:$0xff] %v520
  %585 = vst [vmem:[#allocation2 + $0x20] sm:$0xff] %v521
  %586 = vst [vmem:[#allocation2 + $0x28] sm:$0xff] %v522
  %587 = vst [vmem:[#allocation2 + $0x30] sm:$0xff] %v523
  %588 = vst [vmem:[#allocation2 + $0x38] sm:$0xff] %v524
  %589 = vst [vmem:[#allocation2 + $0x40] sm:$0xff] %v525
  %590 = vst [vmem:[#allocation2 + $0x48] sm:$0xff] %v526
  %591 = vst [vmem:[#allocation2 + $0x50] sm:$0xff] %v527
  %592 = vst [vmem:[#allocation2 + $0x58] sm:$0xff] %v528
  %593 = vst [vmem:[#allocation2 + $0x60] sm:$0xff] %v529
  %594 = vst [vmem:[#allocation2 + $0x68] sm:$0xff] %v530
  %595 = vst [vmem:[#allocation2 + $0x70] sm:$0xff] %v531
  %596 = vst [vmem:[#allocation2 + $0x78] sm:$0xff] %v532
  %597 = vst [vmem:[#allocation2 + $0x80] sm:$0xff] %v533
  %598 = vst [vmem:[#allocation2 + $0x88] sm:$0xff] %v534
  %599 = vst [vmem:[#allocation2 + $0x90] sm:$0xff] %v535
  %600 = vst [vmem:[#allocation2 + $0x98] sm:$0xff] %v536
  %601 = vst [vmem:[#allocation2 + $0xa0] sm:$0xff] %v537
  %602 = vst [vmem:[#allocation2 + $0xa8] sm:$0xff] %v538
  %603 = vst [vmem:[#allocation2 + $0xb0] sm:$0xff] %v539
  %604 = vst [vmem:[#allocation2 + $0xb8] sm:$0xff] %v540
  %605 = vst [vmem:[#allocation2 + $0xc0] sm:$0xff] %v541
  %606 = vst [vmem:[#allocation2 + $0xc8] sm:$0xff] %v542
  %607 = vst [vmem:[#allocation2 + $0xd0] sm:$0xff] %v543
  %608 = vst [vmem:[#allocation2 + $0xd8] sm:$0xff] %v544
  %609 = vst [vmem:[#allocation2 + $0xe0] sm:$0xff] %v545
  %610 = vst [vmem:[#allocation2 + $0xe8] sm:$0xff] %v546
  %611 = vst [vmem:[#allocation2 + $0xf0] sm:$0xff] %v547
  %612 = vst [vmem:[#allocation2 + $0xf8] sm:$0xff] %v548
  %v613 = vld [vmem:[%s3] sm:$0xf]
  %v614 = vld [vmem:[%s2] sm:$0xff]
  %v615 = vld [vmem:[%s2 + $0x8] sm:$0xff]
  %v616 = vld [vmem:[%s2 + $0x10] sm:$0xff]
  %v617 = vld [vmem:[%s2 + $0x18] sm:$0xff]
  %v618 = vld [vmem:[%s2 + $0x20] sm:$0xff]
  %v619 = vld [vmem:[%s2 + $0x28] sm:$0xff]
  %v620 = vld [vmem:[%s2 + $0x30] sm:$0xff]
  %v621 = vld [vmem:[%s2 + $0x38] sm:$0xff]
  %v622 = vld [vmem:[%s2 + $0x40] sm:$0xff]
  %v623 = vld [vmem:[%s2 + $0x48] sm:$0xff]
  %v624 = vld [vmem:[%s2 + $0x50] sm:$0xff]
  %v625 = vld [vmem:[%s2 + $0x58] sm:$0xff]
  %v626 = vld [vmem:[%s2 + $0x60] sm:$0xff]
  %v627 = vld [vmem:[%s2 + $0x68] sm:$0xff]
  %v628 = vld [vmem:[%s2 + $0x70] sm:$0xff]
  %v629 = vld [vmem:[%s2 + $0x78] sm:$0xff]
  %v630 = vld [vmem:[%s2 + $0x80] sm:$0xff]
  %v631 = vld [vmem:[%s2 + $0x88] sm:$0xff]
  %v632 = vld [vmem:[%s2 + $0x90] sm:$0xff]
  %v633 = vld [vmem:[%s2 + $0x98] sm:$0xff]
  %v634 = vld [vmem:[%s2 + $0xa0] sm:$0xff]
  %v635 = vld [vmem:[%s2 + $0xa8] sm:$0xff]
  %v636 = vld [vmem:[%s2 + $0xb0] sm:$0xff]
  %v637 = vld [vmem:[%s2 + $0xb8] sm:$0xff]
  %v638 = vld [vmem:[%s2 + $0xc0] sm:$0xff]
  %v639 = vld [vmem:[%s2 + $0xc8] sm:$0xff]
  %v640 = vld [vmem:[%s2 + $0xd0] sm:$0xff]
  %v641 = vld [vmem:[%s2 + $0xd8] sm:$0xff]
  %v642 = vld [vmem:[%s2 + $0xe0] sm:$0xff]
  %v643 = vld [vmem:[%s2 + $0xe8] sm:$0xff]
  %v644 = vld [vmem:[%s2 + $0xf0] sm:$0xff]
  %v645 = vld [vmem:[%s2 + $0xf8] sm:$0xff]
  %s646 = smul.u32 0, 4
  %s647 = smul.addr %s646, 4
  %s648 = scalar_lea.vmem [#allocation2], %s647
  %v649 = vld [vmem:[%s648] sm:$0xff]
  %v650 = vld [vmem:[%s648 + $0x8] sm:$0xff]
  %v651 = vld [vmem:[%s648 + $0x10] sm:$0xff]
  %v652 = vld [vmem:[%s648 + $0x18] sm:$0xff]
  %v653 = vunpack.c.l.bf16 %v649
  %v654 = vunpack.c.h.bf16 %v649
  %v655 = vunpack.c.l.bf16 %v650
  %v656 = vunpack.c.h.bf16 %v650
  %v657 = vunpack.c.l.bf16 %v651
  %v658 = vunpack.c.h.bf16 %v651
  %v659 = vunpack.c.l.bf16 %v652
  %v660 = vunpack.c.h.bf16 %v652
  %v662 = vlaneseq
  %v663 = vshrl.u32 %v662, 7
  %v664 = vsub.s32 0, %v663
  %v665 = vrot.slane %v613, %v664
  %v666 = vlaneseq
  %v667 = vshrl.u32 %v666, 7
  %v668 = vsub.s32 1, %v667
  %v669 = vrot.slane %v613, %v668
  %v670 = vlaneseq
  %v671 = vshrl.u32 %v670, 7
  %v672 = vsub.s32 2, %v671
  %v673 = vrot.slane %v613, %v672
  %v674 = vlaneseq
  %v675 = vshrl.u32 %v674, 7
  %v676 = vsub.s32 3, %v675
  %v677 = vrot.slane %v613, %v676
  %v682 = vadd.f32 %v653, %v665
  %v683 = vadd.f32 %v654, %v669
  %v684 = vadd.f32 %v655, %v673
  %v685 = vadd.f32 %v656, %v677
  %v686 = vadd.f32 %v657, %v665
  %v687 = vadd.f32 %v658, %v669
  %v688 = vadd.f32 %v659, %v673
  %v689 = vadd.f32 %v660, %v677
  %v722 = vunpack.c.l.b16 %v614
  %v723 = vunpack.c.h.b16 %v614
  %v724 = vunpack.c.l.b16 %v615
  %v725 = vunpack.c.h.b16 %v615
  %v726 = vunpack.c.l.b16 %v616
  %v727 = vunpack.c.h.b16 %v616
  %v728 = vunpack.c.l.b16 %v617
  %v729 = vunpack.c.h.b16 %v617
  %v730 = vunpack.c.l.b16 %v618
  %v731 = vunpack.c.h.b16 %v618
  %v732 = vunpack.c.l.b16 %v619
  %v733 = vunpack.c.h.b16 %v619
  %v734 = vunpack.c.l.b16 %v620
  %v735 = vunpack.c.h.b16 %v620
  %v736 = vunpack.c.l.b16 %v621
  %v737 = vunpack.c.h.b16 %v621
  %v738 = vunpack.c.l.b16 %v622
  %v739 = vunpack.c.h.b16 %v622
  %v740 = vunpack.c.l.b16 %v623
  %v741 = vunpack.c.h.b16 %v623
  %v742 = vunpack.c.l.b16 %v624
  %v743 = vunpack.c.h.b16 %v624
  %v744 = vunpack.c.l.b16 %v625
  %v745 = vunpack.c.h.b16 %v625
  %v746 = vunpack.c.l.b16 %v626
  %v747 = vunpack.c.h.b16 %v626
  %v748 = vunpack.c.l.b16 %v627
  %v749 = vunpack.c.h.b16 %v627
  %v750 = vunpack.c.l.b16 %v628
  %v751 = vunpack.c.h.b16 %v628
  %v752 = vunpack.c.l.b16 %v629
  %v753 = vunpack.c.h.b16 %v629
  %v754 = vunpack.c.l.b16 %v630
  %v755 = vunpack.c.h.b16 %v630
  %v756 = vunpack.c.l.b16 %v631
  %v757 = vunpack.c.h.b16 %v631
  %v758 = vunpack.c.l.b16 %v632
  %v759 = vunpack.c.h.b16 %v632
  %v760 = vunpack.c.l.b16 %v633
  %v761 = vunpack.c.h.b16 %v633
  %v762 = vunpack.c.l.b16 %v634
  %v763 = vunpack.c.h.b16 %v634
  %v764 = vunpack.c.l.b16 %v635
  %v765 = vunpack.c.h.b16 %v635
  %v766 = vunpack.c.l.b16 %v636
  %v767 = vunpack.c.h.b16 %v636
  %v768 = vunpack.c.l.b16 %v637
  %v769 = vunpack.c.h.b16 %v637
  %v770 = vunpack.c.l.b16 %v638
  %v771 = vunpack.c.h.b16 %v638
  %v772 = vunpack.c.l.b16 %v639
  %v773 = vunpack.c.h.b16 %v639
  %v774 = vunpack.c.l.b16 %v640
  %v775 = vunpack.c.h.b16 %v640
  %v776 = vunpack.c.l.b16 %v641
  %v777 = vunpack.c.h.b16 %v641
  %v778 = vunpack.c.l.b16 %v642
  %v779 = vunpack.c.h.b16 %v642
  %v780 = vunpack.c.l.b16 %v643
  %v781 = vunpack.c.h.b16 %v643
  %v782 = vunpack.c.l.b16 %v644
  %v783 = vunpack.c.h.b16 %v644
  %v784 = vunpack.c.l.b16 %v645
  %v785 = vunpack.c.h.b16 %v645
  %v786 = vpack.c.b16 %v726, %v722
  %v787 = vpack.c.b16 %v727, %v723
  %v788 = vpack.c.b16 %v728, %v724
  %v789 = vpack.c.b16 %v729, %v725
  %v790 = vpack.c.b16 %v734, %v730
  %v791 = vpack.c.b16 %v735, %v731
  %v792 = vpack.c.b16 %v736, %v732
  %v793 = vpack.c.b16 %v737, %v733
  %v794 = vpack.c.b16 %v742, %v738
  %v795 = vpack.c.b16 %v743, %v739
  %v796 = vpack.c.b16 %v744, %v740
  %v797 = vpack.c.b16 %v745, %v741
  %v798 = vpack.c.b16 %v750, %v746
  %v799 = vpack.c.b16 %v751, %v747
  %v800 = vpack.c.b16 %v752, %v748
  %v801 = vpack.c.b16 %v753, %v749
  %v802 = vpack.c.b16 %v758, %v754
  %v803 = vpack.c.b16 %v759, %v755
  %v804 = vpack.c.b16 %v760, %v756
  %v805 = vpack.c.b16 %v761, %v757
  %v806 = vpack.c.b16 %v766, %v762
  %v807 = vpack.c.b16 %v767, %v763
  %v808 = vpack.c.b16 %v768, %v764
  %v809 = vpack.c.b16 %v769, %v765
  %v810 = vpack.c.b16 %v774, %v770
  %v811 = vpack.c.b16 %v775, %v771
  %v812 = vpack.c.b16 %v776, %v772
  %v813 = vpack.c.b16 %v777, %v773
  %v814 = vpack.c.b16 %v782, %v778
  %v815 = vpack.c.b16 %v783, %v779
  %v816 = vpack.c.b16 %v784, %v780
  %v817 = vpack.c.b16 %v785, %v781
  %850 = vmatprep.subr.bf16.mxu0 %v815
  %851 = vmatpush1.bf16.msra.mxu0 %v814
  %852 = vmatprep.subr.bf16.mxu0 %v811
  %853 = vmatpush1.bf16.msra.mxu0 %v810
  %854 = vmatprep.subr.bf16.mxu0 %v807
  %855 = vmatpush1.bf16.msra.mxu0 %v806
  %856 = vmatprep.subr.bf16.mxu0 %v803
  %857 = vmatpush1.bf16.msra.mxu0 %v802
  %858 = vmatprep.subr.bf16.mxu0 %v799
  %859 = vmatpush1.bf16.msra.mxu0 %v798
  %860 = vmatprep.subr.bf16.mxu0 %v795
  %861 = vmatpush1.bf16.msra.mxu0 %v794
  %862 = vmatprep.subr.bf16.mxu0 %v791
  %863 = vmatpush1.bf16.msra.mxu0 %v790
  %864 = vmatprep.subr.bf16.mxu0 %v787
  %865 = vmatpush1.bf16.msra.mxu0 %v786
  %866 = vmatprep.subr.bf16.mxu0 0
  %867 = vmatpush2.bf16.msra.mxu0 0
  %868 = vmatprep.subr.bf16.mxu0 0
  %869 = vmatpush2.bf16.msra.mxu0 0
  %870 = vmatprep.subr.bf16.mxu0 0
  %871 = vmatpush2.bf16.msra.mxu0 0
  %872 = vmatprep.subr.bf16.mxu0 0
  %873 = vmatpush2.bf16.msra.mxu0 0
  %874 = vmatprep.subr.bf16.mxu0 0
  %875 = vmatpush2.bf16.msra.mxu0 0
  %876 = vmatprep.subr.bf16.mxu0 0
  %877 = vmatpush2.bf16.msra.mxu0 0
  %878 = vmatprep.subr.bf16.mxu0 0
  %879 = vmatpush2.bf16.msra.mxu0 0
  %880 = vmatprep.subr.bf16.mxu0 0
  %881 = vmatpush2.bf16.msra.mxu0 0
  %882 = vmatprep.mubr.bf16.mxu0 0
  %883 = vmatmul.mubr.bf16.gmra.mxu0 0
  %v884 = vpop.f32.mrf.mxu0
  %v885 = vadd.f32 0.0, %v884
  %v886 = vpop.f32.mrf.mxu0
  %v887 = vadd.f32 0.0, %v886
  %v888 = vpop.f32.mrf.mxu0
  %v889 = vadd.f32 0.0, %v888
  %v890 = vpop.f32.mrf.mxu0
  %v891 = vadd.f32 0.0, %v890
  %892 = vdwg.mxu0
  %893 = vmatprep.subr.bf16.mxu0 %v817
  %894 = vmatpush1.bf16.msra.mxu0 %v816
  %895 = vmatprep.subr.bf16.mxu0 %v813
  %896 = vmatpush1.bf16.msra.mxu0 %v812
  %897 = vmatprep.subr.bf16.mxu0 %v809
  %898 = vmatpush1.bf16.msra.mxu0 %v808
  %899 = vmatprep.subr.bf16.mxu0 %v805
  %900 = vmatpush1.bf16.msra.mxu0 %v804
  %901 = vmatprep.subr.bf16.mxu0 %v801
  %902 = vmatpush1.bf16.msra.mxu0 %v800
  %903 = vmatprep.subr.bf16.mxu0 %v797
  %904 = vmatpush1.bf16.msra.mxu0 %v796
  %905 = vmatprep.subr.bf16.mxu0 %v793
  %906 = vmatpush1.bf16.msra.mxu0 %v792
  %907 = vmatprep.subr.bf16.mxu0 %v789
  %908 = vmatpush1.bf16.msra.mxu0 %v788
  %909 = vmatprep.subr.bf16.mxu0 0
  %910 = vmatpush2.bf16.msra.mxu0 0
  %911 = vmatprep.subr.bf16.mxu0 0
  %912 = vmatpush2.bf16.msra.mxu0 0
  %913 = vmatprep.subr.bf16.mxu0 0
  %914 = vmatpush2.bf16.msra.mxu0 0
  %915 = vmatprep.subr.bf16.mxu0 0
  %916 = vmatpush2.bf16.msra.mxu0 0
  %917 = vmatprep.subr.bf16.mxu0 0
  %918 = vmatpush2.bf16.msra.mxu0 0
  %919 = vmatprep.subr.bf16.mxu0 0
  %920 = vmatpush2.bf16.msra.mxu0 0
  %921 = vmatprep.subr.bf16.mxu0 0
  %922 = vmatpush2.bf16.msra.mxu0 0
  %923 = vmatprep.subr.bf16.mxu0 0
  %924 = vmatpush2.bf16.msra.mxu0 0
  %925 = vmatprep.mubr.bf16.mxu0 0
  %926 = vmatmul.mubr.bf16.gmra.mxu0 0
  %v927 = vpop.f32.mrf.mxu0
  %v928 = vadd.f32 0.0, %v927
  %v929 = vpop.f32.mrf.mxu0
  %v930 = vadd.f32 0.0, %v929
  %v931 = vpop.f32.mrf.mxu0
  %v932 = vadd.f32 0.0, %v931
  %v933 = vpop.f32.mrf.mxu0
  %v934 = vadd.f32 0.0, %v933
  %935 = vdwg.mxu0
  %v936 = vadd.f32 %v682, %v885
  %v937 = vadd.f32 %v683, %v887
  %v938 = vadd.f32 %v684, %v928
  %v939 = vadd.f32 %v685, %v930
  %v940 = vadd.f32 %v686, %v889
  %v941 = vadd.f32 %v687, %v891
  %v942 = vadd.f32 %v688, %v932
  %v943 = vadd.f32 %v689, %v934
  %v944 = vxor.u32 %v936, 2147483648
  %v945 = vxor.u32 %v937, 2147483648
  %v946 = vxor.u32 %v938, 2147483648
  %v947 = vxor.u32 %v940, 2147483648
  %v948 = vxor.u32 %v941, 2147483648
  %v949 = vxor.u32 %v942, 2147483648
  %v950 = vmul.f32 %v944, 1.442695
  %v951 = vpow.pop %v950
  %v952 = vmul.f32 %v945, 1.442695
  %v953 = vpow.pop %v952
  %v954 = vmul.f32 %v946, 1.442695
  %v955 = vpow.pop %v954
  %v956 = vmul.f32 %v947, 1.442695
  %v957 = vpow.pop %v956
  %v958 = vmul.f32 %v948, 1.442695
  %v959 = vpow.pop %v958
  %v960 = vmul.f32 %v949, 1.442695
  %v961 = vpow.pop %v960
  %v962 = vadd.f32 %v951, 1.0
  %v963 = vadd.f32 %v953, 1.0
  %v964 = vadd.f32 %v955, 1.0
  %v965 = vadd.f32 %v957, 1.0
  %v966 = vadd.f32 %v959, 1.0
  %v967 = vadd.f32 %v961, 1.0
  %v968 = vrcp.pop %v962
  %v969 = vmul.f32 1.0, %v968
  %v970 = vrcp.pop %v963
  %v971 = vmul.f32 1.0, %v970
  %v972 = vrcp.pop %v964
  %v973 = vmul.f32 1.0, %v972
  %v974 = vrcp.pop %v965
  %v975 = vmul.f32 1.0, %v974
  %v976 = vrcp.pop %v966
  %v977 = vmul.f32 1.0, %v976
  %v978 = vrcp.pop %v967
  %v979 = vmul.f32 1.0, %v978
  %v980 = vtanh.pop %v939
  %v981 = vtanh.pop %v943
  %v982 = vmul.f32 %v971, 0.0
  %v983 = vmul.f32 %v977, 0.0
  %v984 = vmul.f32 %v969, %v980
  %v985 = vmul.f32 %v975, %v981
  %v986 = vadd.f32 %v982, %v984
  %v987 = vadd.f32 %v983, %v985
  %v988 = vtanh.pop %v986
  %v989 = vtanh.pop %v987
  %v990 = vmul.f32 %v973, %v988
  %v991 = vmul.f32 %v979, %v989
  %992 = vst [vmem:[#allocation3] sm:$0xff] %v990
  %993 = vst [vmem:[#allocation3 + $0x8] sm:$0xff] %v991
  %s994 = smul.u32 2, 4
  %s995 = smul.addr %s994, 4
  %s996 = scalar_lea.vmem [#allocation2], %s995
  %v997 = vld [vmem:[%s996] sm:$0xff]
  %v998 = vld [vmem:[%s996 + $0x8] sm:$0xff]
  %v999 = vld [vmem:[%s996 + $0x10] sm:$0xff]
  %v1000 = vld [vmem:[%s996 + $0x18] sm:$0xff]
  %v1001 = vunpack.c.l.bf16 %v997
  %v1002 = vunpack.c.h.bf16 %v997
  %v1003 = vunpack.c.l.bf16 %v998
  %v1004 = vunpack.c.h.bf16 %v998
  %v1005 = vunpack.c.l.bf16 %v999
  %v1006 = vunpack.c.h.bf16 %v999
  %v1007 = vunpack.c.l.bf16 %v1000
  %v1008 = vunpack.c.h.bf16 %v1000
  %v1009 = vadd.f32 %v1001, %v665
  %v1010 = vadd.f32 %v1002, %v669
  %v1011 = vadd.f32 %v1003, %v673
  %v1012 = vadd.f32 %v1004, %v677
  %v1013 = vadd.f32 %v1005, %v665
  %v1014 = vadd.f32 %v1006, %v669
  %v1015 = vadd.f32 %v1007, %v673
  %v1016 = vadd.f32 %v1008, %v677
  %v1017 = vpack.c.bf16 %v991, %v990
  %1018 = vmatprep.subr.bf16.mxu0 %v815
  %1019 = vmatpush1.bf16.msra.mxu0 %v814
  %1020 = vmatprep.subr.bf16.mxu0 %v811
  %1021 = vmatpush1.bf16.msra.mxu0 %v810
  %1022 = vmatprep.subr.bf16.mxu0 %v807
  %1023 = vmatpush1.bf16.msra.mxu0 %v806
  %1024 = vmatprep.subr.bf16.mxu0 %v803
  %1025 = vmatpush1.bf16.msra.mxu0 %v802
  %1026 = vmatprep.subr.bf16.mxu0 %v799
  %1027 = vmatpush1.bf16.msra.mxu0 %v798
  %1028 = vmatprep.subr.bf16.mxu0 %v795
  %1029 = vmatpush1.bf16.msra.mxu0 %v794
  %1030 = vmatprep.subr.bf16.mxu0 %v791
  %1031 = vmatpush1.bf16.msra.mxu0 %v790
  %1032 = vmatprep.subr.bf16.mxu0 %v787
  %1033 = vmatpush1.bf16.msra.mxu0 %v786
  %1034 = vmatprep.subr.bf16.mxu0 0
  %1035 = vmatpush2.bf16.msra.mxu0 0
  %1036 = vmatprep.subr.bf16.mxu0 0
  %1037 = vmatpush2.bf16.msra.mxu0 0
  %1038 = vmatprep.subr.bf16.mxu0 0
  %1039 = vmatpush2.bf16.msra.mxu0 0
  %1040 = vmatprep.subr.bf16.mxu0 0
  %1041 = vmatpush2.bf16.msra.mxu0 0
  %1042 = vmatprep.subr.bf16.mxu0 0
  %1043 = vmatpush2.bf16.msra.mxu0 0
  %1044 = vmatprep.subr.bf16.mxu0 0
  %1045 = vmatpush2.bf16.msra.mxu0 0
  %1046 = vmatprep.subr.bf16.mxu0 0
  %1047 = vmatpush2.bf16.msra.mxu0 0
  %1048 = vmatprep.subr.bf16.mxu0 0
  %1049 = vmatpush2.bf16.msra.mxu0 0
  %1050 = vmatprep.mubr.bf16.mxu0 0
  %1051 = vmatmul.mubr.bf16.gmra.mxu0 %v1017
  %v1052 = vpop.f32.mrf.mxu0
  %v1053 = vadd.f32 0.0, %v1052
  %v1054 = vpop.f32.mrf.mxu0
  %v1055 = vadd.f32 0.0, %v1054
  %v1056 = vpop.f32.mrf.mxu0
  %v1057 = vadd.f32 0.0, %v1056
  %v1058 = vpop.f32.mrf.mxu0
  %v1059 = vadd.f32 0.0, %v1058
  %1060 = vdwg.mxu0
  %1061 = vmatprep.subr.bf16.mxu0 %v817
  %1062 = vmatpush1.bf16.msra.mxu0 %v816
  %1063 = vmatprep.subr.bf16.mxu0 %v813
  %1064 = vmatpush1.bf16.msra.mxu0 %v812
  %1065 = vmatprep.subr.bf16.mxu0 %v809
  %1066 = vmatpush1.bf16.msra.mxu0 %v808
  %1067 = vmatprep.subr.bf16.mxu0 %v805
  %1068 = vmatpush1.bf16.msra.mxu0 %v804
  %1069 = vmatprep.subr.bf16.mxu0 %v801
  %1070 = vmatpush1.bf16.msra.mxu0 %v800
  %1071 = vmatprep.subr.bf16.mxu0 %v797
  %1072 = vmatpush1.bf16.msra.mxu0 %v796
  %1073 = vmatprep.subr.bf16.mxu0 %v793
  %1074 = vmatpush1.bf16.msra.mxu0 %v792
  %1075 = vmatprep.subr.bf16.mxu0 %v789
  %1076 = vmatpush1.bf16.msra.mxu0 %v788
  %1077 = vmatprep.subr.bf16.mxu0 0
  %1078 = vmatpush2.bf16.msra.mxu0 0
  %1079 = vmatprep.subr.bf16.mxu0 0
  %1080 = vmatpush2.bf16.msra.mxu0 0
  %1081 = vmatprep.subr.bf16.mxu0 0
  %1082 = vmatpush2.bf16.msra.mxu0 0
  %1083 = vmatprep.subr.bf16.mxu0 0
  %1084 = vmatpush2.bf16.msra.mxu0 0
  %1085 = vmatprep.subr.bf16.mxu0 0
  %1086 = vmatpush2.bf16.msra.mxu0 0
  %1087 = vmatprep.subr.bf16.mxu0 0
  %1088 = vmatpush2.bf16.msra.mxu0 0
  %1089 = vmatprep.subr.bf16.mxu0 0
  %1090 = vmatpush2.bf16.msra.mxu0 0
  %1091 = vmatprep.subr.bf16.mxu0 0
  %1092 = vmatpush2.bf16.msra.mxu0 0
  %1093 = vmatprep.mubr.bf16.mxu0 0
  %1094 = vmatmul.mubr.bf16.gmra.mxu0 %v1017
  %v1095 = vpop.f32.mrf.mxu0
  %v1096 = vadd.f32 0.0, %v1095
  %v1097 = vpop.f32.mrf.mxu0
  %v1098 = vadd.f32 0.0, %v1097
  %v1099 = vpop.f32.mrf.mxu0
  %v1100 = vadd.f32 0.0, %v1099
  %v1101 = vpop.f32.mrf.mxu0
  %v1102 = vadd.f32 0.0, %v1101
  %1103 = vdwg.mxu0
  %v1104 = vadd.f32 %v1009, %v1053
  %v1105 = vadd.f32 %v1010, %v1055
  %v1106 = vadd.f32 %v1011, %v1096
  %v1107 = vadd.f32 %v1012, %v1098
  %v1108 = vadd.f32 %v1013, %v1057
  %v1109 = vadd.f32 %v1014, %v1059
  %v1110 = vadd.f32 %v1015, %v1100
  %v1111 = vadd.f32 %v1016, %v1102
  %v1112 = vxor.u32 %v1104, 2147483648
  %v1113 = vxor.u32 %v1105, 2147483648
  %v1114 = vxor.u32 %v1106, 2147483648
  %v1115 = vxor.u32 %v1108, 2147483648
  %v1116 = vxor.u32 %v1109, 2147483648
  %v1117 = vxor.u32 %v1110, 2147483648
  %v1118 = vmul.f32 %v1112, 1.442695
  %v1119 = vpow.pop %v1118
  %v1120 = vmul.f32 %v1113, 1.442695
  %v1121 = vpow.pop %v1120
  %v1122 = vmul.f32 %v1114, 1.442695
  %v1123 = vpow.pop %v1122
  %v1124 = vmul.f32 %v1115, 1.442695
  %v1125 = vpow.pop %v1124
  %v1126 = vmul.f32 %v1116, 1.442695
  %v1127 = vpow.pop %v1126
  %v1128 = vmul.f32 %v1117, 1.442695
  %v1129 = vpow.pop %v1128
  %v1130 = vadd.f32 %v1119, 1.0
  %v1131 = vadd.f32 %v1121, 1.0
  %v1132 = vadd.f32 %v1123, 1.0
  %v1133 = vadd.f32 %v1125, 1.0
  %v1134 = vadd.f32 %v1127, 1.0
  %v1135 = vadd.f32 %v1129, 1.0
  %v1136 = vrcp.pop %v1130
  %v1137 = vmul.f32 1.0, %v1136
  %v1138 = vrcp.pop %v1131
  %v1139 = vmul.f32 1.0, %v1138
  %v1140 = vrcp.pop %v1132
  %v1141 = vmul.f32 1.0, %v1140
  %v1142 = vrcp.pop %v1133
  %v1143 = vmul.f32 1.0, %v1142
  %v1144 = vrcp.pop %v1134
  %v1145 = vmul.f32 1.0, %v1144
  %v1146 = vrcp.pop %v1135
  %v1147 = vmul.f32 1.0, %v1146
  %v1148 = vtanh.pop %v1107
  %v1149 = vtanh.pop %v1111
  %v1150 = vmul.f32 %v1139, %v986
  %v1151 = vmul.f32 %v1145, %v987
  %v1152 = vmul.f32 %v1137, %v1148
  %v1153 = vmul.f32 %v1143, %v1149
  %v1154 = vadd.f32 %v1150, %v1152
  %v1155 = vadd.f32 %v1151, %v1153
  %v1156 = vtanh.pop %v1154
  %v1157 = vtanh.pop %v1155
  %v1158 = vmul.f32 %v1141, %v1156
  %v1159 = vmul.f32 %v1147, %v1157
  %s1160 = scalar_lea.vmem [#allocation3], 16
  %1161 = vst [vmem:[%s1160] sm:$0xff] %v1158
  %1162 = vst [vmem:[%s1160 + $0x8] sm:$0xff] %v1159
  %s1163 = smul.u32 4, 4
  %s1164 = smul.addr %s1163, 4
  %s1165 = scalar_lea.vmem [#allocation2], %s1164
  %v1166 = vld [vmem:[%s1165] sm:$0xff]
  %v1167 = vld [vmem:[%s1165 + $0x8] sm:$0xff]
  %v1168 = vld [vmem:[%s1165 + $0x10] sm:$0xff]
  %v1169 = vld [vmem:[%s1165 + $0x18] sm:$0xff]
  %v1170 = vunpack.c.l.bf16 %v1166
  %v1171 = vunpack.c.h.bf16 %v1166
  %v1172 = vunpack.c.l.bf16 %v1167
  %v1173 = vunpack.c.h.bf16 %v1167
  %v1174 = vunpack.c.l.bf16 %v1168
  %v1175 = vunpack.c.h.bf16 %v1168
  %v1176 = vunpack.c.l.bf16 %v1169
  %v1177 = vunpack.c.h.bf16 %v1169
  %v1178 = vadd.f32 %v1170, %v665
  %v1179 = vadd.f32 %v1171, %v669
  %v1180 = vadd.f32 %v1172, %v673
  %v1181 = vadd.f32 %v1173, %v677
  %v1182 = vadd.f32 %v1174, %v665
  %v1183 = vadd.f32 %v1175, %v669
  %v1184 = vadd.f32 %v1176, %v673
  %v1185 = vadd.f32 %v1177, %v677
  %v1186 = vpack.c.bf16 %v1159, %v1158
  %1187 = vmatprep.subr.bf16.mxu0 %v815
  %1188 = vmatpush1.bf16.msra.mxu0 %v814
  %1189 = vmatprep.subr.bf16.mxu0 %v811
  %1190 = vmatpush1.bf16.msra.mxu0 %v810
  %1191 = vmatprep.subr.bf16.mxu0 %v807
  %1192 = vmatpush1.bf16.msra.mxu0 %v806
  %1193 = vmatprep.subr.bf16.mxu0 %v803
  %1194 = vmatpush1.bf16.msra.mxu0 %v802
  %1195 = vmatprep.subr.bf16.mxu0 %v799
  %1196 = vmatpush1.bf16.msra.mxu0 %v798
  %1197 = vmatprep.subr.bf16.mxu0 %v795
  %1198 = vmatpush1.bf16.msra.mxu0 %v794
  %1199 = vmatprep.subr.bf16.mxu0 %v791
  %1200 = vmatpush1.bf16.msra.mxu0 %v790
  %1201 = vmatprep.subr.bf16.mxu0 %v787
  %1202 = vmatpush1.bf16.msra.mxu0 %v786
  %1203 = vmatprep.subr.bf16.mxu0 0
  %1204 = vmatpush2.bf16.msra.mxu0 0
  %1205 = vmatprep.subr.bf16.mxu0 0
  %1206 = vmatpush2.bf16.msra.mxu0 0
  %1207 = vmatprep.subr.bf16.mxu0 0
  %1208 = vmatpush2.bf16.msra.mxu0 0
  %1209 = vmatprep.subr.bf16.mxu0 0
  %1210 = vmatpush2.bf16.msra.mxu0 0
  %1211 = vmatprep.subr.bf16.mxu0 0
  %1212 = vmatpush2.bf16.msra.mxu0 0
  %1213 = vmatprep.subr.bf16.mxu0 0
  %1214 = vmatpush2.bf16.msra.mxu0 0
  %1215 = vmatprep.subr.bf16.mxu0 0
  %1216 = vmatpush2.bf16.msra.mxu0 0
  %1217 = vmatprep.subr.bf16.mxu0 0
  %1218 = vmatpush2.bf16.msra.mxu0 0
  %1219 = vmatprep.mubr.bf16.mxu0 0
  %1220 = vmatmul.mubr.bf16.gmra.mxu0 %v1186
  %v1221 = vpop.f32.mrf.mxu0
  %v1222 = vadd.f32 0.0, %v1221
  %v1223 = vpop.f32.mrf.mxu0
  %v1224 = vadd.f32 0.0, %v1223
  %v1225 = vpop.f32.mrf.mxu0
  %v1226 = vadd.f32 0.0, %v1225
  %v1227 = vpop.f32.mrf.mxu0
  %v1228 = vadd.f32 0.0, %v1227
  %1229 = vdwg.mxu0
  %1230 = vmatprep.subr.bf16.mxu0 %v817
  %1231 = vmatpush1.bf16.msra.mxu0 %v816
  %1232 = vmatprep.subr.bf16.mxu0 %v813
  %1233 = vmatpush1.bf16.msra.mxu0 %v812
  %1234 = vmatprep.subr.bf16.mxu0 %v809
  %1235 = vmatpush1.bf16.msra.mxu0 %v808
  %1236 = vmatprep.subr.bf16.mxu0 %v805
  %1237 = vmatpush1.bf16.msra.mxu0 %v804
  %1238 = vmatprep.subr.bf16.mxu0 %v801
  %1239 = vmatpush1.bf16.msra.mxu0 %v800
  %1240 = vmatprep.subr.bf16.mxu0 %v797
  %1241 = vmatpush1.bf16.msra.mxu0 %v796
  %1242 = vmatprep.subr.bf16.mxu0 %v793
  %1243 = vmatpush1.bf16.msra.mxu0 %v792
  %1244 = vmatprep.subr.bf16.mxu0 %v789
  %1245 = vmatpush1.bf16.msra.mxu0 %v788
  %1246 = vmatprep.subr.bf16.mxu0 0
  %1247 = vmatpush2.bf16.msra.mxu0 0
  %1248 = vmatprep.subr.bf16.mxu0 0
  %1249 = vmatpush2.bf16.msra.mxu0 0
  %1250 = vmatprep.subr.bf16.mxu0 0
  %1251 = vmatpush2.bf16.msra.mxu0 0
  %1252 = vmatprep.subr.bf16.mxu0 0
  %1253 = vmatpush2.bf16.msra.mxu0 0
  %1254 = vmatprep.subr.bf16.mxu0 0
  %1255 = vmatpush2.bf16.msra.mxu0 0
  %1256 = vmatprep.subr.bf16.mxu0 0
  %1257 = vmatpush2.bf16.msra.mxu0 0
  %1258 = vmatprep.subr.bf16.mxu0 0
  %1259 = vmatpush2.bf16.msra.mxu0 0
  %1260 = vmatprep.subr.bf16.mxu0 0
  %1261 = vmatpush2.bf16.msra.mxu0 0
  %1262 = vmatprep.mubr.bf16.mxu0 0
  %1263 = vmatmul.mubr.bf16.gmra.mxu0 %v1186
  %v1264 = vpop.f32.mrf.mxu0
  %v1265 = vadd.f32 0.0, %v1264
  %v1266 = vpop.f32.mrf.mxu0
  %v1267 = vadd.f32 0.0, %v1266
  %v1268 = vpop.f32.mrf.mxu0
  %v1269 = vadd.f32 0.0, %v1268
  %v1270 = vpop.f32.mrf.mxu0
  %v1271 = vadd.f32 0.0, %v1270
  %1272 = vdwg.mxu0
  %v1273 = vadd.f32 %v1178, %v1222
  %v1274 = vadd.f32 %v1179, %v1224
  %v1275 = vadd.f32 %v1180, %v1265
  %v1276 = vadd.f32 %v1181, %v1267
  %v1277 = vadd.f32 %v1182, %v1226
  %v1278 = vadd.f32 %v1183, %v1228
  %v1279 = vadd.f32 %v1184, %v1269
  %v1280 = vadd.f32 %v1185, %v1271
  %v1281 = vxor.u32 %v1273, 2147483648
  %v1282 = vxor.u32 %v1274, 2147483648
  %v1283 = vxor.u32 %v1275, 2147483648
  %v1284 = vxor.u32 %v1277, 2147483648
  %v1285 = vxor.u32 %v1278, 2147483648
  %v1286 = vxor.u32 %v1279, 2147483648
  %v1287 = vmul.f32 %v1281, 1.442695
  %v1288 = vpow.pop %v1287
  %v1289 = vmul.f32 %v1282, 1.442695
  %v1290 = vpow.pop %v1289
  %v1291 = vmul.f32 %v1283, 1.442695
  %v1292 = vpow.pop %v1291
  %v1293 = vmul.f32 %v1284, 1.442695
  %v1294 = vpow.pop %v1293
  %v1295 = vmul.f32 %v1285, 1.442695
  %v1296 = vpow.pop %v1295
  %v1297 = vmul.f32 %v1286, 1.442695
  %v1298 = vpow.pop %v1297
  %v1299 = vadd.f32 %v1288, 1.0
  %v1300 = vadd.f32 %v1290, 1.0
  %v1301 = vadd.f32 %v1292, 1.0
  %v1302 = vadd.f32 %v1294, 1.0
  %v1303 = vadd.f32 %v1296, 1.0
  %v1304 = vadd.f32 %v1298, 1.0
  %v1305 = vrcp.pop %v1299
  %v1306 = vmul.f32 1.0, %v1305
  %v1307 = vrcp.pop %v1300
  %v1308 = vmul.f32 1.0, %v1307
  %v1309 = vrcp.pop %v1301
  %v1310 = vmul.f32 1.0, %v1309
  %v1311 = vrcp.pop %v1302
  %v1312 = vmul.f32 1.0, %v1311
  %v1313 = vrcp.pop %v1303
  %v1314 = vmul.f32 1.0, %v1313
  %v1315 = vrcp.pop %v1304
  %v1316 = vmul.f32 1.0, %v1315
  %v1317 = vtanh.pop %v1276
  %v1318 = vtanh.pop %v1280
  %v1319 = vmul.f32 %v1308, %v1154
  %v1320 = vmul.f32 %v1314, %v1155
  %v1321 = vmul.f32 %v1306, %v1317
  %v1322 = vmul.f32 %v1312, %v1318
  %v1323 = vadd.f32 %v1319, %v1321
  %v1324 = vadd.f32 %v1320, %v1322
  %v1325 = vtanh.pop %v1323
  %v1326 = vtanh.pop %v1324
  %v1327 = vmul.f32 %v1310, %v1325
  %v1328 = vmul.f32 %v1316, %v1326
  %s1329 = scalar_lea.vmem [#allocation3], 32
  %1330 = vst [vmem:[%s1329] sm:$0xff] %v1327
  %1331 = vst [vmem:[%s1329 + $0x8] sm:$0xff] %v1328
  %s1332 = smul.u32 6, 4
  %s1333 = smul.addr %s1332, 4
  %s1334 = scalar_lea.vmem [#allocation2], %s1333
  %v1335 = vld [vmem:[%s1334] sm:$0xff]
  %v1336 = vld [vmem:[%s1334 + $0x8] sm:$0xff]
  %v1337 = vld [vmem:[%s1334 + $0x10] sm:$0xff]
  %v1338 = vld [vmem:[%s1334 + $0x18] sm:$0xff]
  %v1339 = vunpack.c.l.bf16 %v1335
  %v1340 = vunpack.c.h.bf16 %v1335
  %v1341 = vunpack.c.l.bf16 %v1336
  %v1342 = vunpack.c.h.bf16 %v1336
  %v1343 = vunpack.c.l.bf16 %v1337
  %v1344 = vunpack.c.h.bf16 %v1337
  %v1345 = vunpack.c.l.bf16 %v1338
  %v1346 = vunpack.c.h.bf16 %v1338
  %v1347 = vadd.f32 %v1339, %v665
  %v1348 = vadd.f32 %v1340, %v669
  %v1349 = vadd.f32 %v1341, %v673
  %v1350 = vadd.f32 %v1342, %v677
  %v1351 = vadd.f32 %v1343, %v665
  %v1352 = vadd.f32 %v1344, %v669
  %v1353 = vadd.f32 %v1345, %v673
  %v1354 = vadd.f32 %v1346, %v677
  %v1355 = vpack.c.bf16 %v1328, %v1327
  %1356 = vmatprep.subr.bf16.mxu0 %v815
  %1357 = vmatpush1.bf16.msra.mxu0 %v814
  %1358 = vmatprep.subr.bf16.mxu0 %v811
  %1359 = vmatpush1.bf16.msra.mxu0 %v810
  %1360 = vmatprep.subr.bf16.mxu0 %v807
  %1361 = vmatpush1.bf16.msra.mxu0 %v806
  %1362 = vmatprep.subr.bf16.mxu0 %v803
  %1363 = vmatpush1.bf16.msra.mxu0 %v802
  %1364 = vmatprep.subr.bf16.mxu0 %v799
  %1365 = vmatpush1.bf16.msra.mxu0 %v798
  %1366 = vmatprep.subr.bf16.mxu0 %v795
  %1367 = vmatpush1.bf16.msra.mxu0 %v794
  %1368 = vmatprep.subr.bf16.mxu0 %v791
  %1369 = vmatpush1.bf16.msra.mxu0 %v790
  %1370 = vmatprep.subr.bf16.mxu0 %v787
  %1371 = vmatpush1.bf16.msra.mxu0 %v786
  %1372 = vmatprep.subr.bf16.mxu0 0
  %1373 = vmatpush2.bf16.msra.mxu0 0
  %1374 = vmatprep.subr.bf16.mxu0 0
  %1375 = vmatpush2.bf16.msra.mxu0 0
  %1376 = vmatprep.subr.bf16.mxu0 0
  %1377 = vmatpush2.bf16.msra.mxu0 0
  %1378 = vmatprep.subr.bf16.mxu0 0
  %1379 = vmatpush2.bf16.msra.mxu0 0
  %1380 = vmatprep.subr.bf16.mxu0 0
  %1381 = vmatpush2.bf16.msra.mxu0 0
  %1382 = vmatprep.subr.bf16.mxu0 0
  %1383 = vmatpush2.bf16.msra.mxu0 0
  %1384 = vmatprep.subr.bf16.mxu0 0
  %1385 = vmatpush2.bf16.msra.mxu0 0
  %1386 = vmatprep.subr.bf16.mxu0 0
  %1387 = vmatpush2.bf16.msra.mxu0 0
  %1388 = vmatprep.mubr.bf16.mxu0 0
  %1389 = vmatmul.mubr.bf16.gmra.mxu0 %v1355
  %v1390 = vpop.f32.mrf.mxu0
  %v1391 = vadd.f32 0.0, %v1390
  %v1392 = vpop.f32.mrf.mxu0
  %v1393 = vadd.f32 0.0, %v1392
  %v1394 = vpop.f32.mrf.mxu0
  %v1395 = vadd.f32 0.0, %v1394
  %v1396 = vpop.f32.mrf.mxu0
  %v1397 = vadd.f32 0.0, %v1396
  %1398 = vdwg.mxu0
  %1399 = vmatprep.subr.bf16.mxu0 %v817
  %1400 = vmatpush1.bf16.msra.mxu0 %v816
  %1401 = vmatprep.subr.bf16.mxu0 %v813
  %1402 = vmatpush1.bf16.msra.mxu0 %v812
  %1403 = vmatprep.subr.bf16.mxu0 %v809
  %1404 = vmatpush1.bf16.msra.mxu0 %v808
  %1405 = vmatprep.subr.bf16.mxu0 %v805
  %1406 = vmatpush1.bf16.msra.mxu0 %v804
  %1407 = vmatprep.subr.bf16.mxu0 %v801
  %1408 = vmatpush1.bf16.msra.mxu0 %v800
  %1409 = vmatprep.subr.bf16.mxu0 %v797
  %1410 = vmatpush1.bf16.msra.mxu0 %v796
  %1411 = vmatprep.subr.bf16.mxu0 %v793
  %1412 = vmatpush1.bf16.msra.mxu0 %v792
  %1413 = vmatprep.subr.bf16.mxu0 %v789
  %1414 = vmatpush1.bf16.msra.mxu0 %v788
  %1415 = vmatprep.subr.bf16.mxu0 0
  %1416 = vmatpush2.bf16.msra.mxu0 0
  %1417 = vmatprep.subr.bf16.mxu0 0
  %1418 = vmatpush2.bf16.msra.mxu0 0
  %1419 = vmatprep.subr.bf16.mxu0 0
  %1420 = vmatpush2.bf16.msra.mxu0 0
  %1421 = vmatprep.subr.bf16.mxu0 0
  %1422 = vmatpush2.bf16.msra.mxu0 0
  %1423 = vmatprep.subr.bf16.mxu0 0
  %1424 = vmatpush2.bf16.msra.mxu0 0
  %1425 = vmatprep.subr.bf16.mxu0 0
  %1426 = vmatpush2.bf16.msra.mxu0 0
  %1427 = vmatprep.subr.bf16.mxu0 0
  %1428 = vmatpush2.bf16.msra.mxu0 0
  %1429 = vmatprep.subr.bf16.mxu0 0
  %1430 = vmatpush2.bf16.msra.mxu0 0
  %1431 = vmatprep.mubr.bf16.mxu0 0
  %1432 = vmatmul.mubr.bf16.gmra.mxu0 %v1355
  %v1433 = vpop.f32.mrf.mxu0
  %v1434 = vadd.f32 0.0, %v1433
  %v1435 = vpop.f32.mrf.mxu0
  %v1436 = vadd.f32 0.0, %v1435
  %v1437 = vpop.f32.mrf.mxu0
  %v1438 = vadd.f32 0.0, %v1437
  %v1439 = vpop.f32.mrf.mxu0
  %v1440 = vadd.f32 0.0, %v1439
  %1441 = vdwg.mxu0
  %v1442 = vadd.f32 %v1347, %v1391
  %v1443 = vadd.f32 %v1348, %v1393
  %v1444 = vadd.f32 %v1349, %v1434
  %v1445 = vadd.f32 %v1350, %v1436
  %v1446 = vadd.f32 %v1351, %v1395
  %v1447 = vadd.f32 %v1352, %v1397
  %v1448 = vadd.f32 %v1353, %v1438
  %v1449 = vadd.f32 %v1354, %v1440
  %v1450 = vxor.u32 %v1442, 2147483648
  %v1451 = vxor.u32 %v1443, 2147483648
  %v1452 = vxor.u32 %v1444, 2147483648
  %v1453 = vxor.u32 %v1446, 2147483648
  %v1454 = vxor.u32 %v1447, 2147483648
  %v1455 = vxor.u32 %v1448, 2147483648
  %v1456 = vmul.f32 %v1450, 1.442695
  %v1457 = vpow.pop %v1456
  %v1458 = vmul.f32 %v1451, 1.442695
  %v1459 = vpow.pop %v1458
  %v1460 = vmul.f32 %v1452, 1.442695
  %v1461 = vpow.pop %v1460
  %v1462 = vmul.f32 %v1453, 1.442695
  %v1463 = vpow.pop %v1462
  %v1464 = vmul.f32 %v1454, 1.442695
  %v1465 = vpow.pop %v1464
  %v1466 = vmul.f32 %v1455, 1.442695
  %v1467 = vpow.pop %v1466
  %v1468 = vadd.f32 %v1457, 1.0
  %v1469 = vadd.f32 %v1459, 1.0
  %v1470 = vadd.f32 %v1461, 1.0
  %v1471 = vadd.f32 %v1463, 1.0
  %v1472 = vadd.f32 %v1465, 1.0
  %v1473 = vadd.f32 %v1467, 1.0
  %v1474 = vrcp.pop %v1468
  %v1475 = vmul.f32 1.0, %v1474
  %v1476 = vrcp.pop %v1469
  %v1477 = vmul.f32 1.0, %v1476
  %v1478 = vrcp.pop %v1470
  %v1479 = vmul.f32 1.0, %v1478
  %v1480 = vrcp.pop %v1471
  %v1481 = vmul.f32 1.0, %v1480
  %v1482 = vrcp.pop %v1472
  %v1483 = vmul.f32 1.0, %v1482
  %v1484 = vrcp.pop %v1473
  %v1485 = vmul.f32 1.0, %v1484
  %v1486 = vtanh.pop %v1445
  %v1487 = vtanh.pop %v1449
  %v1488 = vmul.f32 %v1477, %v1323
  %v1489 = vmul.f32 %v1483, %v1324
  %v1490 = vmul.f32 %v1475, %v1486
  %v1491 = vmul.f32 %v1481, %v1487
  %v1492 = vadd.f32 %v1488, %v1490
  %v1493 = vadd.f32 %v1489, %v1491
  %v1494 = vtanh.pop %v1492
  %v1495 = vtanh.pop %v1493
  %v1496 = vmul.f32 %v1479, %v1494
  %v1497 = vmul.f32 %v1485, %v1495
  %s1498 = scalar_lea.vmem [#allocation3], 48
  %1499 = vst [vmem:[%s1498] sm:$0xff] %v1496
  %1500 = vst [vmem:[%s1498 + $0x8] sm:$0xff] %v1497
  %s1501 = smul.u32 8, 4
  %s1502 = smul.addr %s1501, 4
  %s1503 = scalar_lea.vmem [#allocation2], %s1502
  %v1504 = vld [vmem:[%s1503] sm:$0xff]
  %v1505 = vld [vmem:[%s1503 + $0x8] sm:$0xff]
  %v1506 = vld [vmem:[%s1503 + $0x10] sm:$0xff]
  %v1507 = vld [vmem:[%s1503 + $0x18] sm:$0xff]
  %v1508 = vunpack.c.l.bf16 %v1504
  %v1509 = vunpack.c.h.bf16 %v1504
  %v1510 = vunpack.c.l.bf16 %v1505
  %v1511 = vunpack.c.h.bf16 %v1505
  %v1512 = vunpack.c.l.bf16 %v1506
  %v1513 = vunpack.c.h.bf16 %v1506
  %v1514 = vunpack.c.l.bf16 %v1507
  %v1515 = vunpack.c.h.bf16 %v1507
  %v1516 = vadd.f32 %v1508, %v665
  %v1517 = vadd.f32 %v1509, %v669
  %v1518 = vadd.f32 %v1510, %v673
  %v1519 = vadd.f32 %v1511, %v677
  %v1520 = vadd.f32 %v1512, %v665
  %v1521 = vadd.f32 %v1513, %v669
  %v1522 = vadd.f32 %v1514, %v673
  %v1523 = vadd.f32 %v1515, %v677
  %v1524 = vpack.c.bf16 %v1497, %v1496
  %1525 = vmatprep.subr.bf16.mxu0 %v815
  %1526 = vmatpush1.bf16.msra.mxu0 %v814
  %1527 = vmatprep.subr.bf16.mxu0 %v811
  %1528 = vmatpush1.bf16.msra.mxu0 %v810
  %1529 = vmatprep.subr.bf16.mxu0 %v807
  %1530 = vmatpush1.bf16.msra.mxu0 %v806
  %1531 = vmatprep.subr.bf16.mxu0 %v803
  %1532 = vmatpush1.bf16.msra.mxu0 %v802
  %1533 = vmatprep.subr.bf16.mxu0 %v799
  %1534 = vmatpush1.bf16.msra.mxu0 %v798
  %1535 = vmatprep.subr.bf16.mxu0 %v795
  %1536 = vmatpush1.bf16.msra.mxu0 %v794
  %1537 = vmatprep.subr.bf16.mxu0 %v791
  %1538 = vmatpush1.bf16.msra.mxu0 %v790
  %1539 = vmatprep.subr.bf16.mxu0 %v787
  %1540 = vmatpush1.bf16.msra.mxu0 %v786
  %1541 = vmatprep.subr.bf16.mxu0 0
  %1542 = vmatpush2.bf16.msra.mxu0 0
  %1543 = vmatprep.subr.bf16.mxu0 0
  %1544 = vmatpush2.bf16.msra.mxu0 0
  %1545 = vmatprep.subr.bf16.mxu0 0
  %1546 = vmatpush2.bf16.msra.mxu0 0
  %1547 = vmatprep.subr.bf16.mxu0 0
  %1548 = vmatpush2.bf16.msra.mxu0 0
  %1549 = vmatprep.subr.bf16.mxu0 0
  %1550 = vmatpush2.bf16.msra.mxu0 0
  %1551 = vmatprep.subr.bf16.mxu0 0
  %1552 = vmatpush2.bf16.msra.mxu0 0
  %1553 = vmatprep.subr.bf16.mxu0 0
  %1554 = vmatpush2.bf16.msra.mxu0 0
  %1555 = vmatprep.subr.bf16.mxu0 0
  %1556 = vmatpush2.bf16.msra.mxu0 0
  %1557 = vmatprep.mubr.bf16.mxu0 0
  %1558 = vmatmul.mubr.bf16.gmra.mxu0 %v1524
  %v1559 = vpop.f32.mrf.mxu0
  %v1560 = vadd.f32 0.0, %v1559
  %v1561 = vpop.f32.mrf.mxu0
  %v1562 = vadd.f32 0.0, %v1561
  %v1563 = vpop.f32.mrf.mxu0
  %v1564 = vadd.f32 0.0, %v1563
  %v1565 = vpop.f32.mrf.mxu0
  %v1566 = vadd.f32 0.0, %v1565
  %1567 = vdwg.mxu0
  %1568 = vmatprep.subr.bf16.mxu0 %v817
  %1569 = vmatpush1.bf16.msra.mxu0 %v816
  %1570 = vmatprep.subr.bf16.mxu0 %v813
  %1571 = vmatpush1.bf16.msra.mxu0 %v812
  %1572 = vmatprep.subr.bf16.mxu0 %v809
  %1573 = vmatpush1.bf16.msra.mxu0 %v808
  %1574 = vmatprep.subr.bf16.mxu0 %v805
  %1575 = vmatpush1.bf16.msra.mxu0 %v804
  %1576 = vmatprep.subr.bf16.mxu0 %v801
  %1577 = vmatpush1.bf16.msra.mxu0 %v800
  %1578 = vmatprep.subr.bf16.mxu0 %v797
  %1579 = vmatpush1.bf16.msra.mxu0 %v796
  %1580 = vmatprep.subr.bf16.mxu0 %v793
  %1581 = vmatpush1.bf16.msra.mxu0 %v792
  %1582 = vmatprep.subr.bf16.mxu0 %v789
  %1583 = vmatpush1.bf16.msra.mxu0 %v788
  %1584 = vmatprep.subr.bf16.mxu0 0
  %1585 = vmatpush2.bf16.msra.mxu0 0
  %1586 = vmatprep.subr.bf16.mxu0 0
  %1587 = vmatpush2.bf16.msra.mxu0 0
  %1588 = vmatprep.subr.bf16.mxu0 0
  %1589 = vmatpush2.bf16.msra.mxu0 0
  %1590 = vmatprep.subr.bf16.mxu0 0
  %1591 = vmatpush2.bf16.msra.mxu0 0
  %1592 = vmatprep.subr.bf16.mxu0 0
  %1593 = vmatpush2.bf16.msra.mxu0 0
  %1594 = vmatprep.subr.bf16.mxu0 0
  %1595 = vmatpush2.bf16.msra.mxu0 0
  %1596 = vmatprep.subr.bf16.mxu0 0
  %1597 = vmatpush2.bf16.msra.mxu0 0
  %1598 = vmatprep.subr.bf16.mxu0 0
  %1599 = vmatpush2.bf16.msra.mxu0 0
  %1600 = vmatprep.mubr.bf16.mxu0 0
  %1601 = vmatmul.mubr.bf16.gmra.mxu0 %v1524
  %v1602 = vpop.f32.mrf.mxu0
  %v1603 = vadd.f32 0.0, %v1602
  %v1604 = vpop.f32.mrf.mxu0
  %v1605 = vadd.f32 0.0, %v1604
  %v1606 = vpop.f32.mrf.mxu0
  %v1607 = vadd.f32 0.0, %v1606
  %v1608 = vpop.f32.mrf.mxu0
  %v1609 = vadd.f32 0.0, %v1608
  %1610 = vdwg.mxu0
  %v1611 = vadd.f32 %v1516, %v1560
  %v1612 = vadd.f32 %v1517, %v1562
  %v1613 = vadd.f32 %v1518, %v1603
  %v1614 = vadd.f32 %v1519, %v1605
  %v1615 = vadd.f32 %v1520, %v1564
  %v1616 = vadd.f32 %v1521, %v1566
  %v1617 = vadd.f32 %v1522, %v1607
  %v1618 = vadd.f32 %v1523, %v1609
  %v1619 = vxor.u32 %v1611, 2147483648
  %v1620 = vxor.u32 %v1612, 2147483648
  %v1621 = vxor.u32 %v1613, 2147483648
  %v1622 = vxor.u32 %v1615, 2147483648
  %v1623 = vxor.u32 %v1616, 2147483648
  %v1624 = vxor.u32 %v1617, 2147483648
  %v1625 = vmul.f32 %v1619, 1.442695
  %v1626 = vpow.pop %v1625
  %v1627 = vmul.f32 %v1620, 1.442695
  %v1628 = vpow.pop %v1627
  %v1629 = vmul.f32 %v1621, 1.442695
  %v1630 = vpow.pop %v1629
  %v1631 = vmul.f32 %v1622, 1.442695
  %v1632 = vpow.pop %v1631
  %v1633 = vmul.f32 %v1623, 1.442695
  %v1634 = vpow.pop %v1633
  %v1635 = vmul.f32 %v1624, 1.442695
  %v1636 = vpow.pop %v1635
  %v1637 = vadd.f32 %v1626, 1.0
  %v1638 = vadd.f32 %v1628, 1.0
  %v1639 = vadd.f32 %v1630, 1.0
  %v1640 = vadd.f32 %v1632, 1.0
  %v1641 = vadd.f32 %v1634, 1.0
  %v1642 = vadd.f32 %v1636, 1.0
  %v1643 = vrcp.pop %v1637
  %v1644 = vmul.f32 1.0, %v1643
  %v1645 = vrcp.pop %v1638
  %v1646 = vmul.f32 1.0, %v1645
  %v1647 = vrcp.pop %v1639
  %v1648 = vmul.f32 1.0, %v1647
  %v1649 = vrcp.pop %v1640
  %v1650 = vmul.f32 1.0, %v1649
  %v1651 = vrcp.pop %v1641
  %v1652 = vmul.f32 1.0, %v1651
  %v1653 = vrcp.pop %v1642
  %v1654 = vmul.f32 1.0, %v1653
  %v1655 = vtanh.pop %v1614
  %v1656 = vtanh.pop %v1618
  %v1657 = vmul.f32 %v1646, %v1492
  %v1658 = vmul.f32 %v1652, %v1493
  %v1659 = vmul.f32 %v1644, %v1655
  %v1660 = vmul.f32 %v1650, %v1656
  %v1661 = vadd.f32 %v1657, %v1659
  %v1662 = vadd.f32 %v1658, %v1660
  %v1663 = vtanh.pop %v1661
  %v1664 = vtanh.pop %v1662
  %v1665 = vmul.f32 %v1648, %v1663
  %v1666 = vmul.f32 %v1654, %v1664
  %s1667 = scalar_lea.vmem [#allocation3], 64
  %1668 = vst [vmem:[%s1667] sm:$0xff] %v1665
  %1669 = vst [vmem:[%s1667 + $0x8] sm:$0xff] %v1666
  %s1670 = smul.u32 10, 4
  %s1671 = smul.addr %s1670, 4
  %s1672 = scalar_lea.vmem [#allocation2], %s1671
  %v1673 = vld [vmem:[%s1672] sm:$0xff]
  %v1674 = vld [vmem:[%s1672 + $0x8] sm:$0xff]
  %v1675 = vld [vmem:[%s1672 + $0x10] sm:$0xff]
  %v1676 = vld [vmem:[%s1672 + $0x18] sm:$0xff]
  %v1677 = vunpack.c.l.bf16 %v1673
  %v1678 = vunpack.c.h.bf16 %v1673
  %v1679 = vunpack.c.l.bf16 %v1674
  %v1680 = vunpack.c.h.bf16 %v1674
  %v1681 = vunpack.c.l.bf16 %v1675
  %v1682 = vunpack.c.h.bf16 %v1675
  %v1683 = vunpack.c.l.bf16 %v1676
  %v1684 = vunpack.c.h.bf16 %v1676
  %v1685 = vadd.f32 %v1677, %v665
  %v1686 = vadd.f32 %v1678, %v669
  %v1687 = vadd.f32 %v1679, %v673
  %v1688 = vadd.f32 %v1680, %v677
  %v1689 = vadd.f32 %v1681, %v665
  %v1690 = vadd.f32 %v1682, %v669
  %v1691 = vadd.f32 %v1683, %v673
  %v1692 = vadd.f32 %v1684, %v677
  %v1693 = vpack.c.bf16 %v1666, %v1665
  %1694 = vmatprep.subr.bf16.mxu0 %v815
  %1695 = vmatpush1.bf16.msra.mxu0 %v814
  %1696 = vmatprep.subr.bf16.mxu0 %v811
  %1697 = vmatpush1.bf16.msra.mxu0 %v810
  %1698 = vmatprep.subr.bf16.mxu0 %v807
  %1699 = vmatpush1.bf16.msra.mxu0 %v806
  %1700 = vmatprep.subr.bf16.mxu0 %v803
  %1701 = vmatpush1.bf16.msra.mxu0 %v802
  %1702 = vmatprep.subr.bf16.mxu0 %v799
  %1703 = vmatpush1.bf16.msra.mxu0 %v798
  %1704 = vmatprep.subr.bf16.mxu0 %v795
  %1705 = vmatpush1.bf16.msra.mxu0 %v794
  %1706 = vmatprep.subr.bf16.mxu0 %v791
  %1707 = vmatpush1.bf16.msra.mxu0 %v790
  %1708 = vmatprep.subr.bf16.mxu0 %v787
  %1709 = vmatpush1.bf16.msra.mxu0 %v786
  %1710 = vmatprep.subr.bf16.mxu0 0
  %1711 = vmatpush2.bf16.msra.mxu0 0
  %1712 = vmatprep.subr.bf16.mxu0 0
  %1713 = vmatpush2.bf16.msra.mxu0 0
  %1714 = vmatprep.subr.bf16.mxu0 0
  %1715 = vmatpush2.bf16.msra.mxu0 0
  %1716 = vmatprep.subr.bf16.mxu0 0
  %1717 = vmatpush2.bf16.msra.mxu0 0
  %1718 = vmatprep.subr.bf16.mxu0 0
  %1719 = vmatpush2.bf16.msra.mxu0 0
  %1720 = vmatprep.subr.bf16.mxu0 0
  %1721 = vmatpush2.bf16.msra.mxu0 0
  %1722 = vmatprep.subr.bf16.mxu0 0
  %1723 = vmatpush2.bf16.msra.mxu0 0
  %1724 = vmatprep.subr.bf16.mxu0 0
  %1725 = vmatpush2.bf16.msra.mxu0 0
  %1726 = vmatprep.mubr.bf16.mxu0 0
  %1727 = vmatmul.mubr.bf16.gmra.mxu0 %v1693
  %v1728 = vpop.f32.mrf.mxu0
  %v1729 = vadd.f32 0.0, %v1728
  %v1730 = vpop.f32.mrf.mxu0
  %v1731 = vadd.f32 0.0, %v1730
  %v1732 = vpop.f32.mrf.mxu0
  %v1733 = vadd.f32 0.0, %v1732
  %v1734 = vpop.f32.mrf.mxu0
  %v1735 = vadd.f32 0.0, %v1734
  %1736 = vdwg.mxu0
  %1737 = vmatprep.subr.bf16.mxu0 %v817
  %1738 = vmatpush1.bf16.msra.mxu0 %v816
  %1739 = vmatprep.subr.bf16.mxu0 %v813
  %1740 = vmatpush1.bf16.msra.mxu0 %v812
  %1741 = vmatprep.subr.bf16.mxu0 %v809
  %1742 = vmatpush1.bf16.msra.mxu0 %v808
  %1743 = vmatprep.subr.bf16.mxu0 %v805
  %1744 = vmatpush1.bf16.msra.mxu0 %v804
  %1745 = vmatprep.subr.bf16.mxu0 %v801
  %1746 = vmatpush1.bf16.msra.mxu0 %v800
  %1747 = vmatprep.subr.bf16.mxu0 %v797
  %1748 = vmatpush1.bf16.msra.mxu0 %v796
  %1749 = vmatprep.subr.bf16.mxu0 %v793
  %1750 = vmatpush1.bf16.msra.mxu0 %v792
  %1751 = vmatprep.subr.bf16.mxu0 %v789
  %1752 = vmatpush1.bf16.msra.mxu0 %v788
  %1753 = vmatprep.subr.bf16.mxu0 0
  %1754 = vmatpush2.bf16.msra.mxu0 0
  %1755 = vmatprep.subr.bf16.mxu0 0
  %1756 = vmatpush2.bf16.msra.mxu0 0
  %1757 = vmatprep.subr.bf16.mxu0 0
  %1758 = vmatpush2.bf16.msra.mxu0 0
  %1759 = vmatprep.subr.bf16.mxu0 0
  %1760 = vmatpush2.bf16.msra.mxu0 0
  %1761 = vmatprep.subr.bf16.mxu0 0
  %1762 = vmatpush2.bf16.msra.mxu0 0
  %1763 = vmatprep.subr.bf16.mxu0 0
  %1764 = vmatpush2.bf16.msra.mxu0 0
  %1765 = vmatprep.subr.bf16.mxu0 0
  %1766 = vmatpush2.bf16.msra.mxu0 0
  %1767 = vmatprep.subr.bf16.mxu0 0
  %1768 = vmatpush2.bf16.msra.mxu0 0
  %1769 = vmatprep.mubr.bf16.mxu0 0
  %1770 = vmatmul.mubr.bf16.gmra.mxu0 %v1693
  %v1771 = vpop.f32.mrf.mxu0
  %v1772 = vadd.f32 0.0, %v1771
  %v1773 = vpop.f32.mrf.mxu0
  %v1774 = vadd.f32 0.0, %v1773
  %v1775 = vpop.f32.mrf.mxu0
  %v1776 = vadd.f32 0.0, %v1775
  %v1777 = vpop.f32.mrf.mxu0
  %v1778 = vadd.f32 0.0, %v1777
  %1779 = vdwg.mxu0
  %v1780 = vadd.f32 %v1685, %v1729
  %v1781 = vadd.f32 %v1686, %v1731
  %v1782 = vadd.f32 %v1687, %v1772
  %v1783 = vadd.f32 %v1688, %v1774
  %v1784 = vadd.f32 %v1689, %v1733
  %v1785 = vadd.f32 %v1690, %v1735
  %v1786 = vadd.f32 %v1691, %v1776
  %v1787 = vadd.f32 %v1692, %v1778
  %v1788 = vxor.u32 %v1780, 2147483648
  %v1789 = vxor.u32 %v1781, 2147483648
  %v1790 = vxor.u32 %v1782, 2147483648
  %v1791 = vxor.u32 %v1784, 2147483648
  %v1792 = vxor.u32 %v1785, 2147483648
  %v1793 = vxor.u32 %v1786, 2147483648
  %v1794 = vmul.f32 %v1788, 1.442695
  %v1795 = vpow.pop %v1794
  %v1796 = vmul.f32 %v1789, 1.442695
  %v1797 = vpow.pop %v1796
  %v1798 = vmul.f32 %v1790, 1.442695
  %v1799 = vpow.pop %v1798
  %v1800 = vmul.f32 %v1791, 1.442695
  %v1801 = vpow.pop %v1800
  %v1802 = vmul.f32 %v1792, 1.442695
  %v1803 = vpow.pop %v1802
  %v1804 = vmul.f32 %v1793, 1.442695
  %v1805 = vpow.pop %v1804
  %v1806 = vadd.f32 %v1795, 1.0
  %v1807 = vadd.f32 %v1797, 1.0
  %v1808 = vadd.f32 %v1799, 1.0
  %v1809 = vadd.f32 %v1801, 1.0
  %v1810 = vadd.f32 %v1803, 1.0
  %v1811 = vadd.f32 %v1805, 1.0
  %v1812 = vrcp.pop %v1806
  %v1813 = vmul.f32 1.0, %v1812
  %v1814 = vrcp.pop %v1807
  %v1815 = vmul.f32 1.0, %v1814
  %v1816 = vrcp.pop %v1808
  %v1817 = vmul.f32 1.0, %v1816
  %v1818 = vrcp.pop %v1809
  %v1819 = vmul.f32 1.0, %v1818
  %v1820 = vrcp.pop %v1810
  %v1821 = vmul.f32 1.0, %v1820
  %v1822 = vrcp.pop %v1811
  %v1823 = vmul.f32 1.0, %v1822
  %v1824 = vtanh.pop %v1783
  %v1825 = vtanh.pop %v1787
  %v1826 = vmul.f32 %v1815, %v1661
  %v1827 = vmul.f32 %v1821, %v1662
  %v1828 = vmul.f32 %v1813, %v1824
  %v1829 = vmul.f32 %v1819, %v1825
  %v1830 = vadd.f32 %v1826, %v1828
  %v1831 = vadd.f32 %v1827, %v1829
  %v1832 = vtanh.pop %v1830
  %v1833 = vtanh.pop %v1831
  %v1834 = vmul.f32 %v1817, %v1832
  %v1835 = vmul.f32 %v1823, %v1833
  %s1836 = scalar_lea.vmem [#allocation3], 80
  %1837 = vst [vmem:[%s1836] sm:$0xff] %v1834
  %1838 = vst [vmem:[%s1836 + $0x8] sm:$0xff] %v1835
  %s1839 = smul.u32 12, 4
  %s1840 = smul.addr %s1839, 4
  %s1841 = scalar_lea.vmem [#allocation2], %s1840
  %v1842 = vld [vmem:[%s1841] sm:$0xff]
  %v1843 = vld [vmem:[%s1841 + $0x8] sm:$0xff]
  %v1844 = vld [vmem:[%s1841 + $0x10] sm:$0xff]
  %v1845 = vld [vmem:[%s1841 + $0x18] sm:$0xff]
  %v1846 = vunpack.c.l.bf16 %v1842
  %v1847 = vunpack.c.h.bf16 %v1842
  %v1848 = vunpack.c.l.bf16 %v1843
  %v1849 = vunpack.c.h.bf16 %v1843
  %v1850 = vunpack.c.l.bf16 %v1844
  %v1851 = vunpack.c.h.bf16 %v1844
  %v1852 = vunpack.c.l.bf16 %v1845
  %v1853 = vunpack.c.h.bf16 %v1845
  %v1854 = vadd.f32 %v1846, %v665
  %v1855 = vadd.f32 %v1847, %v669
  %v1856 = vadd.f32 %v1848, %v673
  %v1857 = vadd.f32 %v1849, %v677
  %v1858 = vadd.f32 %v1850, %v665
  %v1859 = vadd.f32 %v1851, %v669
  %v1860 = vadd.f32 %v1852, %v673
  %v1861 = vadd.f32 %v1853, %v677
  %v1862 = vpack.c.bf16 %v1835, %v1834
  %1863 = vmatprep.subr.bf16.mxu0 %v815
  %1864 = vmatpush1.bf16.msra.mxu0 %v814
  %1865 = vmatprep.subr.bf16.mxu0 %v811
  %1866 = vmatpush1.bf16.msra.mxu0 %v810
  %1867 = vmatprep.subr.bf16.mxu0 %v807
  %1868 = vmatpush1.bf16.msra.mxu0 %v806
  %1869 = vmatprep.subr.bf16.mxu0 %v803
  %1870 = vmatpush1.bf16.msra.mxu0 %v802
  %1871 = vmatprep.subr.bf16.mxu0 %v799
  %1872 = vmatpush1.bf16.msra.mxu0 %v798
  %1873 = vmatprep.subr.bf16.mxu0 %v795
  %1874 = vmatpush1.bf16.msra.mxu0 %v794
  %1875 = vmatprep.subr.bf16.mxu0 %v791
  %1876 = vmatpush1.bf16.msra.mxu0 %v790
  %1877 = vmatprep.subr.bf16.mxu0 %v787
  %1878 = vmatpush1.bf16.msra.mxu0 %v786
  %1879 = vmatprep.subr.bf16.mxu0 0
  %1880 = vmatpush2.bf16.msra.mxu0 0
  %1881 = vmatprep.subr.bf16.mxu0 0
  %1882 = vmatpush2.bf16.msra.mxu0 0
  %1883 = vmatprep.subr.bf16.mxu0 0
  %1884 = vmatpush2.bf16.msra.mxu0 0
  %1885 = vmatprep.subr.bf16.mxu0 0
  %1886 = vmatpush2.bf16.msra.mxu0 0
  %1887 = vmatprep.subr.bf16.mxu0 0
  %1888 = vmatpush2.bf16.msra.mxu0 0
  %1889 = vmatprep.subr.bf16.mxu0 0
  %1890 = vmatpush2.bf16.msra.mxu0 0
  %1891 = vmatprep.subr.bf16.mxu0 0
  %1892 = vmatpush2.bf16.msra.mxu0 0
  %1893 = vmatprep.subr.bf16.mxu0 0
  %1894 = vmatpush2.bf16.msra.mxu0 0
  %1895 = vmatprep.mubr.bf16.mxu0 0
  %1896 = vmatmul.mubr.bf16.gmra.mxu0 %v1862
  %v1897 = vpop.f32.mrf.mxu0
  %v1898 = vadd.f32 0.0, %v1897
  %v1899 = vpop.f32.mrf.mxu0
  %v1900 = vadd.f32 0.0, %v1899
  %v1901 = vpop.f32.mrf.mxu0
  %v1902 = vadd.f32 0.0, %v1901
  %v1903 = vpop.f32.mrf.mxu0
  %v1904 = vadd.f32 0.0, %v1903
  %1905 = vdwg.mxu0
  %1906 = vmatprep.subr.bf16.mxu0 %v817
  %1907 = vmatpush1.bf16.msra.mxu0 %v816
  %1908 = vmatprep.subr.bf16.mxu0 %v813
  %1909 = vmatpush1.bf16.msra.mxu0 %v812
  %1910 = vmatprep.subr.bf16.mxu0 %v809
  %1911 = vmatpush1.bf16.msra.mxu0 %v808
  %1912 = vmatprep.subr.bf16.mxu0 %v805
  %1913 = vmatpush1.bf16.msra.mxu0 %v804
  %1914 = vmatprep.subr.bf16.mxu0 %v801
  %1915 = vmatpush1.bf16.msra.mxu0 %v800
  %1916 = vmatprep.subr.bf16.mxu0 %v797
  %1917 = vmatpush1.bf16.msra.mxu0 %v796
  %1918 = vmatprep.subr.bf16.mxu0 %v793
  %1919 = vmatpush1.bf16.msra.mxu0 %v792
  %1920 = vmatprep.subr.bf16.mxu0 %v789
  %1921 = vmatpush1.bf16.msra.mxu0 %v788
  %1922 = vmatprep.subr.bf16.mxu0 0
  %1923 = vmatpush2.bf16.msra.mxu0 0
  %1924 = vmatprep.subr.bf16.mxu0 0
  %1925 = vmatpush2.bf16.msra.mxu0 0
  %1926 = vmatprep.subr.bf16.mxu0 0
  %1927 = vmatpush2.bf16.msra.mxu0 0
  %1928 = vmatprep.subr.bf16.mxu0 0
  %1929 = vmatpush2.bf16.msra.mxu0 0
  %1930 = vmatprep.subr.bf16.mxu0 0
  %1931 = vmatpush2.bf16.msra.mxu0 0
  %1932 = vmatprep.subr.bf16.mxu0 0
  %1933 = vmatpush2.bf16.msra.mxu0 0
  %1934 = vmatprep.subr.bf16.mxu0 0
  %1935 = vmatpush2.bf16.msra.mxu0 0
  %1936 = vmatprep.subr.bf16.mxu0 0
  %1937 = vmatpush2.bf16.msra.mxu0 0
  %1938 = vmatprep.mubr.bf16.mxu0 0
  %1939 = vmatmul.mubr.bf16.gmra.mxu0 %v1862
  %v1940 = vpop.f32.mrf.mxu0
  %v1941 = vadd.f32 0.0, %v1940
  %v1942 = vpop.f32.mrf.mxu0
  %v1943 = vadd.f32 0.0, %v1942
  %v1944 = vpop.f32.mrf.mxu0
  %v1945 = vadd.f32 0.0, %v1944
  %v1946 = vpop.f32.mrf.mxu0
  %v1947 = vadd.f32 0.0, %v1946
  %1948 = vdwg.mxu0
  %v1949 = vadd.f32 %v1854, %v1898
  %v1950 = vadd.f32 %v1855, %v1900
  %v1951 = vadd.f32 %v1856, %v1941
  %v1952 = vadd.f32 %v1857, %v1943
  %v1953 = vadd.f32 %v1858, %v1902
  %v1954 = vadd.f32 %v1859, %v1904
  %v1955 = vadd.f32 %v1860, %v1945
  %v1956 = vadd.f32 %v1861, %v1947
  %v1957 = vxor.u32 %v1949, 2147483648
  %v1958 = vxor.u32 %v1950, 2147483648
  %v1959 = vxor.u32 %v1951, 2147483648
  %v1960 = vxor.u32 %v1953, 2147483648
  %v1961 = vxor.u32 %v1954, 2147483648
  %v1962 = vxor.u32 %v1955, 2147483648
  %v1963 = vmul.f32 %v1957, 1.442695
  %v1964 = vpow.pop %v1963
  %v1965 = vmul.f32 %v1958, 1.442695
  %v1966 = vpow.pop %v1965
  %v1967 = vmul.f32 %v1959, 1.442695
  %v1968 = vpow.pop %v1967
  %v1969 = vmul.f32 %v1960, 1.442695
  %v1970 = vpow.pop %v1969
  %v1971 = vmul.f32 %v1961, 1.442695
  %v1972 = vpow.pop %v1971
  %v1973 = vmul.f32 %v1962, 1.442695
  %v1974 = vpow.pop %v1973
  %v1975 = vadd.f32 %v1964, 1.0
  %v1976 = vadd.f32 %v1966, 1.0
  %v1977 = vadd.f32 %v1968, 1.0
  %v1978 = vadd.f32 %v1970, 1.0
  %v1979 = vadd.f32 %v1972, 1.0
  %v1980 = vadd.f32 %v1974, 1.0
  %v1981 = vrcp.pop %v1975
  %v1982 = vmul.f32 1.0, %v1981
  %v1983 = vrcp.pop %v1976
  %v1984 = vmul.f32 1.0, %v1983
  %v1985 = vrcp.pop %v1977
  %v1986 = vmul.f32 1.0, %v1985
  %v1987 = vrcp.pop %v1978
  %v1988 = vmul.f32 1.0, %v1987
  %v1989 = vrcp.pop %v1979
  %v1990 = vmul.f32 1.0, %v1989
  %v1991 = vrcp.pop %v1980
  %v1992 = vmul.f32 1.0, %v1991
  %v1993 = vtanh.pop %v1952
  %v1994 = vtanh.pop %v1956
  %v1995 = vmul.f32 %v1984, %v1830
  %v1996 = vmul.f32 %v1990, %v1831
  %v1997 = vmul.f32 %v1982, %v1993
  %v1998 = vmul.f32 %v1988, %v1994
  %v1999 = vadd.f32 %v1995, %v1997
  %v2000 = vadd.f32 %v1996, %v1998
  %v2001 = vtanh.pop %v1999
  %v2002 = vtanh.pop %v2000
  %v2003 = vmul.f32 %v1986, %v2001
  %v2004 = vmul.f32 %v1992, %v2002
  %s2005 = scalar_lea.vmem [#allocation3], 96
  %2006 = vst [vmem:[%s2005] sm:$0xff] %v2003
  %2007 = vst [vmem:[%s2005 + $0x8] sm:$0xff] %v2004
  %s2008 = smul.u32 14, 4
  %s2009 = smul.addr %s2008, 4
  %s2010 = scalar_lea.vmem [#allocation2], %s2009
  %v2011 = vld [vmem:[%s2010] sm:$0xff]
  %v2012 = vld [vmem:[%s2010 + $0x8] sm:$0xff]
  %v2013 = vld [vmem:[%s2010 + $0x10] sm:$0xff]
  %v2014 = vld [vmem:[%s2010 + $0x18] sm:$0xff]
  %v2015 = vunpack.c.l.bf16 %v2011
  %v2016 = vunpack.c.h.bf16 %v2011
  %v2017 = vunpack.c.l.bf16 %v2012
  %v2018 = vunpack.c.h.bf16 %v2012
  %v2019 = vunpack.c.l.bf16 %v2013
  %v2020 = vunpack.c.h.bf16 %v2013
  %v2021 = vunpack.c.l.bf16 %v2014
  %v2022 = vunpack.c.h.bf16 %v2014
  %v2023 = vadd.f32 %v2015, %v665
  %v2024 = vadd.f32 %v2016, %v669
  %v2025 = vadd.f32 %v2017, %v673
  %v2026 = vadd.f32 %v2018, %v677
  %v2027 = vadd.f32 %v2019, %v665
  %v2028 = vadd.f32 %v2020, %v669
  %v2029 = vadd.f32 %v2021, %v673
  %v2030 = vadd.f32 %v2022, %v677
  %v2031 = vpack.c.bf16 %v2004, %v2003
  %2032 = vmatprep.subr.bf16.mxu0 %v815
  %2033 = vmatpush1.bf16.msra.mxu0 %v814
  %2034 = vmatprep.subr.bf16.mxu0 %v811
  %2035 = vmatpush1.bf16.msra.mxu0 %v810
  %2036 = vmatprep.subr.bf16.mxu0 %v807
  %2037 = vmatpush1.bf16.msra.mxu0 %v806
  %2038 = vmatprep.subr.bf16.mxu0 %v803
  %2039 = vmatpush1.bf16.msra.mxu0 %v802
  %2040 = vmatprep.subr.bf16.mxu0 %v799
  %2041 = vmatpush1.bf16.msra.mxu0 %v798
  %2042 = vmatprep.subr.bf16.mxu0 %v795
  %2043 = vmatpush1.bf16.msra.mxu0 %v794
  %2044 = vmatprep.subr.bf16.mxu0 %v791
  %2045 = vmatpush1.bf16.msra.mxu0 %v790
  %2046 = vmatprep.subr.bf16.mxu0 %v787
  %2047 = vmatpush1.bf16.msra.mxu0 %v786
  %2048 = vmatprep.subr.bf16.mxu0 0
  %2049 = vmatpush2.bf16.msra.mxu0 0
  %2050 = vmatprep.subr.bf16.mxu0 0
  %2051 = vmatpush2.bf16.msra.mxu0 0
  %2052 = vmatprep.subr.bf16.mxu0 0
  %2053 = vmatpush2.bf16.msra.mxu0 0
  %2054 = vmatprep.subr.bf16.mxu0 0
  %2055 = vmatpush2.bf16.msra.mxu0 0
  %2056 = vmatprep.subr.bf16.mxu0 0
  %2057 = vmatpush2.bf16.msra.mxu0 0
  %2058 = vmatprep.subr.bf16.mxu0 0
  %2059 = vmatpush2.bf16.msra.mxu0 0
  %2060 = vmatprep.subr.bf16.mxu0 0
  %2061 = vmatpush2.bf16.msra.mxu0 0
  %2062 = vmatprep.subr.bf16.mxu0 0
  %2063 = vmatpush2.bf16.msra.mxu0 0
  %2064 = vmatprep.mubr.bf16.mxu0 0
  %2065 = vmatmul.mubr.bf16.gmra.mxu0 %v2031
  %v2066 = vpop.f32.mrf.mxu0
  %v2067 = vadd.f32 0.0, %v2066
  %v2068 = vpop.f32.mrf.mxu0
  %v2069 = vadd.f32 0.0, %v2068
  %v2070 = vpop.f32.mrf.mxu0
  %v2071 = vadd.f32 0.0, %v2070
  %v2072 = vpop.f32.mrf.mxu0
  %v2073 = vadd.f32 0.0, %v2072
  %2074 = vdwg.mxu0
  %2075 = vmatprep.subr.bf16.mxu0 %v817
  %2076 = vmatpush1.bf16.msra.mxu0 %v816
  %2077 = vmatprep.subr.bf16.mxu0 %v813
  %2078 = vmatpush1.bf16.msra.mxu0 %v812
  %2079 = vmatprep.subr.bf16.mxu0 %v809
  %2080 = vmatpush1.bf16.msra.mxu0 %v808
  %2081 = vmatprep.subr.bf16.mxu0 %v805
  %2082 = vmatpush1.bf16.msra.mxu0 %v804
  %2083 = vmatprep.subr.bf16.mxu0 %v801
  %2084 = vmatpush1.bf16.msra.mxu0 %v800
  %2085 = vmatprep.subr.bf16.mxu0 %v797
  %2086 = vmatpush1.bf16.msra.mxu0 %v796
  %2087 = vmatprep.subr.bf16.mxu0 %v793
  %2088 = vmatpush1.bf16.msra.mxu0 %v792
  %2089 = vmatprep.subr.bf16.mxu0 %v789
  %2090 = vmatpush1.bf16.msra.mxu0 %v788
  %2091 = vmatprep.subr.bf16.mxu0 0
  %2092 = vmatpush2.bf16.msra.mxu0 0
  %2093 = vmatprep.subr.bf16.mxu0 0
  %2094 = vmatpush2.bf16.msra.mxu0 0
  %2095 = vmatprep.subr.bf16.mxu0 0
  %2096 = vmatpush2.bf16.msra.mxu0 0
  %2097 = vmatprep.subr.bf16.mxu0 0
  %2098 = vmatpush2.bf16.msra.mxu0 0
  %2099 = vmatprep.subr.bf16.mxu0 0
  %2100 = vmatpush2.bf16.msra.mxu0 0
  %2101 = vmatprep.subr.bf16.mxu0 0
  %2102 = vmatpush2.bf16.msra.mxu0 0
  %2103 = vmatprep.subr.bf16.mxu0 0
  %2104 = vmatpush2.bf16.msra.mxu0 0
  %2105 = vmatprep.subr.bf16.mxu0 0
  %2106 = vmatpush2.bf16.msra.mxu0 0
  %2107 = vmatprep.mubr.bf16.mxu0 0
  %2108 = vmatmul.mubr.bf16.gmra.mxu0 %v2031
  %v2109 = vpop.f32.mrf.mxu0
  %v2110 = vadd.f32 0.0, %v2109
  %v2111 = vpop.f32.mrf.mxu0
  %v2112 = vadd.f32 0.0, %v2111
  %v2113 = vpop.f32.mrf.mxu0
  %v2114 = vadd.f32 0.0, %v2113
  %v2115 = vpop.f32.mrf.mxu0
  %v2116 = vadd.f32 0.0, %v2115
  %2117 = vdwg.mxu0
  %v2118 = vadd.f32 %v2023, %v2067
  %v2119 = vadd.f32 %v2024, %v2069
  %v2120 = vadd.f32 %v2025, %v2110
  %v2121 = vadd.f32 %v2026, %v2112
  %v2122 = vadd.f32 %v2027, %v2071
  %v2123 = vadd.f32 %v2028, %v2073
  %v2124 = vadd.f32 %v2029, %v2114
  %v2125 = vadd.f32 %v2030, %v2116
  %v2126 = vxor.u32 %v2118, 2147483648
  %v2127 = vxor.u32 %v2119, 2147483648
  %v2128 = vxor.u32 %v2120, 2147483648
  %v2129 = vxor.u32 %v2122, 2147483648
  %v2130 = vxor.u32 %v2123, 2147483648
  %v2131 = vxor.u32 %v2124, 2147483648
  %v2132 = vmul.f32 %v2126, 1.442695
  %v2133 = vpow.pop %v2132
  %v2134 = vmul.f32 %v2127, 1.442695
  %v2135 = vpow.pop %v2134
  %v2136 = vmul.f32 %v2128, 1.442695
  %v2137 = vpow.pop %v2136
  %v2138 = vmul.f32 %v2129, 1.442695
  %v2139 = vpow.pop %v2138
  %v2140 = vmul.f32 %v2130, 1.442695
  %v2141 = vpow.pop %v2140
  %v2142 = vmul.f32 %v2131, 1.442695
  %v2143 = vpow.pop %v2142
  %v2144 = vadd.f32 %v2133, 1.0
  %v2145 = vadd.f32 %v2135, 1.0
  %v2146 = vadd.f32 %v2137, 1.0
  %v2147 = vadd.f32 %v2139, 1.0
  %v2148 = vadd.f32 %v2141, 1.0
  %v2149 = vadd.f32 %v2143, 1.0
  %v2150 = vrcp.pop %v2144
  %v2151 = vmul.f32 1.0, %v2150
  %v2152 = vrcp.pop %v2145
  %v2153 = vmul.f32 1.0, %v2152
  %v2154 = vrcp.pop %v2146
  %v2155 = vmul.f32 1.0, %v2154
  %v2156 = vrcp.pop %v2147
  %v2157 = vmul.f32 1.0, %v2156
  %v2158 = vrcp.pop %v2148
  %v2159 = vmul.f32 1.0, %v2158
  %v2160 = vrcp.pop %v2149
  %v2161 = vmul.f32 1.0, %v2160
  %v2162 = vtanh.pop %v2121
  %v2163 = vtanh.pop %v2125
  %v2164 = vmul.f32 %v2153, %v1999
  %v2165 = vmul.f32 %v2159, %v2000
  %v2166 = vmul.f32 %v2151, %v2162
  %v2167 = vmul.f32 %v2157, %v2163
  %v2168 = vadd.f32 %v2164, %v2166
  %v2169 = vadd.f32 %v2165, %v2167
  %v2170 = vtanh.pop %v2168
  %v2171 = vtanh.pop %v2169
  %v2172 = vmul.f32 %v2155, %v2170
  %v2173 = vmul.f32 %v2161, %v2171
  %s2174 = scalar_lea.vmem [#allocation3], 112
  %2175 = vst [vmem:[%s2174] sm:$0xff] %v2172
  %2176 = vst [vmem:[%s2174 + $0x8] sm:$0xff] %v2173
  %v2177 = vld [vmem:[#allocation3] sm:$0xff]
  %v2178 = vld [vmem:[#allocation3 + $0x8] sm:$0xff]
  %v2179 = vld [vmem:[#allocation3 + $0x10] sm:$0xff]
  %v2180 = vld [vmem:[#allocation3 + $0x18] sm:$0xff]
  %v2181 = vld [vmem:[#allocation3 + $0x20] sm:$0xff]
  %v2182 = vld [vmem:[#allocation3 + $0x28] sm:$0xff]
  %v2183 = vld [vmem:[#allocation3 + $0x30] sm:$0xff]
  %v2184 = vld [vmem:[#allocation3 + $0x38] sm:$0xff]
  %v2185 = vld [vmem:[#allocation3 + $0x40] sm:$0xff]
  %v2186 = vld [vmem:[#allocation3 + $0x48] sm:$0xff]
  %v2187 = vld [vmem:[#allocation3 + $0x50] sm:$0xff]
  %v2188 = vld [vmem:[#allocation3 + $0x58] sm:$0xff]
  %v2189 = vld [vmem:[#allocation3 + $0x60] sm:$0xff]
  %v2190 = vld [vmem:[#allocation3 + $0x68] sm:$0xff]
  %v2191 = vld [vmem:[#allocation3 + $0x70] sm:$0xff]
  %v2192 = vld [vmem:[#allocation3 + $0x78] sm:$0xff]
  %v2193 = vcombine.low %v2177, %v2181
  %v2194 = vcombine.high %v2177, %v2181
  %v2196 = vunpack.c.l.s4 1983009808
  %v2197 = vunpack.c.0.s8 %v2196
  %v2198 = vlaneseq
  %v2199 = vshrl.u32 %v2198, 7
  %v2200 = vsub.s32 %v2197, %v2199
  %v2201 = vrot.slane %v2193, %v2200
  %v2203 = vunpack.c.l.s4 1983009808
  %v2204 = vunpack.c.0.s8 %v2203
  %v2205 = vlaneseq
  %v2206 = vshrl.u32 %v2205, 7
  %v2207 = vsub.s32 %v2204, %v2206
  %v2208 = vrot.slane %v2194, %v2207
  %v2209 = vcombine.low %v2179, %v2183
  %v2210 = vcombine.high %v2179, %v2183
  %v2212 = vunpack.c.l.s4 1983009808
  %v2213 = vunpack.c.0.s8 %v2212
  %v2214 = vlaneseq
  %v2215 = vshrl.u32 %v2214, 7
  %v2216 = vsub.s32 %v2213, %v2215
  %v2217 = vrot.slane %v2209, %v2216
  %v2219 = vunpack.c.l.s4 1983009808
  %v2220 = vunpack.c.0.s8 %v2219
  %v2221 = vlaneseq
  %v2222 = vshrl.u32 %v2221, 7
  %v2223 = vsub.s32 %v2220, %v2222
  %v2224 = vrot.slane %v2210, %v2223
  %v2225 = vcombine.low %v2185, %v2189
  %v2226 = vcombine.high %v2185, %v2189
  %v2228 = vunpack.c.l.s4 1983009808
  %v2229 = vunpack.c.0.s8 %v2228
  %v2230 = vlaneseq
  %v2231 = vshrl.u32 %v2230, 7
  %v2232 = vsub.s32 %v2229, %v2231
  %v2233 = vrot.slane %v2225, %v2232
  %v2235 = vunpack.c.l.s4 1983009808
  %v2236 = vunpack.c.0.s8 %v2235
  %v2237 = vlaneseq
  %v2238 = vshrl.u32 %v2237, 7
  %v2239 = vsub.s32 %v2236, %v2238
  %v2240 = vrot.slane %v2226, %v2239
  %v2241 = vcombine.low %v2187, %v2191
  %v2242 = vcombine.high %v2187, %v2191
  %v2244 = vunpack.c.l.s4 1983009808
  %v2245 = vunpack.c.0.s8 %v2244
  %v2246 = vlaneseq
  %v2247 = vshrl.u32 %v2246, 7
  %v2248 = vsub.s32 %v2245, %v2247
  %v2249 = vrot.slane %v2241, %v2248
  %v2251 = vunpack.c.l.s4 1983009808
  %v2252 = vunpack.c.0.s8 %v2251
  %v2253 = vlaneseq
  %v2254 = vshrl.u32 %v2253, 7
  %v2255 = vsub.s32 %v2252, %v2254
  %v2256 = vrot.slane %v2242, %v2255
  %v2257 = vcombine.low %v2201, %v2217
  %v2258 = vcombine.high %v2201, %v2217
  %v2260 = vunpack.c.l.s4 1934713408
  %v2261 = vunpack.c.0.s8 %v2260
  %v2262 = vlaneseq
  %v2263 = vshrl.u32 %v2262, 7
  %v2264 = vsub.s32 %v2261, %v2263
  %v2265 = vrot.slane %v2257, %v2264
  %v2267 = vunpack.c.l.s4 1934713408
  %v2268 = vunpack.c.0.s8 %v2267
  %v2269 = vlaneseq
  %v2270 = vshrl.u32 %v2269, 7
  %v2271 = vsub.s32 %v2268, %v2270
  %v2272 = vrot.slane %v2258, %v2271
  %v2273 = vcombine.low %v2208, %v2224
  %v2274 = vcombine.high %v2208, %v2224
  %v2276 = vunpack.c.l.s4 1934713408
  %v2277 = vunpack.c.0.s8 %v2276
  %v2278 = vlaneseq
  %v2279 = vshrl.u32 %v2278, 7
  %v2280 = vsub.s32 %v2277, %v2279
  %v2281 = vrot.slane %v2273, %v2280
  %v2283 = vunpack.c.l.s4 1934713408
  %v2284 = vunpack.c.0.s8 %v2283
  %v2285 = vlaneseq
  %v2286 = vshrl.u32 %v2285, 7
  %v2287 = vsub.s32 %v2284, %v2286
  %v2288 = vrot.slane %v2274, %v2287
  %v2289 = vcombine.low %v2233, %v2249
  %v2290 = vcombine.high %v2233, %v2249
  %v2292 = vunpack.c.l.s4 1934713408
  %v2293 = vunpack.c.0.s8 %v2292
  %v2294 = vlaneseq
  %v2295 = vshrl.u32 %v2294, 7
  %v2296 = vsub.s32 %v2293, %v2295
  %v2297 = vrot.slane %v2289, %v2296
  %v2299 = vunpack.c.l.s4 1934713408
  %v2300 = vunpack.c.0.s8 %v2299
  %v2301 = vlaneseq
  %v2302 = vshrl.u32 %v2301, 7
  %v2303 = vsub.s32 %v2300, %v2302
  %v2304 = vrot.slane %v2290, %v2303
  %v2305 = vcombine.low %v2240, %v2256
  %v2306 = vcombine.high %v2240, %v2256
  %v2308 = vunpack.c.l.s4 1934713408
  %v2309 = vunpack.c.0.s8 %v2308
  %v2310 = vlaneseq
  %v2311 = vshrl.u32 %v2310, 7
  %v2312 = vsub.s32 %v2309, %v2311
  %v2313 = vrot.slane %v2305, %v2312
  %v2315 = vunpack.c.l.s4 1934713408
  %v2316 = vunpack.c.0.s8 %v2315
  %v2317 = vlaneseq
  %v2318 = vshrl.u32 %v2317, 7
  %v2319 = vsub.s32 %v2316, %v2318
  %v2320 = vrot.slane %v2306, %v2319
  %v2321 = vcombine.low %v2265, %v2297
  %v2322 = vcombine.high %v2265, %v2297
  %v2323 = vcombine.low %v2272, %v2304
  %v2324 = vcombine.high %v2272, %v2304
  %v2325 = vcombine.low %v2281, %v2313
  %v2326 = vcombine.high %v2281, %v2313
  %v2327 = vcombine.low %v2288, %v2320
  %v2328 = vcombine.high %v2288, %v2320
  %v2329 = vcombine.low %v2178, %v2182
  %v2330 = vcombine.high %v2178, %v2182
  %v2332 = vunpack.c.l.s4 1983009808
  %v2333 = vunpack.c.0.s8 %v2332
  %v2334 = vlaneseq
  %v2335 = vshrl.u32 %v2334, 7
  %v2336 = vsub.s32 %v2333, %v2335
  %v2337 = vrot.slane %v2329, %v2336
  %v2339 = vunpack.c.l.s4 1983009808
  %v2340 = vunpack.c.0.s8 %v2339
  %v2341 = vlaneseq
  %v2342 = vshrl.u32 %v2341, 7
  %v2343 = vsub.s32 %v2340, %v2342
  %v2344 = vrot.slane %v2330, %v2343
  %v2345 = vcombine.low %v2180, %v2184
  %v2346 = vcombine.high %v2180, %v2184
  %v2348 = vunpack.c.l.s4 1983009808
  %v2349 = vunpack.c.0.s8 %v2348
  %v2350 = vlaneseq
  %v2351 = vshrl.u32 %v2350, 7
  %v2352 = vsub.s32 %v2349, %v2351
  %v2353 = vrot.slane %v2345, %v2352
  %v2355 = vunpack.c.l.s4 1983009808
  %v2356 = vunpack.c.0.s8 %v2355
  %v2357 = vlaneseq
  %v2358 = vshrl.u32 %v2357, 7
  %v2359 = vsub.s32 %v2356, %v2358
  %v2360 = vrot.slane %v2346, %v2359
  %v2361 = vcombine.low %v2186, %v2190
  %v2362 = vcombine.high %v2186, %v2190
  %v2364 = vunpack.c.l.s4 1983009808
  %v2365 = vunpack.c.0.s8 %v2364
  %v2366 = vlaneseq
  %v2367 = vshrl.u32 %v2366, 7
  %v2368 = vsub.s32 %v2365, %v2367
  %v2369 = vrot.slane %v2361, %v2368
  %v2371 = vunpack.c.l.s4 1983009808
  %v2372 = vunpack.c.0.s8 %v2371
  %v2373 = vlaneseq
  %v2374 = vshrl.u32 %v2373, 7
  %v2375 = vsub.s32 %v2372, %v2374
  %v2376 = vrot.slane %v2362, %v2375
  %v2377 = vcombine.low %v2188, %v2192
  %v2378 = vcombine.high %v2188, %v2192
  %v2380 = vunpack.c.l.s4 1983009808
  %v2381 = vunpack.c.0.s8 %v2380
  %v2382 = vlaneseq
  %v2383 = vshrl.u32 %v2382, 7
  %v2384 = vsub.s32 %v2381, %v2383
  %v2385 = vrot.slane %v2377, %v2384
  %v2387 = vunpack.c.l.s4 1983009808
  %v2388 = vunpack.c.0.s8 %v2387
  %v2389 = vlaneseq
  %v2390 = vshrl.u32 %v2389, 7
  %v2391 = vsub.s32 %v2388, %v2390
  %v2392 = vrot.slane %v2378, %v2391
  %v2393 = vcombine.low %v2337, %v2353
  %v2394 = vcombine.high %v2337, %v2353
  %v2396 = vunpack.c.l.s4 1934713408
  %v2397 = vunpack.c.0.s8 %v2396
  %v2398 = vlaneseq
  %v2399 = vshrl.u32 %v2398, 7
  %v2400 = vsub.s32 %v2397, %v2399
  %v2401 = vrot.slane %v2393, %v2400
  %v2403 = vunpack.c.l.s4 1934713408
  %v2404 = vunpack.c.0.s8 %v2403
  %v2405 = vlaneseq
  %v2406 = vshrl.u32 %v2405, 7
  %v2407 = vsub.s32 %v2404, %v2406
  %v2408 = vrot.slane %v2394, %v2407
  %v2409 = vcombine.low %v2344, %v2360
  %v2410 = vcombine.high %v2344, %v2360
  %v2412 = vunpack.c.l.s4 1934713408
  %v2413 = vunpack.c.0.s8 %v2412
  %v2414 = vlaneseq
  %v2415 = vshrl.u32 %v2414, 7
  %v2416 = vsub.s32 %v2413, %v2415
  %v2417 = vrot.slane %v2409, %v2416
  %v2419 = vunpack.c.l.s4 1934713408
  %v2420 = vunpack.c.0.s8 %v2419
  %v2421 = vlaneseq
  %v2422 = vshrl.u32 %v2421, 7
  %v2423 = vsub.s32 %v2420, %v2422
  %v2424 = vrot.slane %v2410, %v2423
  %v2425 = vcombine.low %v2369, %v2385
  %v2426 = vcombine.high %v2369, %v2385
  %v2428 = vunpack.c.l.s4 1934713408
  %v2429 = vunpack.c.0.s8 %v2428
  %v2430 = vlaneseq
  %v2431 = vshrl.u32 %v2430, 7
  %v2432 = vsub.s32 %v2429, %v2431
  %v2433 = vrot.slane %v2425, %v2432
  %v2435 = vunpack.c.l.s4 1934713408
  %v2436 = vunpack.c.0.s8 %v2435
  %v2437 = vlaneseq
  %v2438 = vshrl.u32 %v2437, 7
  %v2439 = vsub.s32 %v2436, %v2438
  %v2440 = vrot.slane %v2426, %v2439
  %v2441 = vcombine.low %v2376, %v2392
  %v2442 = vcombine.high %v2376, %v2392
  %v2444 = vunpack.c.l.s4 1934713408
  %v2445 = vunpack.c.0.s8 %v2444
  %v2446 = vlaneseq
  %v2447 = vshrl.u32 %v2446, 7
  %v2448 = vsub.s32 %v2445, %v2447
  %v2449 = vrot.slane %v2441, %v2448
  %v2451 = vunpack.c.l.s4 1934713408
  %v2452 = vunpack.c.0.s8 %v2451
  %v2453 = vlaneseq
  %v2454 = vshrl.u32 %v2453, 7
  %v2455 = vsub.s32 %v2452, %v2454
  %v2456 = vrot.slane %v2442, %v2455
  %v2457 = vcombine.low %v2401, %v2433
  %v2458 = vcombine.high %v2401, %v2433
  %v2459 = vcombine.low %v2408, %v2440
  %v2460 = vcombine.high %v2408, %v2440
  %v2461 = vcombine.low %v2417, %v2449
  %v2462 = vcombine.high %v2417, %v2449
  %v2463 = vcombine.low %v2424, %v2456
  %v2464 = vcombine.high %v2424, %v2456
  %v2465 = vld [vmem:[%s4] sm:$0x1]
  %v2467 = vlaneseq
  %v2468 = vshrl.u32 %v2467, 7
  %v2469 = vsub.s32 0, %v2468
  %v2470 = vrot.slane %v2465, %v2469
  %v2472 = vmul.f32 %v2321, %v2470
  %v2473 = vmul.f32 %v2322, %v2470
  %v2474 = vmul.f32 %v2323, %v2470
  %v2475 = vmul.f32 %v2324, %v2470
  %v2476 = vmul.f32 %v2325, %v2470
  %v2477 = vmul.f32 %v2326, %v2470
  %v2478 = vmul.f32 %v2327, %v2470
  %v2479 = vmul.f32 %v2328, %v2470
  %v2480 = vmul.f32 %v2457, %v2470
  %v2481 = vmul.f32 %v2458, %v2470
  %v2482 = vmul.f32 %v2459, %v2470
  %v2483 = vmul.f32 %v2460, %v2470
  %v2484 = vmul.f32 %v2461, %v2470
  %v2485 = vmul.f32 %v2462, %v2470
  %v2486 = vmul.f32 %v2463, %v2470
  %v2487 = vmul.f32 %v2464, %v2470
  %2488 = vadd.xlane.f32.xlu0 %v2472
  %v2489 = vpop.xlane.xlu0 %2488
  %2490 = vadd.xlane.f32.xlu0 %v2473
  %v2491 = vpop.xlane.xlu0 %2490
  %2492 = vadd.xlane.f32.xlu0 %v2474
  %v2493 = vpop.xlane.xlu0 %2492
  %2494 = vadd.xlane.f32.xlu0 %v2475
  %v2495 = vpop.xlane.xlu0 %2494
  %2496 = vadd.xlane.f32.xlu0 %v2476
  %v2497 = vpop.xlane.xlu0 %2496
  %2498 = vadd.xlane.f32.xlu0 %v2477
  %v2499 = vpop.xlane.xlu0 %2498
  %2500 = vadd.xlane.f32.xlu0 %v2478
  %v2501 = vpop.xlane.xlu0 %2500
  %2502 = vadd.xlane.f32.xlu0 %v2479
  %v2503 = vpop.xlane.xlu0 %2502
  %2504 = vadd.xlane.f32.xlu0 %v2480
  %v2505 = vpop.xlane.xlu0 %2504
  %2506 = vadd.xlane.f32.xlu0 %v2481
  %v2507 = vpop.xlane.xlu0 %2506
  %2508 = vadd.xlane.f32.xlu0 %v2482
  %v2509 = vpop.xlane.xlu0 %2508
  %2510 = vadd.xlane.f32.xlu0 %v2483
  %v2511 = vpop.xlane.xlu0 %2510
  %2512 = vadd.xlane.f32.xlu0 %v2484
  %v2513 = vpop.xlane.xlu0 %2512
  %2514 = vadd.xlane.f32.xlu0 %v2485
  %v2515 = vpop.xlane.xlu0 %2514
  %2516 = vadd.xlane.f32.xlu0 %v2486
  %v2517 = vpop.xlane.xlu0 %2516
  %2518 = vadd.xlane.f32.xlu0 %v2487
  %v2519 = vpop.xlane.xlu0 %2518
  %v2520 = vld [vmem:[#allocation4] sm:$0x1]
  %v2522 = vlaneseq
  %v2523 = vshrl.u32 %v2522, 7
  %v2524 = vsub.s32 0, %v2523
  %v2525 = vrot.slane %v2520, %v2524
  %2526 = vset.pattern.permute.xlu0 0
  %2527 = vperm.xlu0 %2526, %v2525
  %v2528 = vpop.permute.xlu0 %2527
  %v2530 = vadd.f32 %v2489, %v2528
  %v2531 = vadd.f32 %v2491, %v2528
  %v2532 = vadd.f32 %v2493, %v2528
  %v2533 = vadd.f32 %v2495, %v2528
  %v2534 = vadd.f32 %v2497, %v2528
  %v2535 = vadd.f32 %v2499, %v2528
  %v2536 = vadd.f32 %v2501, %v2528
  %v2537 = vadd.f32 %v2503, %v2528
  %v2538 = vadd.f32 %v2505, %v2528
  %v2539 = vadd.f32 %v2507, %v2528
  %v2540 = vadd.f32 %v2509, %v2528
  %v2541 = vadd.f32 %v2511, %v2528
  %v2542 = vadd.f32 %v2513, %v2528
  %v2543 = vadd.f32 %v2515, %v2528
  %v2544 = vadd.f32 %v2517, %v2528
  %v2545 = vadd.f32 %v2519, %v2528
  %vm2546 = vcmp.ne.f32.partialorder %v2530, 0.0
  %vm2547 = vcmp.ne.f32.partialorder %v2531, 0.0
  %vm2548 = vcmp.ne.f32.partialorder %v2532, 0.0
  %vm2549 = vcmp.ne.f32.partialorder %v2533, 0.0
  %vm2550 = vcmp.ne.f32.partialorder %v2534, 0.0
  %vm2551 = vcmp.ne.f32.partialorder %v2535, 0.0
  %vm2552 = vcmp.ne.f32.partialorder %v2536, 0.0
  %vm2553 = vcmp.ne.f32.partialorder %v2537, 0.0
  %vm2554 = vcmp.ne.f32.partialorder %v2538, 0.0
  %vm2555 = vcmp.ne.f32.partialorder %v2539, 0.0
  %vm2556 = vcmp.ne.f32.partialorder %v2540, 0.0
  %vm2557 = vcmp.ne.f32.partialorder %v2541, 0.0
  %vm2558 = vcmp.ne.f32.partialorder %v2542, 0.0
  %vm2559 = vcmp.ne.f32.partialorder %v2543, 0.0
  %vm2560 = vcmp.ne.f32.partialorder %v2544, 0.0
  %vm2561 = vcmp.ne.f32.partialorder %v2545, 0.0
  %v2562 = vsel %vm2546, 1, 0
  %v2563 = vsel %vm2547, 1, 0
  %v2564 = vsel %vm2548, 1, 0
  %v2565 = vsel %vm2549, 1, 0
  %v2566 = vsel %vm2550, 1, 0
  %v2567 = vsel %vm2551, 1, 0
  %v2568 = vsel %vm2552, 1, 0
  %v2569 = vsel %vm2553, 1, 0
  %v2570 = vsel %vm2554, 1, 0
  %v2571 = vsel %vm2555, 1, 0
  %v2572 = vsel %vm2556, 1, 0
  %v2573 = vsel %vm2557, 1, 0
  %v2574 = vsel %vm2558, 1, 0
  %v2575 = vsel %vm2559, 1, 0
  %v2576 = vsel %vm2560, 1, 0
  %v2577 = vsel %vm2561, 1, 0
  %v2578 = vcvt.s32.f32 %v2562
  %v2579 = vcvt.s32.f32 %v2563
  %v2580 = vcvt.s32.f32 %v2564
  %v2581 = vcvt.s32.f32 %v2565
  %v2582 = vcvt.s32.f32 %v2566
  %v2583 = vcvt.s32.f32 %v2567
  %v2584 = vcvt.s32.f32 %v2568
  %v2585 = vcvt.s32.f32 %v2569
  %v2586 = vcvt.s32.f32 %v2570
  %v2587 = vcvt.s32.f32 %v2571
  %v2588 = vcvt.s32.f32 %v2572
  %v2589 = vcvt.s32.f32 %v2573
  %v2590 = vcvt.s32.f32 %v2574
  %v2591 = vcvt.s32.f32 %v2575
  %v2592 = vcvt.s32.f32 %v2576
  %v2593 = vcvt.s32.f32 %v2577
  %v2594 = vmul.f32 %v2530, %v2578
  %v2595 = vmul.f32 %v2531, %v2579
  %v2596 = vmul.f32 %v2532, %v2580
  %v2597 = vmul.f32 %v2533, %v2581
  %v2598 = vmul.f32 %v2534, %v2582
  %v2599 = vmul.f32 %v2535, %v2583
  %v2600 = vmul.f32 %v2536, %v2584
  %v2601 = vmul.f32 %v2537, %v2585
  %v2602 = vmul.f32 %v2538, %v2586
  %v2603 = vmul.f32 %v2539, %v2587
  %v2604 = vmul.f32 %v2540, %v2588
  %v2605 = vmul.f32 %v2541, %v2589
  %v2606 = vmul.f32 %v2542, %v2590
  %v2607 = vmul.f32 %v2543, %v2591
  %v2608 = vmul.f32 %v2544, %v2592
  %v2609 = vmul.f32 %v2545, %v2593
  %v2626 = vlaneseq
  %v2627 = vand.u32 %v2626, 127
  %v2628 = vlaneseq
  %v2629 = vshrl.u32 %v2628, 7
  %v2630 = vsub.s32 %v2627, %v2629
  %v2631 = vrot.slane %v2594, %v2630
  %v2632 = vlaneseq
  %v2633 = vshrl.u32 %v2632, 7
  %v2634 = vsub.s32 %v2627, %v2633
  %v2635 = vrot.slane %v2595, %v2634
  %v2636 = vlaneseq
  %v2637 = vshrl.u32 %v2636, 7
  %v2638 = vsub.s32 %v2627, %v2637
  %v2639 = vrot.slane %v2596, %v2638
  %v2640 = vlaneseq
  %v2641 = vshrl.u32 %v2640, 7
  %v2642 = vsub.s32 %v2627, %v2641
  %v2643 = vrot.slane %v2597, %v2642
  %v2644 = vlaneseq
  %v2645 = vshrl.u32 %v2644, 7
  %v2646 = vsub.s32 %v2627, %v2645
  %v2647 = vrot.slane %v2598, %v2646
  %v2648 = vlaneseq
  %v2649 = vshrl.u32 %v2648, 7
  %v2650 = vsub.s32 %v2627, %v2649
  %v2651 = vrot.slane %v2599, %v2650
  %v2652 = vlaneseq
  %v2653 = vshrl.u32 %v2652, 7
  %v2654 = vsub.s32 %v2627, %v2653
  %v2655 = vrot.slane %v2600, %v2654
  %v2656 = vlaneseq
  %v2657 = vshrl.u32 %v2656, 7
  %v2658 = vsub.s32 %v2627, %v2657
  %v2659 = vrot.slane %v2601, %v2658
  %v2660 = vlaneseq
  %v2661 = vshrl.u32 %v2660, 7
  %v2662 = vsub.s32 %v2627, %v2661
  %v2663 = vrot.slane %v2602, %v2662
  %v2664 = vlaneseq
  %v2665 = vshrl.u32 %v2664, 7
  %v2666 = vsub.s32 %v2627, %v2665
  %v2667 = vrot.slane %v2603, %v2666
  %v2668 = vlaneseq
  %v2669 = vshrl.u32 %v2668, 7
  %v2670 = vsub.s32 %v2627, %v2669
  %v2671 = vrot.slane %v2604, %v2670
  %v2672 = vlaneseq
  %v2673 = vshrl.u32 %v2672, 7
  %v2674 = vsub.s32 %v2627, %v2673
  %v2675 = vrot.slane %v2605, %v2674
  %v2676 = vlaneseq
  %v2677 = vshrl.u32 %v2676, 7
  %v2678 = vsub.s32 %v2627, %v2677
  %v2679 = vrot.slane %v2606, %v2678
  %v2680 = vlaneseq
  %v2681 = vshrl.u32 %v2680, 7
  %v2682 = vsub.s32 %v2627, %v2681
  %v2683 = vrot.slane %v2607, %v2682
  %v2684 = vlaneseq
  %v2685 = vshrl.u32 %v2684, 7
  %v2686 = vsub.s32 %v2627, %v2685
  %v2687 = vrot.slane %v2608, %v2686
  %v2688 = vlaneseq
  %v2689 = vshrl.u32 %v2688, 7
  %v2690 = vsub.s32 %v2627, %v2689
  %v2691 = vrot.slane %v2609, %v2690
  %vm2692 = vcmask 1041409
  %v2693 = vsel %vm2692, %v2635, %v2631
  %vm2694 = vcmask 1042434
  %v2695 = vsel %vm2694, %v2639, %v2693
  %vm2696 = vcmask 1043459
  %v2697 = vsel %vm2696, %v2643, %v2695
  %vm2698 = vcmask 1044484
  %v2699 = vsel %vm2698, %v2647, %v2697
  %vm2700 = vcmask 1045509
  %v2701 = vsel %vm2700, %v2651, %v2699
  %vm2702 = vcmask 1046534
  %v2703 = vsel %vm2702, %v2655, %v2701
  %vm2704 = vcmask 1047559
  %v2705 = vsel %vm2704, %v2659, %v2703
  %v2706 = vsel %vm2692, %v2667, %v2663
  %v2707 = vsel %vm2694, %v2671, %v2706
  %v2708 = vsel %vm2696, %v2675, %v2707
  %v2709 = vsel %vm2698, %v2679, %v2708
  %v2710 = vsel %vm2700, %v2683, %v2709
  %v2711 = vsel %vm2702, %v2687, %v2710
  %v2712 = vsel %vm2704, %v2691, %v2711
  %vm2715 = vcmask 64512
  %v2716 = vsel %vm2715, %v2705, -inf
  %2717 = vmax.xlane.f32.xlu0 %v2716
  %v2718 = vpop.xlane.xlu0 %2717
  %v2719 = vsel %vm2715, %v2712, -inf
  %2720 = vmax.xlane.f32.xlu0 %v2719
  %v2721 = vpop.xlane.xlu0 %2720
  %v2724 = vlaneseq
  %v2725 = vshrl.u32 %v2724, 7
  %v2726 = vsub.s32 0, %v2725
  %v2727 = vrot.slane %v2718, %v2726
  %v2728 = vlaneseq
  %v2729 = vshrl.u32 %v2728, 7
  %v2730 = vsub.s32 1, %v2729
  %v2731 = vrot.slane %v2718, %v2730
  %v2732 = vlaneseq
  %v2733 = vshrl.u32 %v2732, 7
  %v2734 = vsub.s32 2, %v2733
  %v2735 = vrot.slane %v2718, %v2734
  %v2736 = vlaneseq
  %v2737 = vshrl.u32 %v2736, 7
  %v2738 = vsub.s32 3, %v2737
  %v2739 = vrot.slane %v2718, %v2738
  %v2740 = vlaneseq
  %v2741 = vshrl.u32 %v2740, 7
  %v2742 = vsub.s32 4, %v2741
  %v2743 = vrot.slane %v2718, %v2742
  %v2744 = vlaneseq
  %v2745 = vshrl.u32 %v2744, 7
  %v2746 = vsub.s32 5, %v2745
  %v2747 = vrot.slane %v2718, %v2746
  %v2748 = vlaneseq
  %v2749 = vshrl.u32 %v2748, 7
  %v2750 = vsub.s32 6, %v2749
  %v2751 = vrot.slane %v2718, %v2750
  %v2752 = vlaneseq
  %v2753 = vshrl.u32 %v2752, 7
  %v2754 = vsub.s32 7, %v2753
  %v2755 = vrot.slane %v2718, %v2754
  %v2756 = vlaneseq
  %v2757 = vshrl.u32 %v2756, 7
  %v2758 = vsub.s32 0, %v2757
  %v2759 = vrot.slane %v2721, %v2758
  %v2760 = vlaneseq
  %v2761 = vshrl.u32 %v2760, 7
  %v2762 = vsub.s32 1, %v2761
  %v2763 = vrot.slane %v2721, %v2762
  %v2764 = vlaneseq
  %v2765 = vshrl.u32 %v2764, 7
  %v2766 = vsub.s32 2, %v2765
  %v2767 = vrot.slane %v2721, %v2766
  %v2768 = vlaneseq
  %v2769 = vshrl.u32 %v2768, 7
  %v2770 = vsub.s32 3, %v2769
  %v2771 = vrot.slane %v2721, %v2770
  %v2772 = vlaneseq
  %v2773 = vshrl.u32 %v2772, 7
  %v2774 = vsub.s32 4, %v2773
  %v2775 = vrot.slane %v2721, %v2774
  %v2776 = vlaneseq
  %v2777 = vshrl.u32 %v2776, 7
  %v2778 = vsub.s32 5, %v2777
  %v2779 = vrot.slane %v2721, %v2778
  %v2780 = vlaneseq
  %v2781 = vshrl.u32 %v2780, 7
  %v2782 = vsub.s32 6, %v2781
  %v2783 = vrot.slane %v2721, %v2782
  %v2784 = vlaneseq
  %v2785 = vshrl.u32 %v2784, 7
  %v2786 = vsub.s32 7, %v2785
  %v2787 = vrot.slane %v2721, %v2786
  %v2804 = vsub.f32 %v2594, %v2727
  %v2805 = vsub.f32 %v2595, %v2731
  %v2806 = vsub.f32 %v2596, %v2735
  %v2807 = vsub.f32 %v2597, %v2739
  %v2808 = vsub.f32 %v2598, %v2743
  %v2809 = vsub.f32 %v2599, %v2747
  %v2810 = vsub.f32 %v2600, %v2751
  %v2811 = vsub.f32 %v2601, %v2755
  %v2812 = vsub.f32 %v2602, %v2759
  %v2813 = vsub.f32 %v2603, %v2763
  %v2814 = vsub.f32 %v2604, %v2767
  %v2815 = vsub.f32 %v2605, %v2771
  %v2816 = vsub.f32 %v2606, %v2775
  %v2817 = vsub.f32 %v2607, %v2779
  %v2818 = vsub.f32 %v2608, %v2783
  %v2819 = vsub.f32 %v2609, %v2787
  %v2820 = vmul.f32 %v2804, 1.442695
  %v2821 = vpow.pop %v2820
  %v2822 = vmul.f32 %v2805, 1.442695
  %v2823 = vpow.pop %v2822
  %v2824 = vmul.f32 %v2806, 1.442695
  %v2825 = vpow.pop %v2824
  %v2826 = vmul.f32 %v2807, 1.442695
  %v2827 = vpow.pop %v2826
  %v2828 = vmul.f32 %v2808, 1.442695
  %v2829 = vpow.pop %v2828
  %v2830 = vmul.f32 %v2809, 1.442695
  %v2831 = vpow.pop %v2830
  %v2832 = vmul.f32 %v2810, 1.442695
  %v2833 = vpow.pop %v2832
  %v2834 = vmul.f32 %v2811, 1.442695
  %v2835 = vpow.pop %v2834
  %v2836 = vmul.f32 %v2812, 1.442695
  %v2837 = vpow.pop %v2836
  %v2838 = vmul.f32 %v2813, 1.442695
  %v2839 = vpow.pop %v2838
  %v2840 = vmul.f32 %v2814, 1.442695
  %v2841 = vpow.pop %v2840
  %v2842 = vmul.f32 %v2815, 1.442695
  %v2843 = vpow.pop %v2842
  %v2844 = vmul.f32 %v2816, 1.442695
  %v2845 = vpow.pop %v2844
  %v2846 = vmul.f32 %v2817, 1.442695
  %v2847 = vpow.pop %v2846
  %v2848 = vmul.f32 %v2818, 1.442695
  %v2849 = vpow.pop %v2848
  %v2850 = vmul.f32 %v2819, 1.442695
  %v2851 = vpow.pop %v2850
  %2868 = vset.pattern.permute.xlu0 0
  %2869 = vperm.xlu0 %2868, %v2821
  %v2870 = vpop.permute.xlu0 %2869
  %2871 = vset.pattern.permute.xlu0 0
  %2872 = vperm.xlu0 %2871, %v2823
  %v2873 = vpop.permute.xlu0 %2872
  %2874 = vset.pattern.permute.xlu0 0
  %2875 = vperm.xlu0 %2874, %v2825
  %v2876 = vpop.permute.xlu0 %2875
  %2877 = vset.pattern.permute.xlu0 0
  %2878 = vperm.xlu0 %2877, %v2827
  %v2879 = vpop.permute.xlu0 %2878
  %2880 = vset.pattern.permute.xlu0 0
  %2881 = vperm.xlu0 %2880, %v2829
  %v2882 = vpop.permute.xlu0 %2881
  %2883 = vset.pattern.permute.xlu0 0
  %2884 = vperm.xlu0 %2883, %v2831
  %v2885 = vpop.permute.xlu0 %2884
  %2886 = vset.pattern.permute.xlu0 0
  %2887 = vperm.xlu0 %2886, %v2833
  %v2888 = vpop.permute.xlu0 %2887
  %2889 = vset.pattern.permute.xlu0 0
  %2890 = vperm.xlu0 %2889, %v2835
  %v2891 = vpop.permute.xlu0 %2890
  %2892 = vset.pattern.permute.xlu0 0
  %2893 = vperm.xlu0 %2892, %v2837
  %v2894 = vpop.permute.xlu0 %2893
  %2895 = vset.pattern.permute.xlu0 0
  %2896 = vperm.xlu0 %2895, %v2839
  %v2897 = vpop.permute.xlu0 %2896
  %2898 = vset.pattern.permute.xlu0 0
  %2899 = vperm.xlu0 %2898, %v2841
  %v2900 = vpop.permute.xlu0 %2899
  %2901 = vset.pattern.permute.xlu0 0
  %2902 = vperm.xlu0 %2901, %v2843
  %v2903 = vpop.permute.xlu0 %2902
  %2904 = vset.pattern.permute.xlu0 0
  %2905 = vperm.xlu0 %2904, %v2845
  %v2906 = vpop.permute.xlu0 %2905
  %2907 = vset.pattern.permute.xlu0 0
  %2908 = vperm.xlu0 %2907, %v2847
  %v2909 = vpop.permute.xlu0 %2908
  %2910 = vset.pattern.permute.xlu0 0
  %2911 = vperm.xlu0 %2910, %v2849
  %v2912 = vpop.permute.xlu0 %2911
  %2913 = vset.pattern.permute.xlu0 0
  %2914 = vperm.xlu0 %2913, %v2851
  %v2915 = vpop.permute.xlu0 %2914
  %v2916 = vlaneseq
  %v2917 = vshrl.u32 %v2916, 7
  %v2918 = vsub.s32 %v2627, %v2917
  %v2919 = vrot.slane %v2870, %v2918
  %v2920 = vlaneseq
  %v2921 = vshrl.u32 %v2920, 7
  %v2922 = vsub.s32 %v2627, %v2921
  %v2923 = vrot.slane %v2873, %v2922
  %v2924 = vlaneseq
  %v2925 = vshrl.u32 %v2924, 7
  %v2926 = vsub.s32 %v2627, %v2925
  %v2927 = vrot.slane %v2876, %v2926
  %v2928 = vlaneseq
  %v2929 = vshrl.u32 %v2928, 7
  %v2930 = vsub.s32 %v2627, %v2929
  %v2931 = vrot.slane %v2879, %v2930
  %v2932 = vlaneseq
  %v2933 = vshrl.u32 %v2932, 7
  %v2934 = vsub.s32 %v2627, %v2933
  %v2935 = vrot.slane %v2882, %v2934
  %v2936 = vlaneseq
  %v2937 = vshrl.u32 %v2936, 7
  %v2938 = vsub.s32 %v2627, %v2937
  %v2939 = vrot.slane %v2885, %v2938
  %v2940 = vlaneseq
  %v2941 = vshrl.u32 %v2940, 7
  %v2942 = vsub.s32 %v2627, %v2941
  %v2943 = vrot.slane %v2888, %v2942
  %v2944 = vlaneseq
  %v2945 = vshrl.u32 %v2944, 7
  %v2946 = vsub.s32 %v2627, %v2945
  %v2947 = vrot.slane %v2891, %v2946
  %v2948 = vlaneseq
  %v2949 = vshrl.u32 %v2948, 7
  %v2950 = vsub.s32 %v2627, %v2949
  %v2951 = vrot.slane %v2894, %v2950
  %v2952 = vlaneseq
  %v2953 = vshrl.u32 %v2952, 7
  %v2954 = vsub.s32 %v2627, %v2953
  %v2955 = vrot.slane %v2897, %v2954
  %v2956 = vlaneseq
  %v2957 = vshrl.u32 %v2956, 7
  %v2958 = vsub.s32 %v2627, %v2957
  %v2959 = vrot.slane %v2900, %v2958
  %v2960 = vlaneseq
  %v2961 = vshrl.u32 %v2960, 7
  %v2962 = vsub.s32 %v2627, %v2961
  %v2963 = vrot.slane %v2903, %v2962
  %v2964 = vlaneseq
  %v2965 = vshrl.u32 %v2964, 7
  %v2966 = vsub.s32 %v2627, %v2965
  %v2967 = vrot.slane %v2906, %v2966
  %v2968 = vlaneseq
  %v2969 = vshrl.u32 %v2968, 7
  %v2970 = vsub.s32 %v2627, %v2969
  %v2971 = vrot.slane %v2909, %v2970
  %v2972 = vlaneseq
  %v2973 = vshrl.u32 %v2972, 7
  %v2974 = vsub.s32 %v2627, %v2973
  %v2975 = vrot.slane %v2912, %v2974
  %v2976 = vlaneseq
  %v2977 = vshrl.u32 %v2976, 7
  %v2978 = vsub.s32 %v2627, %v2977
  %v2979 = vrot.slane %v2915, %v2978
  %v2980 = vsel %vm2692, %v2923, %v2919
  %v2981 = vsel %vm2694, %v2927, %v2980
  %v2982 = vsel %vm2696, %v2931, %v2981
  %v2983 = vsel %vm2698, %v2935, %v2982
  %v2984 = vsel %vm2700, %v2939, %v2983
  %v2985 = vsel %vm2702, %v2943, %v2984
  %v2986 = vsel %vm2704, %v2947, %v2985
  %v2987 = vsel %vm2692, %v2955, %v2951
  %v2988 = vsel %vm2694, %v2959, %v2987
  %v2989 = vsel %vm2696, %v2963, %v2988
  %v2990 = vsel %vm2698, %v2967, %v2989
  %v2991 = vsel %vm2700, %v2971, %v2990
  %v2992 = vsel %vm2702, %v2975, %v2991
  %v2993 = vsel %vm2704, %v2979, %v2992
  %v2996 = vsel %vm2715, %v2986, 0.0
  %2997 = vadd.xlane.f32.xlu0 %v2996
  %v2998 = vpop.xlane.xlu0 %2997
  %v2999 = vsel %vm2715, %v2993, 0.0
  %3000 = vadd.xlane.f32.xlu0 %v2999
  %v3001 = vpop.xlane.xlu0 %3000
  %v3004 = vlaneseq
  %v3005 = vshrl.u32 %v3004, 7
  %v3006 = vsub.s32 0, %v3005
  %v3007 = vrot.slane %v2998, %v3006
  %v3008 = vlaneseq
  %v3009 = vshrl.u32 %v3008, 7
  %v3010 = vsub.s32 1, %v3009
  %v3011 = vrot.slane %v2998, %v3010
  %v3012 = vlaneseq
  %v3013 = vshrl.u32 %v3012, 7
  %v3014 = vsub.s32 2, %v3013
  %v3015 = vrot.slane %v2998, %v3014
  %v3016 = vlaneseq
  %v3017 = vshrl.u32 %v3016, 7
  %v3018 = vsub.s32 3, %v3017
  %v3019 = vrot.slane %v2998, %v3018
  %v3020 = vlaneseq
  %v3021 = vshrl.u32 %v3020, 7
  %v3022 = vsub.s32 4, %v3021
  %v3023 = vrot.slane %v2998, %v3022
  %v3024 = vlaneseq
  %v3025 = vshrl.u32 %v3024, 7
  %v3026 = vsub.s32 5, %v3025
  %v3027 = vrot.slane %v2998, %v3026
  %v3028 = vlaneseq
  %v3029 = vshrl.u32 %v3028, 7
  %v3030 = vsub.s32 6, %v3029
  %v3031 = vrot.slane %v2998, %v3030
  %v3032 = vlaneseq
  %v3033 = vshrl.u32 %v3032, 7
  %v3034 = vsub.s32 7, %v3033
  %v3035 = vrot.slane %v2998, %v3034
  %v3036 = vlaneseq
  %v3037 = vshrl.u32 %v3036, 7
  %v3038 = vsub.s32 0, %v3037
  %v3039 = vrot.slane %v3001, %v3038
  %v3040 = vlaneseq
  %v3041 = vshrl.u32 %v3040, 7
  %v3042 = vsub.s32 1, %v3041
  %v3043 = vrot.slane %v3001, %v3042
  %v3044 = vlaneseq
  %v3045 = vshrl.u32 %v3044, 7
  %v3046 = vsub.s32 2, %v3045
  %v3047 = vrot.slane %v3001, %v3046
  %v3048 = vlaneseq
  %v3049 = vshrl.u32 %v3048, 7
  %v3050 = vsub.s32 3, %v3049
  %v3051 = vrot.slane %v3001, %v3050
  %v3052 = vlaneseq
  %v3053 = vshrl.u32 %v3052, 7
  %v3054 = vsub.s32 4, %v3053
  %v3055 = vrot.slane %v3001, %v3054
  %v3056 = vlaneseq
  %v3057 = vshrl.u32 %v3056, 7
  %v3058 = vsub.s32 5, %v3057
  %v3059 = vrot.slane %v3001, %v3058
  %v3060 = vlaneseq
  %v3061 = vshrl.u32 %v3060, 7
  %v3062 = vsub.s32 6, %v3061
  %v3063 = vrot.slane %v3001, %v3062
  %v3064 = vlaneseq
  %v3065 = vshrl.u32 %v3064, 7
  %v3066 = vsub.s32 7, %v3065
  %v3067 = vrot.slane %v3001, %v3066
  %v3084 = vrcp.pop %v3007
  %v3085 = vmul.f32 %v2821, %v3084
  %v3086 = vrcp.pop %v3011
  %v3087 = vmul.f32 %v2823, %v3086
  %v3088 = vrcp.pop %v3015
  %v3089 = vmul.f32 %v2825, %v3088
  %v3090 = vrcp.pop %v3019
  %v3091 = vmul.f32 %v2827, %v3090
  %v3092 = vrcp.pop %v3023
  %v3093 = vmul.f32 %v2829, %v3092
  %v3094 = vrcp.pop %v3027
  %v3095 = vmul.f32 %v2831, %v3094
  %v3096 = vrcp.pop %v3031
  %v3097 = vmul.f32 %v2833, %v3096
  %v3098 = vrcp.pop %v3035
  %v3099 = vmul.f32 %v2835, %v3098
  %v3100 = vrcp.pop %v3039
  %v3101 = vmul.f32 %v2837, %v3100
  %v3102 = vrcp.pop %v3043
  %v3103 = vmul.f32 %v2839, %v3102
  %v3104 = vrcp.pop %v3047
  %v3105 = vmul.f32 %v2841, %v3104
  %v3106 = vrcp.pop %v3051
  %v3107 = vmul.f32 %v2843, %v3106
  %v3108 = vrcp.pop %v3055
  %v3109 = vmul.f32 %v2845, %v3108
  %v3110 = vrcp.pop %v3059
  %v3111 = vmul.f32 %v2847, %v3110
  %v3112 = vrcp.pop %v3063
  %v3113 = vmul.f32 %v2849, %v3112
  %v3114 = vrcp.pop %v3067
  %v3115 = vmul.f32 %v2851, %v3114
  %v3116 = vmul.f32 %v3085, %v2578
  %v3117 = vmul.f32 %v3087, %v2579
  %v3118 = vmul.f32 %v3089, %v2580
  %v3119 = vmul.f32 %v3091, %v2581
  %v3120 = vmul.f32 %v3093, %v2582
  %v3121 = vmul.f32 %v3095, %v2583
  %v3122 = vmul.f32 %v3097, %v2584
  %v3123 = vmul.f32 %v3099, %v2585
  %v3124 = vmul.f32 %v3101, %v2586
  %v3125 = vmul.f32 %v3103, %v2587
  %v3126 = vmul.f32 %v3105, %v2588
  %v3127 = vmul.f32 %v3107, %v2589
  %v3128 = vmul.f32 %v3109, %v2590
  %v3129 = vmul.f32 %v3111, %v2591
  %v3130 = vmul.f32 %v3113, %v2592
  %v3131 = vmul.f32 %v3115, %v2593
  %3148 = vset.pattern.permute.xlu0 0
  %3149 = vperm.xlu0 %3148, %v3116
  %v3150 = vpop.permute.xlu0 %3149
  %3151 = vset.pattern.permute.xlu0 0
  %3152 = vperm.xlu0 %3151, %v3117
  %v3153 = vpop.permute.xlu0 %3152
  %3154 = vset.pattern.permute.xlu0 0
  %3155 = vperm.xlu0 %3154, %v3118
  %v3156 = vpop.permute.xlu0 %3155
  %3157 = vset.pattern.permute.xlu0 0
  %3158 = vperm.xlu0 %3157, %v3119
  %v3159 = vpop.permute.xlu0 %3158
  %3160 = vset.pattern.permute.xlu0 0
  %3161 = vperm.xlu0 %3160, %v3120
  %v3162 = vpop.permute.xlu0 %3161
  %3163 = vset.pattern.permute.xlu0 0
  %3164 = vperm.xlu0 %3163, %v3121
  %v3165 = vpop.permute.xlu0 %3164
  %3166 = vset.pattern.permute.xlu0 0
  %3167 = vperm.xlu0 %3166, %v3122
  %v3168 = vpop.permute.xlu0 %3167
  %3169 = vset.pattern.permute.xlu0 0
  %3170 = vperm.xlu0 %3169, %v3123
  %v3171 = vpop.permute.xlu0 %3170
  %3172 = vset.pattern.permute.xlu0 0
  %3173 = vperm.xlu0 %3172, %v3124
  %v3174 = vpop.permute.xlu0 %3173
  %3175 = vset.pattern.permute.xlu0 0
  %3176 = vperm.xlu0 %3175, %v3125
  %v3177 = vpop.permute.xlu0 %3176
  %3178 = vset.pattern.permute.xlu0 0
  %3179 = vperm.xlu0 %3178, %v3126
  %v3180 = vpop.permute.xlu0 %3179
  %3181 = vset.pattern.permute.xlu0 0
  %3182 = vperm.xlu0 %3181, %v3127
  %v3183 = vpop.permute.xlu0 %3182
  %3184 = vset.pattern.permute.xlu0 0
  %3185 = vperm.xlu0 %3184, %v3128
  %v3186 = vpop.permute.xlu0 %3185
  %3187 = vset.pattern.permute.xlu0 0
  %3188 = vperm.xlu0 %3187, %v3129
  %v3189 = vpop.permute.xlu0 %3188
  %3190 = vset.pattern.permute.xlu0 0
  %3191 = vperm.xlu0 %3190, %v3130
  %v3192 = vpop.permute.xlu0 %3191
  %3193 = vset.pattern.permute.xlu0 0
  %3194 = vperm.xlu0 %3193, %v3131
  %v3195 = vpop.permute.xlu0 %3194
  %v3196 = vlaneseq
  %v3197 = vshrl.u32 %v3196, 7
  %v3198 = vsub.s32 %v2627, %v3197
  %v3199 = vrot.slane %v3150, %v3198
  %v3200 = vlaneseq
  %v3201 = vshrl.u32 %v3200, 7
  %v3202 = vsub.s32 %v2627, %v3201
  %v3203 = vrot.slane %v3153, %v3202
  %v3204 = vlaneseq
  %v3205 = vshrl.u32 %v3204, 7
  %v3206 = vsub.s32 %v2627, %v3205
  %v3207 = vrot.slane %v3156, %v3206
  %v3208 = vlaneseq
  %v3209 = vshrl.u32 %v3208, 7
  %v3210 = vsub.s32 %v2627, %v3209
  %v3211 = vrot.slane %v3159, %v3210
  %v3212 = vlaneseq
  %v3213 = vshrl.u32 %v3212, 7
  %v3214 = vsub.s32 %v2627, %v3213
  %v3215 = vrot.slane %v3162, %v3214
  %v3216 = vlaneseq
  %v3217 = vshrl.u32 %v3216, 7
  %v3218 = vsub.s32 %v2627, %v3217
  %v3219 = vrot.slane %v3165, %v3218
  %v3220 = vlaneseq
  %v3221 = vshrl.u32 %v3220, 7
  %v3222 = vsub.s32 %v2627, %v3221
  %v3223 = vrot.slane %v3168, %v3222
  %v3224 = vlaneseq
  %v3225 = vshrl.u32 %v3224, 7
  %v3226 = vsub.s32 %v2627, %v3225
  %v3227 = vrot.slane %v3171, %v3226
  %v3228 = vlaneseq
  %v3229 = vshrl.u32 %v3228, 7
  %v3230 = vsub.s32 %v2627, %v3229
  %v3231 = vrot.slane %v3174, %v3230
  %v3232 = vlaneseq
  %v3233 = vshrl.u32 %v3232, 7
  %v3234 = vsub.s32 %v2627, %v3233
  %v3235 = vrot.slane %v3177, %v3234
  %v3236 = vlaneseq
  %v3237 = vshrl.u32 %v3236, 7
  %v3238 = vsub.s32 %v2627, %v3237
  %v3239 = vrot.slane %v3180, %v3238
  %v3240 = vlaneseq
  %v3241 = vshrl.u32 %v3240, 7
  %v3242 = vsub.s32 %v2627, %v3241
  %v3243 = vrot.slane %v3183, %v3242
  %v3244 = vlaneseq
  %v3245 = vshrl.u32 %v3244, 7
  %v3246 = vsub.s32 %v2627, %v3245
  %v3247 = vrot.slane %v3186, %v3246
  %v3248 = vlaneseq
  %v3249 = vshrl.u32 %v3248, 7
  %v3250 = vsub.s32 %v2627, %v3249
  %v3251 = vrot.slane %v3189, %v3250
  %v3252 = vlaneseq
  %v3253 = vshrl.u32 %v3252, 7
  %v3254 = vsub.s32 %v2627, %v3253
  %v3255 = vrot.slane %v3192, %v3254
  %v3256 = vlaneseq
  %v3257 = vshrl.u32 %v3256, 7
  %v3258 = vsub.s32 %v2627, %v3257
  %v3259 = vrot.slane %v3195, %v3258
  %v3260 = vsel %vm2692, %v3203, %v3199
  %v3261 = vsel %vm2694, %v3207, %v3260
  %v3262 = vsel %vm2696, %v3211, %v3261
  %v3263 = vsel %vm2698, %v3215, %v3262
  %v3264 = vsel %vm2700, %v3219, %v3263
  %v3265 = vsel %vm2702, %v3223, %v3264
  %v3266 = vsel %vm2704, %v3227, %v3265
  %v3267 = vsel %vm2692, %v3235, %v3231
  %v3268 = vsel %vm2694, %v3239, %v3267
  %v3269 = vsel %vm2696, %v3243, %v3268
  %v3270 = vsel %vm2698, %v3247, %v3269
  %v3271 = vsel %vm2700, %v3251, %v3270
  %v3272 = vsel %vm2702, %v3255, %v3271
  %v3273 = vsel %vm2704, %v3259, %v3272
  %v3276 = vsel %vm2715, %v3266, 0.0
  %3277 = vadd.xlane.f32.xlu0 %v3276
  %v3278 = vpop.xlane.xlu0 %3277
  %v3279 = vsel %vm2715, %v3273, 0.0
  %3280 = vadd.xlane.f32.xlu0 %v3279
  %v3281 = vpop.xlane.xlu0 %3280
  %v3282 = vadd.f32 %v3278, 1e-13
  %v3283 = vadd.f32 %v3281, 1e-13
  %v3286 = vlaneseq
  %v3287 = vshrl.u32 %v3286, 7
  %v3288 = vsub.s32 0, %v3287
  %v3289 = vrot.slane %v3282, %v3288
  %v3290 = vlaneseq
  %v3291 = vshrl.u32 %v3290, 7
  %v3292 = vsub.s32 1, %v3291
  %v3293 = vrot.slane %v3282, %v3292
  %v3294 = vlaneseq
  %v3295 = vshrl.u32 %v3294, 7
  %v3296 = vsub.s32 2, %v3295
  %v3297 = vrot.slane %v3282, %v3296
  %v3298 = vlaneseq
  %v3299 = vshrl.u32 %v3298, 7
  %v3300 = vsub.s32 3, %v3299
  %v3301 = vrot.slane %v3282, %v3300
  %v3302 = vlaneseq
  %v3303 = vshrl.u32 %v3302, 7
  %v3304 = vsub.s32 4, %v3303
  %v3305 = vrot.slane %v3282, %v3304
  %v3306 = vlaneseq
  %v3307 = vshrl.u32 %v3306, 7
  %v3308 = vsub.s32 5, %v3307
  %v3309 = vrot.slane %v3282, %v3308
  %v3310 = vlaneseq
  %v3311 = vshrl.u32 %v3310, 7
  %v3312 = vsub.s32 6, %v3311
  %v3313 = vrot.slane %v3282, %v3312
  %v3314 = vlaneseq
  %v3315 = vshrl.u32 %v3314, 7
  %v3316 = vsub.s32 7, %v3315
  %v3317 = vrot.slane %v3282, %v3316
  %v3318 = vlaneseq
  %v3319 = vshrl.u32 %v3318, 7
  %v3320 = vsub.s32 0, %v3319
  %v3321 = vrot.slane %v3283, %v3320
  %v3322 = vlaneseq
  %v3323 = vshrl.u32 %v3322, 7
  %v3324 = vsub.s32 1, %v3323
  %v3325 = vrot.slane %v3283, %v3324
  %v3326 = vlaneseq
  %v3327 = vshrl.u32 %v3326, 7
  %v3328 = vsub.s32 2, %v3327
  %v3329 = vrot.slane %v3283, %v3328
  %v3330 = vlaneseq
  %v3331 = vshrl.u32 %v3330, 7
  %v3332 = vsub.s32 3, %v3331
  %v3333 = vrot.slane %v3283, %v3332
  %v3334 = vlaneseq
  %v3335 = vshrl.u32 %v3334, 7
  %v3336 = vsub.s32 4, %v3335
  %v3337 = vrot.slane %v3283, %v3336
  %v3338 = vlaneseq
  %v3339 = vshrl.u32 %v3338, 7
  %v3340 = vsub.s32 5, %v3339
  %v3341 = vrot.slane %v3283, %v3340
  %v3342 = vlaneseq
  %v3343 = vshrl.u32 %v3342, 7
  %v3344 = vsub.s32 6, %v3343
  %v3345 = vrot.slane %v3283, %v3344
  %v3346 = vlaneseq
  %v3347 = vshrl.u32 %v3346, 7
  %v3348 = vsub.s32 7, %v3347
  %v3349 = vrot.slane %v3283, %v3348
  %v3366 = vrcp.pop %v3289
  %v3367 = vmul.f32 %v3116, %v3366
  %v3368 = vrcp.pop %v3293
  %v3369 = vmul.f32 %v3117, %v3368
  %v3370 = vrcp.pop %v3297
  %v3371 = vmul.f32 %v3118, %v3370
  %v3372 = vrcp.pop %v3301
  %v3373 = vmul.f32 %v3119, %v3372
  %v3374 = vrcp.pop %v3305
  %v3375 = vmul.f32 %v3120, %v3374
  %v3376 = vrcp.pop %v3309
  %v3377 = vmul.f32 %v3121, %v3376
  %v3378 = vrcp.pop %v3313
  %v3379 = vmul.f32 %v3122, %v3378
  %v3380 = vrcp.pop %v3317
  %v3381 = vmul.f32 %v3123, %v3380
  %v3382 = vrcp.pop %v3321
  %v3383 = vmul.f32 %v3124, %v3382
  %v3384 = vrcp.pop %v3325
  %v3385 = vmul.f32 %v3125, %v3384
  %v3386 = vrcp.pop %v3329
  %v3387 = vmul.f32 %v3126, %v3386
  %v3388 = vrcp.pop %v3333
  %v3389 = vmul.f32 %v3127, %v3388
  %v3390 = vrcp.pop %v3337
  %v3391 = vmul.f32 %v3128, %v3390
  %v3392 = vrcp.pop %v3341
  %v3393 = vmul.f32 %v3129, %v3392
  %v3394 = vrcp.pop %v3345
  %v3395 = vmul.f32 %v3130, %v3394
  %v3396 = vrcp.pop %v3349
  %v3397 = vmul.f32 %v3131, %v3396
  %3399 = vset.pattern.permute.xlu0 0
  %3400 = vperm.xlu0 %3399, %v3367
  %v3401 = vpop.permute.xlu0 %3400
  %3404 = vset.pattern.permute.xlu0 0
  %3405 = vperm.xlu0 %3404, %v3369
  %v3406 = vpop.permute.xlu0 %3405
  %3409 = vset.pattern.permute.xlu0 0
  %3410 = vperm.xlu0 %3409, %v3371
  %v3411 = vpop.permute.xlu0 %3410
  %3414 = vset.pattern.permute.xlu0 0
  %3415 = vperm.xlu0 %3414, %v3373
  %v3416 = vpop.permute.xlu0 %3415
  %3419 = vset.pattern.permute.xlu0 0
  %3420 = vperm.xlu0 %3419, %v3375
  %v3421 = vpop.permute.xlu0 %3420
  %3424 = vset.pattern.permute.xlu0 0
  %3425 = vperm.xlu0 %3424, %v3377
  %v3426 = vpop.permute.xlu0 %3425
  %3429 = vset.pattern.permute.xlu0 0
  %3430 = vperm.xlu0 %3429, %v3379
  %v3431 = vpop.permute.xlu0 %3430
  %3434 = vset.pattern.permute.xlu0 0
  %3435 = vperm.xlu0 %3434, %v3381
  %v3436 = vpop.permute.xlu0 %3435
  %3439 = vset.pattern.permute.xlu0 0
  %3440 = vperm.xlu0 %3439, %v3383
  %v3441 = vpop.permute.xlu0 %3440
  %3444 = vset.pattern.permute.xlu0 0
  %3445 = vperm.xlu0 %3444, %v3385
  %v3446 = vpop.permute.xlu0 %3445
  %3449 = vset.pattern.permute.xlu0 0
  %3450 = vperm.xlu0 %3449, %v3387
  %v3451 = vpop.permute.xlu0 %3450
  %3454 = vset.pattern.permute.xlu0 0
  %3455 = vperm.xlu0 %3454, %v3389
  %v3456 = vpop.permute.xlu0 %3455
  %3459 = vset.pattern.permute.xlu0 0
  %3460 = vperm.xlu0 %3459, %v3391
  %v3461 = vpop.permute.xlu0 %3460
  %3464 = vset.pattern.permute.xlu0 0
  %3465 = vperm.xlu0 %3464, %v3393
  %v3466 = vpop.permute.xlu0 %3465
  %3469 = vset.pattern.permute.xlu0 0
  %3470 = vperm.xlu0 %3469, %v3395
  %v3471 = vpop.permute.xlu0 %3470
  %3474 = vset.pattern.permute.xlu0 0
  %3475 = vperm.xlu0 %3474, %v3397
  %v3476 = vpop.permute.xlu0 %3475
  %v3478 = vmul.f32 %v3401, %v2321
  %v3479 = vmul.f32 %v3406, %v2322
  %v3480 = vmul.f32 %v3411, %v2323
  %v3481 = vmul.f32 %v3416, %v2324
  %v3482 = vmul.f32 %v3421, %v2325
  %v3483 = vmul.f32 %v3426, %v2326
  %v3484 = vmul.f32 %v3431, %v2327
  %v3485 = vmul.f32 %v3436, %v2328
  %v3486 = vmul.f32 %v3441, %v2457
  %v3487 = vmul.f32 %v3446, %v2458
  %v3488 = vmul.f32 %v3451, %v2459
  %v3489 = vmul.f32 %v3456, %v2460
  %v3490 = vmul.f32 %v3461, %v2461
  %v3491 = vmul.f32 %v3466, %v2462
  %v3492 = vmul.f32 %v3471, %v2463
  %v3493 = vmul.f32 %v3476, %v2464
  %v3494 = vrot.slane %v3478, 4
  %v3495 = vadd.f32 %v3478, %v3494
  %v3496 = vrot.slane %v3495, 2
  %v3497 = vadd.f32 %v3495, %v3496
  %v3498 = vrot.slane %v3497, 1
  %v3499 = vadd.f32 %v3497, %v3498
  %v3500 = vrot.slane %v3479, 4
  %v3501 = vadd.f32 %v3479, %v3500
  %v3502 = vrot.slane %v3501, 2
  %v3503 = vadd.f32 %v3501, %v3502
  %v3504 = vrot.slane %v3503, 1
  %v3505 = vadd.f32 %v3503, %v3504
  %v3506 = vrot.slane %v3480, 4
  %v3507 = vadd.f32 %v3480, %v3506
  %v3508 = vrot.slane %v3507, 2
  %v3509 = vadd.f32 %v3507, %v3508
  %v3510 = vrot.slane %v3509, 1
  %v3511 = vadd.f32 %v3509, %v3510
  %v3512 = vrot.slane %v3481, 4
  %v3513 = vadd.f32 %v3481, %v3512
  %v3514 = vrot.slane %v3513, 2
  %v3515 = vadd.f32 %v3513, %v3514
  %v3516 = vrot.slane %v3515, 1
  %v3517 = vadd.f32 %v3515, %v3516
  %v3518 = vrot.slane %v3482, 4
  %v3519 = vadd.f32 %v3482, %v3518
  %v3520 = vrot.slane %v3519, 2
  %v3521 = vadd.f32 %v3519, %v3520
  %v3522 = vrot.slane %v3521, 1
  %v3523 = vadd.f32 %v3521, %v3522
  %v3524 = vrot.slane %v3483, 4
  %v3525 = vadd.f32 %v3483, %v3524
  %v3526 = vrot.slane %v3525, 2
  %v3527 = vadd.f32 %v3525, %v3526
  %v3528 = vrot.slane %v3527, 1
  %v3529 = vadd.f32 %v3527, %v3528
  %v3530 = vrot.slane %v3484, 4
  %v3531 = vadd.f32 %v3484, %v3530
  %v3532 = vrot.slane %v3531, 2
  %v3533 = vadd.f32 %v3531, %v3532
  %v3534 = vrot.slane %v3533, 1
  %v3535 = vadd.f32 %v3533, %v3534
  %v3536 = vrot.slane %v3485, 4
  %v3537 = vadd.f32 %v3485, %v3536
  %v3538 = vrot.slane %v3537, 2
  %v3539 = vadd.f32 %v3537, %v3538
  %v3540 = vrot.slane %v3539, 1
  %v3541 = vadd.f32 %v3539, %v3540
  %v3542 = vrot.slane %v3486, 4
  %v3543 = vadd.f32 %v3486, %v3542
  %v3544 = vrot.slane %v3543, 2
  %v3545 = vadd.f32 %v3543, %v3544
  %v3546 = vrot.slane %v3545, 1
  %v3547 = vadd.f32 %v3545, %v3546
  %v3548 = vrot.slane %v3487, 4
  %v3549 = vadd.f32 %v3487, %v3548
  %v3550 = vrot.slane %v3549, 2
  %v3551 = vadd.f32 %v3549, %v3550
  %v3552 = vrot.slane %v3551, 1
  %v3553 = vadd.f32 %v3551, %v3552
  %v3554 = vrot.slane %v3488, 4
  %v3555 = vadd.f32 %v3488, %v3554
  %v3556 = vrot.slane %v3555, 2
  %v3557 = vadd.f32 %v3555, %v3556
  %v3558 = vrot.slane %v3557, 1
  %v3559 = vadd.f32 %v3557, %v3558
  %v3560 = vrot.slane %v3489, 4
  %v3561 = vadd.f32 %v3489, %v3560
  %v3562 = vrot.slane %v3561, 2
  %v3563 = vadd.f32 %v3561, %v3562
  %v3564 = vrot.slane %v3563, 1
  %v3565 = vadd.f32 %v3563, %v3564
  %v3566 = vrot.slane %v3490, 4
  %v3567 = vadd.f32 %v3490, %v3566
  %v3568 = vrot.slane %v3567, 2
  %v3569 = vadd.f32 %v3567, %v3568
  %v3570 = vrot.slane %v3569, 1
  %v3571 = vadd.f32 %v3569, %v3570
  %v3572 = vrot.slane %v3491, 4
  %v3573 = vadd.f32 %v3491, %v3572
  %v3574 = vrot.slane %v3573, 2
  %v3575 = vadd.f32 %v3573, %v3574
  %v3576 = vrot.slane %v3575, 1
  %v3577 = vadd.f32 %v3575, %v3576
  %v3578 = vrot.slane %v3492, 4
  %v3579 = vadd.f32 %v3492, %v3578
  %v3580 = vrot.slane %v3579, 2
  %v3581 = vadd.f32 %v3579, %v3580
  %v3582 = vrot.slane %v3581, 1
  %v3583 = vadd.f32 %v3581, %v3582
  %v3584 = vrot.slane %v3493, 4
  %v3585 = vadd.f32 %v3493, %v3584
  %v3586 = vrot.slane %v3585, 2
  %v3587 = vadd.f32 %v3585, %v3586
  %v3588 = vrot.slane %v3587, 1
  %v3589 = vadd.f32 %v3587, %v3588
  %v3590 = vlaneseq
  %v3591 = vshrl.u32 %v3590, 7
  %vm3592 = vcmp.eq.s32.totalorder %v3591, %v2627
  %v3593 = vsel %vm3592, 1, 0
  %v3594 = vcvt.s32.f32 %v3593
  %v3595 = vlaneseq
  %v3596 = vshrl.u32 %v3595, 7
  %v3597 = vsub.s32 %v2627, %v3596
  %v3598 = vrot.slane %v3401, %v3597
  %v3599 = vlaneseq
  %v3600 = vshrl.u32 %v3599, 7
  %v3601 = vsub.s32 %v2627, %v3600
  %v3602 = vrot.slane %v3406, %v3601
  %v3603 = vlaneseq
  %v3604 = vshrl.u32 %v3603, 7
  %v3605 = vsub.s32 %v2627, %v3604
  %v3606 = vrot.slane %v3411, %v3605
  %v3607 = vlaneseq
  %v3608 = vshrl.u32 %v3607, 7
  %v3609 = vsub.s32 %v2627, %v3608
  %v3610 = vrot.slane %v3416, %v3609
  %v3611 = vlaneseq
  %v3612 = vshrl.u32 %v3611, 7
  %v3613 = vsub.s32 %v2627, %v3612
  %v3614 = vrot.slane %v3421, %v3613
  %v3615 = vlaneseq
  %v3616 = vshrl.u32 %v3615, 7
  %v3617 = vsub.s32 %v2627, %v3616
  %v3618 = vrot.slane %v3426, %v3617
  %v3619 = vlaneseq
  %v3620 = vshrl.u32 %v3619, 7
  %v3621 = vsub.s32 %v2627, %v3620
  %v3622 = vrot.slane %v3431, %v3621
  %v3623 = vlaneseq
  %v3624 = vshrl.u32 %v3623, 7
  %v3625 = vsub.s32 %v2627, %v3624
  %v3626 = vrot.slane %v3436, %v3625
  %v3627 = vlaneseq
  %v3628 = vshrl.u32 %v3627, 7
  %v3629 = vsub.s32 %v2627, %v3628
  %v3630 = vrot.slane %v3441, %v3629
  %v3631 = vlaneseq
  %v3632 = vshrl.u32 %v3631, 7
  %v3633 = vsub.s32 %v2627, %v3632
  %v3634 = vrot.slane %v3446, %v3633
  %v3635 = vlaneseq
  %v3636 = vshrl.u32 %v3635, 7
  %v3637 = vsub.s32 %v2627, %v3636
  %v3638 = vrot.slane %v3451, %v3637
  %v3639 = vlaneseq
  %v3640 = vshrl.u32 %v3639, 7
  %v3641 = vsub.s32 %v2627, %v3640
  %v3642 = vrot.slane %v3456, %v3641
  %v3643 = vlaneseq
  %v3644 = vshrl.u32 %v3643, 7
  %v3645 = vsub.s32 %v2627, %v3644
  %v3646 = vrot.slane %v3461, %v3645
  %v3647 = vlaneseq
  %v3648 = vshrl.u32 %v3647, 7
  %v3649 = vsub.s32 %v2627, %v3648
  %v3650 = vrot.slane %v3466, %v3649
  %v3651 = vlaneseq
  %v3652 = vshrl.u32 %v3651, 7
  %v3653 = vsub.s32 %v2627, %v3652
  %v3654 = vrot.slane %v3471, %v3653
  %v3655 = vlaneseq
  %v3656 = vshrl.u32 %v3655, 7
  %v3657 = vsub.s32 %v2627, %v3656
  %v3658 = vrot.slane %v3476, %v3657
  %v3659 = vsel %vm2692, %v3602, %v3598
  %v3660 = vsel %vm2694, %v3606, %v3659
  %v3661 = vsel %vm2696, %v3610, %v3660
  %v3662 = vsel %vm2698, %v3614, %v3661
  %v3663 = vsel %vm2700, %v3618, %v3662
  %v3664 = vsel %vm2702, %v3622, %v3663
  %v3665 = vsel %vm2704, %v3626, %v3664
  %v3666 = vsel %vm2692, %v3634, %v3630
  %v3667 = vsel %vm2694, %v3638, %v3666
  %v3668 = vsel %vm2696, %v3642, %v3667
  %v3669 = vsel %vm2698, %v3646, %v3668
  %v3670 = vsel %vm2700, %v3650, %v3669
  %v3671 = vsel %vm2702, %v3654, %v3670
  %v3672 = vsel %vm2704, %v3658, %v3671
  %v3673 = vsel %vm2715, %v3665, 0
  %v3675 = vsel %vm2715, %v3672, 0
  %3677 = vmatprep.subr.mxu0 0.0
  %3678 = vmatpush1.msra.mxu0 0.0
  %3679 = vmatprep.subr.mxu0 0.0
  %3680 = vmatpush1.msra.mxu0 0.0
  %3681 = vmatprep.subr.mxu0 0.0
  %3682 = vmatpush1.msra.mxu0 0.0
  %3683 = vmatprep.subr.mxu0 0.0
  %3684 = vmatpush1.msra.mxu0 0.0
  %3685 = vmatprep.subr.mxu0 0.0
  %3686 = vmatpush1.msra.mxu0 0.0
  %3687 = vmatprep.subr.mxu0 0.0
  %3688 = vmatpush1.msra.mxu0 0.0
  %3689 = vmatprep.subr.mxu0 0.0
  %3690 = vmatpush1.msra.mxu0 0.0
  %3691 = vmatprep.subr.mxu0 0.0
  %3692 = vmatpush1.msra.mxu0 0.0
  %3693 = vmatprep.subr.mxu0 0.0
  %3694 = vmatpush1.msra.mxu0 0.0
  %3695 = vmatprep.subr.mxu0 0.0
  %3696 = vmatpush1.msra.mxu0 0.0
  %3697 = vmatprep.subr.mxu0 0.0
  %3698 = vmatpush1.msra.mxu0 0.0
  %3699 = vmatprep.subr.mxu0 0.0
  %3700 = vmatpush1.msra.mxu0 0.0
  %3701 = vmatprep.subr.mxu0 0.0
  %3702 = vmatpush1.msra.mxu0 0.0
  %3703 = vmatprep.subr.mxu0 0.0
  %3704 = vmatpush1.msra.mxu0 0.0
  %3705 = vmatprep.subr.mxu0 0.0
  %3706 = vmatpush1.msra.mxu0 0.0
  %3707 = vmatprep.subr.mxu0 0.0
  %3708 = vmatpush1.msra.mxu0 %v3594
  %3709 = vmatprep.subr.mxu0 0.0
  %3710 = vmatpush2.msra.mxu0 0.0
  %3711 = vmatprep.subr.mxu0 0.0
  %3712 = vmatpush2.msra.mxu0 0.0
  %3713 = vmatprep.subr.mxu0 0.0
  %3714 = vmatpush2.msra.mxu0 0.0
  %3715 = vmatprep.subr.mxu0 0.0
  %3716 = vmatpush2.msra.mxu0 0.0
  %3717 = vmatprep.subr.mxu0 0.0
  %3718 = vmatpush2.msra.mxu0 0.0
  %3719 = vmatprep.subr.mxu0 0.0
  %3720 = vmatpush2.msra.mxu0 0.0
  %3721 = vmatprep.subr.mxu0 0.0
  %3722 = vmatpush2.msra.mxu0 0.0
  %3723 = vmatprep.subr.mxu0 0.0
  %3724 = vmatpush2.msra.mxu0 0.0
  %3725 = vmatprep.subr.mxu0 0.0
  %3726 = vmatpush2.msra.mxu0 0.0
  %3727 = vmatprep.subr.mxu0 0.0
  %3728 = vmatpush2.msra.mxu0 0.0
  %3729 = vmatprep.subr.mxu0 0.0
  %3730 = vmatpush2.msra.mxu0 0.0
  %3731 = vmatprep.subr.mxu0 0.0
  %3732 = vmatpush2.msra.mxu0 0.0
  %3733 = vmatprep.subr.mxu0 0.0
  %3734 = vmatpush2.msra.mxu0 0.0
  %3735 = vmatprep.subr.mxu0 0.0
  %3736 = vmatpush2.msra.mxu0 0.0
  %3737 = vmatprep.subr.mxu0 0.0
  %3738 = vmatpush2.msra.mxu0 0.0
  %3739 = vmatprep.subr.mxu0 0.0
  %3740 = vmatpush2.msra.mxu0 0.0
  %3741 = vmatprep.mubr.f32.mxu0 0.0
  %3742 = vmatmul.mubr.f32.gmra.mxu0 %v3673
  %v3743 = vpop.f32.mrf.mxu0
  %v3744 = vadd.f32 0.0, %v3743
  %v3745 = vpop.f32.mrf.mxu0
  %3746 = vmatprep.mubr.f32.mxu0 0.0
  %3747 = vmatmul.mubr.f32.gmra.mxu0 %v3675
  %v3748 = vpop.f32.mrf.mxu0
  %v3749 = vadd.f32 0.0, %v3748
  %v3750 = vpop.f32.mrf.mxu0
  %3751 = vdwg.mxu0
  %3752 = vst [vmem:[%s9] sm:$0xff] %v3744
  %3753 = vst [vmem:[%s9 + $0x8] sm:$0xff] %v3749
  %v3754 = vld [vmem:[%s6] sm:$0xff]
  %v3755 = vld [vmem:[%s6 + $0x8] sm:$0xff]
  %v3756 = vld [vmem:[%s6 + $0x10] sm:$0xff]
  %v3757 = vld [vmem:[%s6 + $0x18] sm:$0xff]
  %v3758 = vld [vmem:[%s6 + $0x20] sm:$0xff]
  %v3759 = vld [vmem:[%s6 + $0x28] sm:$0xff]
  %v3760 = vld [vmem:[%s6 + $0x30] sm:$0xff]
  %v3761 = vld [vmem:[%s6 + $0x38] sm:$0xff]
  %v3762 = vld [vmem:[%s6 + $0x40] sm:$0xff]
  %v3763 = vld [vmem:[%s6 + $0x48] sm:$0xff]
  %v3764 = vld [vmem:[%s6 + $0x50] sm:$0xff]
  %v3765 = vld [vmem:[%s6 + $0x58] sm:$0xff]
  %v3766 = vld [vmem:[%s6 + $0x60] sm:$0xff]
  %v3767 = vld [vmem:[%s6 + $0x68] sm:$0xff]
  %v3768 = vld [vmem:[%s6 + $0x70] sm:$0xff]
  %v3769 = vld [vmem:[%s6 + $0x78] sm:$0xff]
  %v3770 = vld [vmem:[%s7] sm:$0x1]
  %v3772 = vlaneseq
  %v3773 = vshrl.u32 %v3772, 7
  %v3774 = vsub.s32 0, %v3773
  %v3775 = vrot.slane %v3770, %v3774
  %v3793 = vsel %vm2692, %v3505, %v3499
  %v3794 = vsel %vm2694, %v3511, %v3793
  %v3795 = vsel %vm2696, %v3517, %v3794
  %v3796 = vsel %vm2698, %v3523, %v3795
  %v3797 = vsel %vm2700, %v3529, %v3796
  %v3798 = vsel %vm2702, %v3535, %v3797
  %v3799 = vsel %vm2704, %v3541, %v3798
  %v3800 = vsel %vm2692, %v3553, %v3547
  %v3801 = vsel %vm2694, %v3559, %v3800
  %v3802 = vsel %vm2696, %v3565, %v3801
  %v3803 = vsel %vm2698, %v3571, %v3802
  %v3804 = vsel %vm2700, %v3577, %v3803
  %v3805 = vsel %vm2702, %v3583, %v3804
  %v3806 = vsel %vm2704, %v3589, %v3805
  %3809 = vmatprep.subr.mxu0 0.0
  %3810 = vmatpush1.msra.mxu0 %v3769
  %3811 = vmatprep.subr.mxu0 0.0
  %3812 = vmatpush1.msra.mxu0 %v3768
  %3813 = vmatprep.subr.mxu0 0.0
  %3814 = vmatpush1.msra.mxu0 %v3767
  %3815 = vmatprep.subr.mxu0 0.0
  %3816 = vmatpush1.msra.mxu0 %v3766
  %3817 = vmatprep.subr.mxu0 0.0
  %3818 = vmatpush1.msra.mxu0 %v3765
  %3819 = vmatprep.subr.mxu0 0.0
  %3820 = vmatpush1.msra.mxu0 %v3764
  %3821 = vmatprep.subr.mxu0 0.0
  %3822 = vmatpush1.msra.mxu0 %v3763
  %3823 = vmatprep.subr.mxu0 0.0
  %3824 = vmatpush1.msra.mxu0 %v3762
  %3825 = vmatprep.subr.mxu0 0.0
  %3826 = vmatpush1.msra.mxu0 %v3761
  %3827 = vmatprep.subr.mxu0 0.0
  %3828 = vmatpush1.msra.mxu0 %v3760
  %3829 = vmatprep.subr.mxu0 0.0
  %3830 = vmatpush1.msra.mxu0 %v3759
  %3831 = vmatprep.subr.mxu0 0.0
  %3832 = vmatpush1.msra.mxu0 %v3758
  %3833 = vmatprep.subr.mxu0 0.0
  %3834 = vmatpush1.msra.mxu0 %v3757
  %3835 = vmatprep.subr.mxu0 0.0
  %3836 = vmatpush1.msra.mxu0 %v3756
  %3837 = vmatprep.subr.mxu0 0.0
  %3838 = vmatpush1.msra.mxu0 %v3755
  %3839 = vmatprep.subr.mxu0 0.0
  %3840 = vmatpush1.msra.mxu0 %v3754
  %3841 = vmatprep.subr.mxu0 0.0
  %3842 = vmatpush2.msra.mxu0 0.0
  %3843 = vmatprep.subr.mxu0 0.0
  %3844 = vmatpush2.msra.mxu0 0.0
  %3845 = vmatprep.subr.mxu0 0.0
  %3846 = vmatpush2.msra.mxu0 0.0
  %3847 = vmatprep.subr.mxu0 0.0
  %3848 = vmatpush2.msra.mxu0 0.0
  %3849 = vmatprep.subr.mxu0 0.0
  %3850 = vmatpush2.msra.mxu0 0.0
  %3851 = vmatprep.subr.mxu0 0.0
  %3852 = vmatpush2.msra.mxu0 0.0
  %3853 = vmatprep.subr.mxu0 0.0
  %3854 = vmatpush2.msra.mxu0 0.0
  %3855 = vmatprep.subr.mxu0 0.0
  %3856 = vmatpush2.msra.mxu0 0.0
  %3857 = vmatprep.subr.mxu0 0.0
  %3858 = vmatpush2.msra.mxu0 0.0
  %3859 = vmatprep.subr.mxu0 0.0
  %3860 = vmatpush2.msra.mxu0 0.0
  %3861 = vmatprep.subr.mxu0 0.0
  %3862 = vmatpush2.msra.mxu0 0.0
  %3863 = vmatprep.subr.mxu0 0.0
  %3864 = vmatpush2.msra.mxu0 0.0
  %3865 = vmatprep.subr.mxu0 0.0
  %3866 = vmatpush2.msra.mxu0 0.0
  %3867 = vmatprep.subr.mxu0 0.0
  %3868 = vmatpush2.msra.mxu0 0.0
  %3869 = vmatprep.subr.mxu0 0.0
  %3870 = vmatpush2.msra.mxu0 0.0
  %3871 = vmatprep.subr.mxu0 0.0
  %3872 = vmatpush2.msra.mxu0 0.0
  %3873 = vmatprep.mubr.f32.mxu0 0.0
  %3874 = vmatmul.mubr.f32.gmra.mxu0 %v3799
  %v3875 = vpop.f32.mrf.mxu0
  %v3876 = vadd.f32 %v3775, %v3875
  %v3877 = vpop.f32.mrf.mxu0
  %3878 = vmatprep.mubr.f32.mxu0 0.0
  %3879 = vmatmul.mubr.f32.gmra.mxu0 %v3806
  %v3880 = vpop.f32.mrf.mxu0
  %v3881 = vadd.f32 %v3775, %v3880
  %v3882 = vpop.f32.mrf.mxu0
  %3883 = vdwg.mxu0
  %3884 = vmax.xlane.f32.xlu0 %v3876
  %v3885 = vpop.xlane.xlu0 %3884
  %3886 = vmax.xlane.f32.xlu0 %v3881
  %v3887 = vpop.xlane.xlu0 %3886
  %v3888 = vsub.f32 %v3876, %v3885
  %v3889 = vsub.f32 %v3881, %v3887
  %v3890 = vmul.f32 %v3888, 1.442695
  %v3891 = vpow.pop %v3890
  %v3892 = vmul.f32 %v3889, 1.442695
  %v3893 = vpow.pop %v3892
  %3894 = vadd.xlane.f32.xlu0 %v3891
  %v3895 = vpop.xlane.xlu0 %3894
  %3896 = vadd.xlane.f32.xlu0 %v3893
  %v3897 = vpop.xlane.xlu0 %3896
  %v3898 = vlog2.pop %v3895
  %v3899 = vmul.f32 %v3898, 0.6931472
  %v3900 = vlog2.pop %v3897
  %v3901 = vmul.f32 %v3900, 0.6931472
  %v3902 = vadd.f32 %v3885, %v3899
  %v3903 = vadd.f32 %v3887, %v3901
  %v3904 = vsub.f32 %v3876, %v3902
  %v3905 = vsub.f32 %v3881, %v3903
  %3906 = vst [vmem:[%s8] sm:$0xff] %v3904
  %3907 = vst [vmem:[%s8 + $0x8] sm:$0xff] %v3905
  // Predicated region
  $region34: #{rnn_sequence_classifier_forward.1} parent=0 // pred_check
    _
  $region35: #{rnn_sequence_classifier_forward.1} parent=0 // pred_check_branch
    %3909 = sbr.rel (0) target = $region37
  $region36: #{rnn_sequence_classifier_forward.1} parent=0 // pred_region
    _
  $region37: #{rnn_sequence_classifier_forward.1} parent=0 // pred_fallthru
    _
  // Predicated region
  $region38: #{rnn_sequence_classifier_forward.1} parent=0 // pred_check
    _
  $region39: #{rnn_sequence_classifier_forward.1} parent=0 // pred_check_branch
    %3911 = sbr.rel (0) target = $region41
  $region40: #{rnn_sequence_classifier_forward.1} parent=0 // pred_region
    _
  $region41: #{rnn_sequence_classifier_forward.1} parent=0 // pred_fallthru
    _
  // Predicated region
  $region42: #{rnn_sequence_classifier_forward.1} parent=0 // pred_check
    _
  $region43: #{rnn_sequence_classifier_forward.1} parent=0 // pred_check_branch
    %3913 = sbr.rel (0) target = $region45
  $region44: #{rnn_sequence_classifier_forward.1} parent=0 // pred_region
    _
  $region45: #{rnn_sequence_classifier_forward.1} parent=0 // pred_fallthru
    _
  // Predicated region
  $region46: #{rnn_sequence_classifier_forward.1} parent=0 // pred_check
    _
  $region47: #{rnn_sequence_classifier_forward.1} parent=0 // pred_check_branch
    %3915 = sbr.rel (0) target = $region49
  $region48: #{rnn_sequence_classifier_forward.1} parent=0 // pred_region
    _
  $region49: #{rnn_sequence_classifier_forward.1} parent=0 // pred_fallthru
    _

</llo_original>
